<compile_context>
chip_gen: v7x
topology: tpu7x:2x2x1
jax: 0.10.0
libtpu: 0.0.40
codegen_flags: <defaults>
</compile_context>

<pallas_src>
import numpy as np
import jax
import jax.numpy as jnp
from jax.experimental import pallas as pl
from jax.experimental.pallas import tpu as pltpu


# ----------------------------------------------------------------------------
# helpers
# ----------------------------------------------------------------------------
def _round_up(x, m):
    return ((x + m - 1) // m) * m


def _vmem_params(need_bytes):
    """Request actual footprint + headroom, capped by this chip's VMEM."""
    try:
        cap = int(pltpu.get_tpu_info().vmem_capacity_bytes)
    except Exception:
        cap = 64 * 1024 * 1024
    limit = int(min(max(2 * int(need_bytes), 8 * 1024 * 1024), (cap * 3) // 4))
    return pltpu.CompilerParams(vmem_limit_bytes=limit)


def _interp_matrix_2x(S):
    """(2S, S) linear-interpolation matrix: scale-2 upsample, align_corners=True."""
    O = 2 * S
    M = np.zeros((O, S), np.float32)
    if S == 1:
        M[:, 0] = 1.0
        return M
    coords = np.arange(O, dtype=np.float64) * (S - 1) / (O - 1)
    i0 = np.minimum(np.floor(coords).astype(np.int64), S - 1)
    i1 = np.minimum(i0 + 1, S - 1)
    w = coords - i0
    for o in range(O):
        M[o, i0[o]] += 1.0 - w[o]
        M[o, i1[o]] += w[o]
    return M


# ----------------------------------------------------------------------------
# fused kernel
# ----------------------------------------------------------------------------
def _make_up_kernel(D, HP1, HQ, H2, Kin, Kmid, Kout, cnt1, cnt2, eps):
    f32 = jnp.float32
    bf16 = jnp.bfloat16

    def kernel(x1_ref, x2p_ref, r1_ref, l1_ref,
               bw1_ref, g1_ref, bt1_ref, s1_ref, st1_ref,
               bw2_ref, g2_ref, bt2_ref, s2_ref, st2_ref,
               out_ref, xp_ref, yp_ref):
        # --- trilinear 2x upsample (align_corners) + F.pad + channel concat +
        #     conv1 H/W padding, all fused into two matmuls.  Rows = (d, hp),
        #     lanes = (n, w, c); L1/R1 already contain the pad placement, so
        #     the staged tensor is written with ONE full-tile store (bf16).
        x1w = jnp.dot(x1_ref[...], r1_ref[...], preferred_element_type=f32)
        x1u = jnp.dot(l1_ref[...], x1w, preferred_element_type=f32)      # (D*HP1, Kin)
        xp_ref[...] = (x1u + x2p_ref[...]).reshape(D, HP1, Kin).astype(bf16)

        # --- conv1: kernel (1,3,3), padding (0,2,1) -> 3 banded matmuls,
        #     K = Kin (lane-aligned, W-pad folded into the band weights).
        acc1 = jnp.zeros((D * HQ, Kmid), f32)
        for kh in range(3):
            slab = xp_ref[:, kh:kh + HQ, :].reshape(D * HQ, Kin)
            acc1 = acc1 + jnp.dot(slab, bw1_ref[kh], preferred_element_type=f32)

        # --- BatchNorm3d (training batch stats, biased var) + ReLU.
        #     Conv bias omitted: cancelled exactly by the mean subtraction.
        #     Rows hq >= A1 of acc1 are conv-over-zero rows (== 0), so they do
        #     not perturb the sums; cnt1 is the true population size.
        sum1 = jnp.sum(acc1, axis=0, keepdims=True)
        ssq1 = jnp.sum(acc1 * acc1, axis=0, keepdims=True)
        stat1 = jnp.dot(jnp.concatenate([sum1, ssq1], axis=0), s1_ref[...],
                        preferred_element_type=f32) * (1.0 / cnt1)       # (2, Cmid)
        m1 = stat1[0:1]
        v1 = stat1[1:2] - m1 * m1
        sc1 = g1_ref[...] * jax.lax.rsqrt(v1 + eps)
        sh1 = bt1_ref[...] - m1 * sc1
        aff1 = jnp.dot(jnp.concatenate([sc1, sh1], axis=0), st1_ref[...],
                       preferred_element_type=f32)                       # (2, Kmid)
        y1 = jnp.maximum(acc1 * aff1[0:1] + aff1[1:2], 0.0)              # (D*HQ, Kmid)

        # --- stage for conv2 (stays in VMEM, bf16): zero only the two D-pad
        #     slices, then one block store of the real data.
        zpad = jnp.zeros((1, HQ, Kmid), bf16)
        yp_ref[0:1] = zpad
        yp_ref[D + 1:D + 2] = zpad
        yp_ref[1:1 + D] = y1.reshape(D, HQ, Kmid).astype(bf16)

        # --- conv2: kernel (3,3,1), padding (1,0,0) -> 9 block-diagonal
        #     matmuls, K = Kmid = 128.
        acc2 = jnp.zeros((D * H2, Kout), f32)
        for t in range(9):
            kd, kh = t // 3, t % 3
            patch = yp_ref[kd:kd + D, kh:kh + H2, :].reshape(D * H2, Kmid)
            acc2 = acc2 + jnp.dot(patch, bw2_ref[t], preferred_element_type=f32)

        # --- BatchNorm3d + ReLU, full (>=128 lane) unmasked output store.
        sum2 = jnp.sum(acc2, axis=0, keepdims=True)
        ssq2 = jnp.sum(acc2 * acc2, axis=0, keepdims=True)
        stat2 = jnp.dot(jnp.concatenate([sum2, ssq2], axis=0), s2_ref[...],
                        preferred_element_type=f32) * (1.0 / cnt2)
        m2 = stat2[0:1]
        v2 = stat2[1:2] - m2 * m2
        sc2 = g2_ref[...] * jax.lax.rsqrt(v2 + eps)
        sh2 = bt2_ref[...] - m2 * sc2
        aff2 = jnp.dot(jnp.concatenate([sc2, sh2], axis=0), st2_ref[...],
                       preferred_element_type=f32)
        out_ref[...] = jnp.maximum(acc2 * aff2[0:1] + aff2[1:2], 0.0)

    return kernel


# ----------------------------------------------------------------------------
# parameters + forward
# ----------------------------------------------------------------------------
def init_up_params(key, in_channels, out_channels):
    mid = in_channels // 2
    k1, k2, k3, k4 = jax.random.split(key, 4)
    return dict(
        # PyTorch-layout conv weights.  b1/b2 kept for interface parity but
        # unused: a conv bias is exactly cancelled by training-mode BatchNorm.
        w1=jax.random.normal(k1, (mid, in_channels, 1, 3, 3), jnp.float32) * 0.1,
        b1=jax.random.normal(k2, (mid,), jnp.float32) * 0.1,
        g1=jnp.ones((mid,), jnp.float32),
        bt1=jnp.zeros((mid,), jnp.float32),
        w2=jax.random.normal(k3, (out_channels, mid, 3, 3, 1), jnp.float32) * 0.1,
        b2=jax.random.normal(k4, (out_channels,), jnp.float32) * 0.1,
        g2=jnp.ones((out_channels,), jnp.float32),
        bt2=jnp.zeros((out_channels,), jnp.float32),
    )


def up_forward(params, x1, x2, *, eps=1e-5):
    # x1, x2: NCDHW float32
    N, C1, D1, H1, W1 = map(int, x1.shape)
    N2, C2, Dx2, H2, W2 = map(int, x2.shape)
    assert N == N2
    D, H, W = 2 * D1, 2 * H1, 2 * W1
    if D != Dx2:
        raise ValueError("upsampled depth must match skip-connection depth")
    diffY, diffX = H2 - H, W2 - W
    if diffY < 0 or diffX < 0:
        # TODO(synk): F.pad cropping (negative diffs) not supported.
        raise ValueError("negative diffX/diffY (cropping) unsupported")
    dY0, dX0 = diffY // 2, diffX // 2

    w1_pt, w2_pt = params["w1"], params["w2"]
    Cmid, Cin = int(w1_pt.shape[0]), int(w1_pt.shape[1])
    Cout = int(w2_pt.shape[0])
    assert C1 + C2 == Cin

    A1 = H2 + 2                       # conv1 output H extent
    HQ = _round_up(A1, 8)             # conv1 output rows per d (sublane-aligned)
    HP1 = _round_up(HQ + 2, 8)        # conv1 staged-input rows per d
    Kin, Kmid, Kout = N * W2 * Cin, N * W2 * Cmid, N * W2 * Cout
    cnt1 = float(N * D * A1 * W2)     # BN1 population per channel
    cnt2 = float(N * D * H2 * W2)     # BN2 population per channel

    # ---- shape-only constants (numpy, embedded at trace time) --------------
    Uw = _interp_matrix_2x(W1)        # (W,  W1)
    Uh = _interp_matrix_2x(H1)        # (H,  H1)
    Ud = _interp_matrix_2x(D1)        # (D,  D1)

    # R1: W-upsample + F.pad-W + scatter x1 channels into slots [C2, Cin) of
    #     the merged (n, w, c) lane axis (block-diagonal over n).
    R1blk = np.zeros((W1 * C1, W2 * Cin), np.float32)
    for wu in range(W):
        wq = dX0 + wu
        if 0 <= wq < W2:
            for w1i in range(W1):
                uv = Uw[wu, w1i]
                if uv != 0.0:
                    for c in range(C1):
                        R1blk[w1i * C1 + c, wq * Cin + C2 + c] += uv
    R1 = np.kron(np.eye(N, dtype=np.float32), R1blk)        # (N*W1*C1, Kin)

    # L1: D- and H-upsample + F.pad-H + conv1 H-pad placement.  Rows = (d, hp)
    #     with hp in [0, HP1); pad rows are zero rows (no in-kernel zero fill).
    L1 = np.zeros((D * HP1, D1 * H1), np.float32)
    for d in range(D):
        for hu in range(H):
            h = dY0 + hu
            if 0 <= h < H2:
                row = d * HP1 + 2 + h
                for d1i in range(D1):
                    ud = Ud[d, d1i]
                    if ud != 0.0:
                        for h1i in range(H1):
                            v = ud * Uh[hu, h1i]
                            if v != 0.0:
                                L1[row, d1i * H1 + h1i] += v

    # BN channel fold / broadcast matrices for the (n, w, c) lane layout.
    S1 = np.tile(np.eye(Cmid, dtype=np.float32), (N * W2, 1))   # (Kmid, Cmid)
    S2 = np.tile(np.eye(Cout, dtype=np.float32), (N * W2, 1))   # (Kout, Cout)

    # ---- weight-derived constants (traced, tiny) ----------------------------
    # conv1 band weights (one per kh), W padding folded in: (Kin, Kmid) bf16.
    eyeN = jnp.asarray(np.eye(N, dtype=np.float32))
    eyeNW = jnp.asarray(np.eye(N * W2, dtype=np.float32))
    bw1_list = []
    for kh in range(3):
        m = jnp.zeros((W2 * Cin, W2 * Cmid), jnp.float32)
        for kw in range(3):
            band = jnp.asarray(np.eye(W2, W2, k=1 - kw, dtype=np.float32))
            m = m + jnp.kron(band, jnp.transpose(w1_pt[:, :, 0, kh, kw]))
        bw1_list.append(jnp.kron(eyeN, m))
    BW1 = jnp.stack(bw1_list).astype(jnp.bfloat16)              # (3, Kin, Kmid)
    # conv2 block-diagonal weights (one per (kd, kh)): (Kmid, Kout) bf16.
    bw2_list = []
    for kd in range(3):
        for kh in range(3):
            bw2_list.append(jnp.kron(eyeNW, jnp.transpose(w2_pt[:, :, kd, kh, 0])))
    BW2 = jnp.stack(bw2_list).astype(jnp.bfloat16)              # (9, Kmid, Kout)

    g1 = params["g1"].reshape(1, Cmid)
    bt1 = params["bt1"].reshape(1, Cmid)
    g2 = params["g2"].reshape(1, Cout)
    bt2 = params["bt2"].reshape(1, Cout)

    # ---- wrapper-side layout plumbing (cheap, tiny arrays) -------------------
    # x1: rows = (d1, h1), lanes = (n, w1, c1)
    x1_2d = jnp.transpose(x1, (2, 3, 0, 4, 1)).reshape(D1 * H1, N * W1 * C1)
    # x2: already staged in the conv1 layout (rows = (d, hp), lanes = (n, w, c)),
    #     channels placed in [0, C2) and H-pad rows pre-zeroed.
    x2t = jnp.transpose(x2, (2, 3, 0, 4, 1))                    # (D, H2, N, W2, C2)
    x2t = jnp.pad(x2t, ((0, 0), (2, HP1 - 2 - H2), (0, 0), (0, 0), (0, Cin - C2)))
    x2p = x2t.reshape(D * HP1, Kin)

    # ---- VMEM footprint -> compiler params -----------------------------------
    vmem_need = (4 * (x1_2d.size + x2p.size + R1.size + L1.size
                      + 2 * S1.size + 2 * S2.size + 4 * (Cmid + Cout))
                 + 2 * (BW1.size + BW2.size)
                 + 2 * (D * HP1 * Kin + (D + 2) * HQ * Kmid)
                 + 4 * (D * H2 * Kout))

    kernel = _make_up_kernel(D, HP1, HQ, H2, Kin, Kmid, Kout, cnt1, cnt2, float(eps))
    out2d = pl.pallas_call(
        kernel,
        out_shape=jax.ShapeDtypeStruct((D * H2, Kout), jnp.float32),
        scratch_shapes=[
            pltpu.VMEM((D, HP1, Kin), jnp.bfloat16),       # conv1 staged input
            pltpu.VMEM((D + 2, HQ, Kmid), jnp.bfloat16),   # conv2 staged (D-padded) input
        ],
        compiler_params=_vmem_params(vmem_need),
    )(x1_2d.astype(jnp.float32), x2p.astype(jnp.float32),
      jnp.asarray(R1), jnp.asarray(L1),
      BW1, g1, bt1, jnp.asarray(S1), jnp.asarray(S1.T),
      BW2, g2, bt2, jnp.asarray(S2), jnp.asarray(S2.T))

    # rows = (d, h), lanes = (n, w, c)  ->  NCDHW
    out = out2d.reshape(D, H2, N, W2, Cout)
    return jnp.transpose(out, (2, 4, 0, 1, 3))


if __name__ == "__main__":
    key = jax.random.PRNGKey(0)
    kp, kx1, kx2 = jax.random.split(key, 3)

    in_channels, out_channels = 8, 4           # Up(8, 4, trilinear=True), mid = 4
    params = init_up_params(kp, in_channels, out_channels)

    # x1: deeper feature map (4 channels); x2: skip connection (4 channels,
    # spatial dims = 2x of x1 so that the concat has in_channels=8 channels).
    x1 = jax.random.normal(kx1, (2, 4, 4, 8, 8), jnp.float32)
    x2 = jax.random.normal(kx2, (2, 4, 8, 16, 16), jnp.float32)

    out = jax.jit(up_forward)(params, x1, x2)
    out = jax.block_until_ready(out)

    assert out.shape == (2, out_channels, 8, 16, 16), out.shape
    assert bool(jnp.all(jnp.isfinite(out)))
    print("KERNEL_OK")
</pallas_src>

<mosaic_0001>
module attributes {stable_mosaic.version = 11 : i64} {
  func.func @kernel(%arg0: memref<32x64xf32, #tpu.memory_space<vmem>>, %arg1: memref<256x256xf32, #tpu.memory_space<vmem>>, %arg2: memref<64x256xf32, #tpu.memory_space<vmem>>, %arg3: memref<256x32xf32, #tpu.memory_space<vmem>>, %arg4: memref<3x256x128xbf16, #tpu.memory_space<vmem>>, %arg5: memref<1x4xf32, #tpu.memory_space<vmem>>, %arg6: memref<1x4xf32, #tpu.memory_space<vmem>>, %arg7: memref<128x4xf32, #tpu.memory_space<vmem>>, %arg8: memref<4x128xf32, #tpu.memory_space<vmem>>, %arg9: memref<9x128x128xbf16, #tpu.memory_space<vmem>>, %arg10: memref<1x4xf32, #tpu.memory_space<vmem>>, %arg11: memref<1x4xf32, #tpu.memory_space<vmem>>, %arg12: memref<128x4xf32, #tpu.memory_space<vmem>>, %arg13: memref<4x128xf32, #tpu.memory_space<vmem>>, %arg14: memref<128x128xf32, #tpu.memory_space<vmem>>, %arg15: memref<8x32x256xbf16, #tpu.memory_space<vmem>>, %arg16: memref<10x24x128xbf16, #tpu.memory_space<vmem>>) attributes {dimension_semantics = [], scalar_prefetch = 0 : i64, scratch_operands = 2 : i64, tpu.core_type = #tpu.core_type<tc>} {
    %c0 = arith.constant 0 : index
    %c0_0 = arith.constant 0 : index
    %0 = vector.load %arg0[%c0, %c0_0] : memref<32x64xf32, #tpu.memory_space<vmem>>, vector<32x64xf32>
    %c0_1 = arith.constant 0 : index
    %c0_2 = arith.constant 0 : index
    %1 = vector.load %arg2[%c0_1, %c0_2] : memref<64x256xf32, #tpu.memory_space<vmem>>, vector<64x256xf32>
    %cst = arith.constant dense<0.000000e+00> : vector<32x256xf32>
    %2 = tpu.matmul %0, %1, %cst {dimension_numbers = #tpu.dot_dimension_numbers<[1], [0], [0], [1], [0, 0, 1, 1], [], []>} : vector<32x64xf32>, vector<64x256xf32>, vector<32x256xf32> -> vector<32x256xf32>
    %c0_3 = arith.constant 0 : index
    %c0_4 = arith.constant 0 : index
    %3 = vector.load %arg3[%c0_3, %c0_4] : memref<256x32xf32, #tpu.memory_space<vmem>>, vector<256x32xf32>
    %cst_5 = arith.constant dense<0.000000e+00> : vector<256x256xf32>
    %4 = tpu.matmul %3, %2, %cst_5 {dimension_numbers = #tpu.dot_dimension_numbers<[1], [0], [0], [1], [0, 0, 1, 1], [], []>} : vector<256x32xf32>, vector<32x256xf32>, vector<256x256xf32> -> vector<256x256xf32>
    %c0_6 = arith.constant 0 : index
    %c0_7 = arith.constant 0 : index
    %5 = vector.load %arg1[%c0_6, %c0_7] : memref<256x256xf32, #tpu.memory_space<vmem>>, vector<256x256xf32>
    %6 = arith.addf %4, %5 : vector<256x256xf32>
    %7 = vector.shape_cast %6 : vector<256x256xf32> to vector<8x32x256xf32>
    %8 = arith.truncf %7 : vector<8x32x256xf32> to vector<8x32x256xbf16>
    %c0_8 = arith.constant 0 : index
    %c0_9 = arith.constant 0 : index
    %c0_10 = arith.constant 0 : index
    %9 = vector.load %arg15[%c0_8, %c0_9, %c0_10] : memref<8x32x256xbf16, #tpu.memory_space<vmem>>, vector<8x32x256xbf16>
    tpu.vector_store %arg15[%c0_8, %c0_9, %c0_10], %8 {strides = array<i32>} : memref<8x32x256xbf16, #tpu.memory_space<vmem>>, vector<8x32x256xbf16>,
    %cst_11 = arith.constant 0.000000e+00 : f32
    %10 = vector.broadcast %cst_11 : f32 to vector<192x128xf32>
    %c0_12 = arith.constant 0 : index
    %c0_13 = arith.constant 0 : index
    %c0_14 = arith.constant 0 : index
    %11 = vector.load %arg15[%c0_12, %c0_13, %c0_14] : memref<8x32x256xbf16, #tpu.memory_space<vmem>>, vector<8x24x256xbf16>
    %12 = vector.shape_cast %11 : vector<8x24x256xbf16> to vector<192x256xbf16>
    %c0_15 = arith.constant 0 : index
    %c0_16 = arith.constant 0 : index
    %c0_17 = arith.constant 0 : index
    %13 = vector.load %arg4[%c0_15, %c0_16, %c0_17] : memref<3x256x128xbf16, #tpu.memory_space<vmem>>, vector<1x256x128xbf16>
    %14 = vector.shape_cast %13 : vector<1x256x128xbf16> to vector<256x128xbf16>
    %cst_18 = arith.constant dense<0.000000e+00> : vector<192x128xf32>
    %15 = tpu.matmul %12, %14, %cst_18 {dimension_numbers = #tpu.dot_dimension_numbers<[1], [0], [0], [1], [0, 0, 1, 1], [], []>} : vector<192x256xbf16>, vector<256x128xbf16>, vector<192x128xf32> -> vector<192x128xf32>
    %16 = arith.addf %10, %15 : vector<192x128xf32>
    %c0_19 = arith.constant 0 : index
    %c1 = arith.constant 1 : index
    %c0_20 = arith.constant 0 : index
    %17 = vector.load %arg15[%c0_19, %c1, %c0_20] : memref<8x32x256xbf16, #tpu.memory_space<vmem>>, vector<8x24x256xbf16>
    %18 = vector.shape_cast %17 : vector<8x24x256xbf16> to vector<192x256xbf16>
    %c1_21 = arith.constant 1 : index
    %c0_22 = arith.constant 0 : index
    %c0_23 = arith.constant 0 : index
    %19 = vector.load %arg4[%c1_21, %c0_22, %c0_23] : memref<3x256x128xbf16, #tpu.memory_space<vmem>>, vector<1x256x128xbf16>
    %20 = vector.shape_cast %19 : vector<1x256x128xbf16> to vector<256x128xbf16>
    %cst_24 = arith.constant dense<0.000000e+00> : vector<192x128xf32>
    %21 = tpu.matmul %18, %20, %cst_24 {dimension_numbers = #tpu.dot_dimension_numbers<[1], [0], [0], [1], [0, 0, 1, 1], [], []>} : vector<192x256xbf16>, vector<256x128xbf16>, vector<192x128xf32> -> vector<192x128xf32>
    %22 = arith.addf %16, %21 : vector<192x128xf32>
    %c0_25 = arith.constant 0 : index
    %c2 = arith.constant 2 : index
    %c0_26 = arith.constant 0 : index
    %23 = vector.load %arg15[%c0_25, %c2, %c0_26] : memref<8x32x256xbf16, #tpu.memory_space<vmem>>, vector<8x24x256xbf16>
    %24 = vector.shape_cast %23 : vector<8x24x256xbf16> to vector<192x256xbf16>
    %c2_27 = arith.constant 2 : index
    %c0_28 = arith.constant 0 : index
    %c0_29 = arith.constant 0 : index
    %25 = vector.load %arg4[%c2_27, %c0_28, %c0_29] : memref<3x256x128xbf16, #tpu.memory_space<vmem>>, vector<1x256x128xbf16>
    %26 = vector.shape_cast %25 : vector<1x256x128xbf16> to vector<256x128xbf16>
    %cst_30 = arith.constant dense<0.000000e+00> : vector<192x128xf32>
    %27 = tpu.matmul %24, %26, %cst_30 {dimension_numbers = #tpu.dot_dimension_numbers<[1], [0], [0], [1], [0, 0, 1, 1], [], []>} : vector<192x256xbf16>, vector<256x128xbf16>, vector<192x128xf32> -> vector<192x128xf32>
    %28 = arith.addf %22, %27 : vector<192x128xf32>
    %cst_31 = arith.constant dense<0.000000e+00> : vector<128xf32>
    %29 = vector.multi_reduction <add>, %28, %cst_31 [0] : vector<192x128xf32> to vector<128xf32>
    %30 = vector.shape_cast %29 : vector<128xf32> to vector<1x128xf32>
    %31 = arith.mulf %28, %28 : vector<192x128xf32>
    %cst_32 = arith.constant dense<0.000000e+00> : vector<128xf32>
    %32 = vector.multi_reduction <add>, %31, %cst_32 [0] : vector<192x128xf32> to vector<128xf32>
    %33 = vector.shape_cast %32 : vector<128xf32> to vector<1x128xf32>
    %34 = tpu.concatenate %30, %33 in 0 : vector<1x128xf32>, vector<1x128xf32> -> vector<2x128xf32>
    %c0_33 = arith.constant 0 : index
    %c0_34 = arith.constant 0 : index
    %35 = vector.load %arg7[%c0_33, %c0_34] : memref<128x4xf32, #tpu.memory_space<vmem>>, vector<128x4xf32>
    %cst_35 = arith.constant dense<0.000000e+00> : vector<2x4xf32>
    %36 = tpu.matmul %34, %35, %cst_35 {dimension_numbers = #tpu.dot_dimension_numbers<[1], [0], [0], [1], [0, 0, 1, 1], [], []>} : vector<2x128xf32>, vector<128x4xf32>, vector<2x4xf32> -> vector<2x4xf32>
    %cst_36 = arith.constant 2.17013891E-4 : f32
    %37 = vector.broadcast %cst_36 : f32 to vector<2x4xf32>
    %38 = arith.mulf %36, %37 : vector<2x4xf32>
    %39 = vector.extract_strided_slice %38 {offsets = [0, 0], sizes = [1, 4], strides = [1, 1]} : vector<2x4xf32> to vector<1x4xf32>
    %40 = vector.extract_strided_slice %38 {offsets = [1, 0], sizes = [1, 4], strides = [1, 1]} : vector<2x4xf32> to vector<1x4xf32>
    %41 = arith.mulf %39, %39 : vector<1x4xf32>
    %42 = arith.subf %40, %41 : vector<1x4xf32>
    %c0_37 = arith.constant 0 : index
    %c0_38 = arith.constant 0 : index
    %43 = vector.load %arg5[%c0_37, %c0_38] : memref<1x4xf32, #tpu.memory_space<vmem>>, vector<1x4xf32>
    %cst_39 = arith.constant 9.99999974E-6 : f32
    %44 = vector.broadcast %cst_39 : f32 to vector<1x4xf32>
    %45 = arith.addf %42, %44 : vector<1x4xf32>
    %46 = math.rsqrt %45 : vector<1x4xf32>
    %47 = arith.mulf %43, %46 : vector<1x4xf32>
    %c0_40 = arith.constant 0 : index
    %c0_41 = arith.constant 0 : index
    %48 = vector.load %arg6[%c0_40, %c0_41] : memref<1x4xf32, #tpu.memory_space<vmem>>, vector<1x4xf32>
    %49 = arith.mulf %39, %47 : vector<1x4xf32>
    %50 = arith.subf %48, %49 : vector<1x4xf32>
    %51 = tpu.concatenate %47, %50 in 0 : vector<1x4xf32>, vector<1x4xf32> -> vector<2x4xf32>
    %c0_42 = arith.constant 0 : index
    %c0_43 = arith.constant 0 : index
    %52 = vector.load %arg8[%c0_42, %c0_43] : memref<4x128xf32, #tpu.memory_space<vmem>>, vector<4x128xf32>
    %cst_44 = arith.constant dense<0.000000e+00> : vector<2x128xf32>
    %53 = tpu.matmul %51, %52, %cst_44 {dimension_numbers = #tpu.dot_dimension_numbers<[1], [0], [0], [1], [0, 0, 1, 1], [], []>} : vector<2x4xf32>, vector<4x128xf32>, vector<2x128xf32> -> vector<2x128xf32>
    %54 = vector.extract_strided_slice %53 {offsets = [0, 0], sizes = [1, 128], strides = [1, 1]} : vector<2x128xf32> to vector<1x128xf32>
    %55 = vector.broadcast %54 : vector<1x128xf32> to vector<192x128xf32>
    %56 = arith.mulf %28, %55 : vector<192x128xf32>
    %57 = vector.extract_strided_slice %53 {offsets = [1, 0], sizes = [1, 128], strides = [1, 1]} : vector<2x128xf32> to vector<1x128xf32>
    %58 = vector.broadcast %57 : vector<1x128xf32> to vector<192x128xf32>
    %59 = arith.addf %56, %58 : vector<192x128xf32>
    %cst_45 = arith.constant 0.000000e+00 : f32
    %60 = vector.broadcast %cst_45 : f32 to vector<192x128xf32>
    %61 = arith.maximumf %59, %60 : vector<192x128xf32>
    %cst_46 = arith.constant 0.000000e+00 : bf16
    %62 = vector.broadcast %cst_46 : bf16 to vector<1x24x128xbf16>
    %c0_47 = arith.constant 0 : index
    %c0_48 = arith.constant 0 : index
    %c0_49 = arith.constant 0 : index
    %63 = vector.load %arg16[%c0_47, %c0_48, %c0_49] : memref<10x24x128xbf16, #tpu.memory_space<vmem>>, vector<1x24x128xbf16>
    tpu.vector_store %arg16[%c0_47, %c0_48, %c0_49], %62 {strides = array<i32>} : memref<10x24x128xbf16, #tpu.memory_space<vmem>>, vector<1x24x128xbf16>,
    %c9 = arith.constant 9 : index
    %c0_50 = arith.constant 0 : index
    %c0_51 = arith.constant 0 : index
    %64 = vector.load %arg16[%c9, %c0_50, %c0_51] : memref<10x24x128xbf16, #tpu.memory_space<vmem>>, vector<1x24x128xbf16>
    tpu.vector_store %arg16[%c9, %c0_50, %c0_51], %62 {strides = array<i32>} : memref<10x24x128xbf16, #tpu.memory_space<vmem>>, vector<1x24x128xbf16>,
    %65 = vector.shape_cast %61 : vector<192x128xf32> to vector<8x24x128xf32>
    %66 = arith.truncf %65 : vector<8x24x128xf32> to vector<8x24x128xbf16>
    %c1_52 = arith.constant 1 : index
    %c0_53 = arith.constant 0 : index
    %c0_54 = arith.constant 0 : index
    %67 = vector.load %arg16[%c1_52, %c0_53, %c0_54] : memref<10x24x128xbf16, #tpu.memory_space<vmem>>, vector<8x24x128xbf16>
    tpu.vector_store %arg16[%c1_52, %c0_53, %c0_54], %66 {strides = array<i32>} : memref<10x24x128xbf16, #tpu.memory_space<vmem>>, vector<8x24x128xbf16>,
    %cst_55 = arith.constant 0.000000e+00 : f32
    %68 = vector.broadcast %cst_55 : f32 to vector<128x128xf32>
    %c0_56 = arith.constant 0 : index
    %c0_57 = arith.constant 0 : index
    %c0_58 = arith.constant 0 : index
    %69 = vector.load %arg16[%c0_56, %c0_57, %c0_58] : memref<10x24x128xbf16, #tpu.memory_space<vmem>>, vector<8x16x128xbf16>
    %70 = vector.shape_cast %69 : vector<8x16x128xbf16> to vector<128x128xbf16>
    %c0_59 = arith.constant 0 : index
    %c0_60 = arith.constant 0 : index
    %c0_61 = arith.constant 0 : index
    %71 = vector.load %arg9[%c0_59, %c0_60, %c0_61] : memref<9x128x128xbf16, #tpu.memory_space<vmem>>, vector<1x128x128xbf16>
    %72 = vector.shape_cast %71 : vector<1x128x128xbf16> to vector<128x128xbf16>
    %cst_62 = arith.constant dense<0.000000e+00> : vector<128x128xf32>
    %73 = tpu.matmul %70, %72, %cst_62 {dimension_numbers = #tpu.dot_dimension_numbers<[1], [0], [0], [1], [0, 0, 1, 1], [], []>} : vector<128x128xbf16>, vector<128x128xbf16>, vector<128x128xf32> -> vector<128x128xf32>
    %74 = arith.addf %68, %73 : vector<128x128xf32>
    %c0_63 = arith.constant 0 : index
    %c1_64 = arith.constant 1 : index
    %c0_65 = arith.constant 0 : index
    %75 = vector.load %arg16[%c0_63, %c1_64, %c0_65] : memref<10x24x128xbf16, #tpu.memory_space<vmem>>, vector<8x16x128xbf16>
    %76 = vector.shape_cast %75 : vector<8x16x128xbf16> to vector<128x128xbf16>
    %c1_66 = arith.constant 1 : index
    %c0_67 = arith.constant 0 : index
    %c0_68 = arith.constant 0 : index
    %77 = vector.load %arg9[%c1_66, %c0_67, %c0_68] : memref<9x128x128xbf16, #tpu.memory_space<vmem>>, vector<1x128x128xbf16>
    %78 = vector.shape_cast %77 : vector<1x128x128xbf16> to vector<128x128xbf16>
    %cst_69 = arith.constant dense<0.000000e+00> : vector<128x128xf32>
    %79 = tpu.matmul %76, %78, %cst_69 {dimension_numbers = #tpu.dot_dimension_numbers<[1], [0], [0], [1], [0, 0, 1, 1], [], []>} : vector<128x128xbf16>, vector<128x128xbf16>, vector<128x128xf32> -> vector<128x128xf32>
    %80 = arith.addf %74, %79 : vector<128x128xf32>
    %c0_70 = arith.constant 0 : index
    %c2_71 = arith.constant 2 : index
    %c0_72 = arith.constant 0 : index
    %81 = vector.load %arg16[%c0_70, %c2_71, %c0_72] : memref<10x24x128xbf16, #tpu.memory_space<vmem>>, vector<8x16x128xbf16>
    %82 = vector.shape_cast %81 : vector<8x16x128xbf16> to vector<128x128xbf16>
    %c2_73 = arith.constant 2 : index
    %c0_74 = arith.constant 0 : index
    %c0_75 = arith.constant 0 : index
    %83 = vector.load %arg9[%c2_73, %c0_74, %c0_75] : memref<9x128x128xbf16, #tpu.memory_space<vmem>>, vector<1x128x128xbf16>
    %84 = vector.shape_cast %83 : vector<1x128x128xbf16> to vector<128x128xbf16>
    %cst_76 = arith.constant dense<0.000000e+00> : vector<128x128xf32>
    %85 = tpu.matmul %82, %84, %cst_76 {dimension_numbers = #tpu.dot_dimension_numbers<[1], [0], [0], [1], [0, 0, 1, 1], [], []>} : vector<128x128xbf16>, vector<128x128xbf16>, vector<128x128xf32> -> vector<128x128xf32>
    %86 = arith.addf %80, %85 : vector<128x128xf32>
    %c1_77 = arith.constant 1 : index
    %c0_78 = arith.constant 0 : index
    %c0_79 = arith.constant 0 : index
    %87 = vector.load %arg16[%c1_77, %c0_78, %c0_79] : memref<10x24x128xbf16, #tpu.memory_space<vmem>>, vector<8x16x128xbf16>
    %88 = vector.shape_cast %87 : vector<8x16x128xbf16> to vector<128x128xbf16>
    %c3 = arith.constant 3 : index
    %c0_80 = arith.constant 0 : index
    %c0_81 = arith.constant 0 : index
    %89 = vector.load %arg9[%c3, %c0_80, %c0_81] : memref<9x128x128xbf16, #tpu.memory_space<vmem>>, vector<1x128x128xbf16>
    %90 = vector.shape_cast %89 : vector<1x128x128xbf16> to vector<128x128xbf16>
    %cst_82 = arith.constant dense<0.000000e+00> : vector<128x128xf32>
    %91 = tpu.matmul %88, %90, %cst_82 {dimension_numbers = #tpu.dot_dimension_numbers<[1], [0], [0], [1], [0, 0, 1, 1], [], []>} : vector<128x128xbf16>, vector<128x128xbf16>, vector<128x128xf32> -> vector<128x128xf32>
    %92 = arith.addf %86, %91 : vector<128x128xf32>
    %c1_83 = arith.constant 1 : index
    %c1_84 = arith.constant 1 : index
    %c0_85 = arith.constant 0 : index
    %93 = vector.load %arg16[%c1_83, %c1_84, %c0_85] : memref<10x24x128xbf16, #tpu.memory_space<vmem>>, vector<8x16x128xbf16>
    %94 = vector.shape_cast %93 : vector<8x16x128xbf16> to vector<128x128xbf16>
    %c4 = arith.constant 4 : index
    %c0_86 = arith.constant 0 : index
    %c0_87 = arith.constant 0 : index
    %95 = vector.load %arg9[%c4, %c0_86, %c0_87] : memref<9x128x128xbf16, #tpu.memory_space<vmem>>, vector<1x128x128xbf16>
    %96 = vector.shape_cast %95 : vector<1x128x128xbf16> to vector<128x128xbf16>
    %cst_88 = arith.constant dense<0.000000e+00> : vector<128x128xf32>
    %97 = tpu.matmul %94, %96, %cst_88 {dimension_numbers = #tpu.dot_dimension_numbers<[1], [0], [0], [1], [0, 0, 1, 1], [], []>} : vector<128x128xbf16>, vector<128x128xbf16>, vector<128x128xf32> -> vector<128x128xf32>
    %98 = arith.addf %92, %97 : vector<128x128xf32>
    %c1_89 = arith.constant 1 : index
    %c2_90 = arith.constant 2 : index
    %c0_91 = arith.constant 0 : index
    %99 = vector.load %arg16[%c1_89, %c2_90, %c0_91] : memref<10x24x128xbf16, #tpu.memory_space<vmem>>, vector<8x16x128xbf16>
    %100 = vector.shape_cast %99 : vector<8x16x128xbf16> to vector<128x128xbf16>
    %c5 = arith.constant 5 : index
    %c0_92 = arith.constant 0 : index
    %c0_93 = arith.constant 0 : index
    %101 = vector.load %arg9[%c5, %c0_92, %c0_93] : memref<9x128x128xbf16, #tpu.memory_space<vmem>>, vector<1x128x128xbf16>
    %102 = vector.shape_cast %101 : vector<1x128x128xbf16> to vector<128x128xbf16>
    %cst_94 = arith.constant dense<0.000000e+00> : vector<128x128xf32>
    %103 = tpu.matmul %100, %102, %cst_94 {dimension_numbers = #tpu.dot_dimension_numbers<[1], [0], [0], [1], [0, 0, 1, 1], [], []>} : vector<128x128xbf16>, vector<128x128xbf16>, vector<128x128xf32> -> vector<128x128xf32>
    %104 = arith.addf %98, %103 : vector<128x128xf32>
    %c2_95 = arith.constant 2 : index
    %c0_96 = arith.constant 0 : index
    %c0_97 = arith.constant 0 : index
    %105 = vector.load %arg16[%c2_95, %c0_96, %c0_97] : memref<10x24x128xbf16, #tpu.memory_space<vmem>>, vector<8x16x128xbf16>
    %106 = vector.shape_cast %105 : vector<8x16x128xbf16> to vector<128x128xbf16>
    %c6 = arith.constant 6 : index
    %c0_98 = arith.constant 0 : index
    %c0_99 = arith.constant 0 : index
    %107 = vector.load %arg9[%c6, %c0_98, %c0_99] : memref<9x128x128xbf16, #tpu.memory_space<vmem>>, vector<1x128x128xbf16>
    %108 = vector.shape_cast %107 : vector<1x128x128xbf16> to vector<128x128xbf16>
    %cst_100 = arith.constant dense<0.000000e+00> : vector<128x128xf32>
    %109 = tpu.matmul %106, %108, %cst_100 {dimension_numbers = #tpu.dot_dimension_numbers<[1], [0], [0], [1], [0, 0, 1, 1], [], []>} : vector<128x128xbf16>, vector<128x128xbf16>, vector<128x128xf32> -> vector<128x128xf32>
    %110 = arith.addf %104, %109 : vector<128x128xf32>
    %c2_101 = arith.constant 2 : index
    %c1_102 = arith.constant 1 : index
    %c0_103 = arith.constant 0 : index
    %111 = vector.load %arg16[%c2_101, %c1_102, %c0_103] : memref<10x24x128xbf16, #tpu.memory_space<vmem>>, vector<8x16x128xbf16>
    %112 = vector.shape_cast %111 : vector<8x16x128xbf16> to vector<128x128xbf16>
    %c7 = arith.constant 7 : index
    %c0_104 = arith.constant 0 : index
    %c0_105 = arith.constant 0 : index
    %113 = vector.load %arg9[%c7, %c0_104, %c0_105] : memref<9x128x128xbf16, #tpu.memory_space<vmem>>, vector<1x128x128xbf16>
    %114 = vector.shape_cast %113 : vector<1x128x128xbf16> to vector<128x128xbf16>
    %cst_106 = arith.constant dense<0.000000e+00> : vector<128x128xf32>
    %115 = tpu.matmul %112, %114, %cst_106 {dimension_numbers = #tpu.dot_dimension_numbers<[1], [0], [0], [1], [0, 0, 1, 1], [], []>} : vector<128x128xbf16>, vector<128x128xbf16>, vector<128x128xf32> -> vector<128x128xf32>
    %116 = arith.addf %110, %115 : vector<128x128xf32>
    %c2_107 = arith.constant 2 : index
    %c2_108 = arith.constant 2 : index
    %c0_109 = arith.constant 0 : index
    %117 = vector.load %arg16[%c2_107, %c2_108, %c0_109] : memref<10x24x128xbf16, #tpu.memory_space<vmem>>, vector<8x16x128xbf16>
    %118 = vector.shape_cast %117 : vector<8x16x128xbf16> to vector<128x128xbf16>
    %c8 = arith.constant 8 : index
    %c0_110 = arith.constant 0 : index
    %c0_111 = arith.constant 0 : index
    %119 = vector.load %arg9[%c8, %c0_110, %c0_111] : memref<9x128x128xbf16, #tpu.memory_space<vmem>>, vector<1x128x128xbf16>
    %120 = vector.shape_cast %119 : vector<1x128x128xbf16> to vector<128x128xbf16>
    %cst_112 = arith.constant dense<0.000000e+00> : vector<128x128xf32>
    %121 = tpu.matmul %118, %120, %cst_112 {dimension_numbers = #tpu.dot_dimension_numbers<[1], [0], [0], [1], [0, 0, 1, 1], [], []>} : vector<128x128xbf16>, vector<128x128xbf16>, vector<128x128xf32> -> vector<128x128xf32>
    %122 = arith.addf %116, %121 : vector<128x128xf32>
    %cst_113 = arith.constant dense<0.000000e+00> : vector<128xf32>
    %123 = vector.multi_reduction <add>, %122, %cst_113 [0] : vector<128x128xf32> to vector<128xf32>
    %124 = vector.shape_cast %123 : vector<128xf32> to vector<1x128xf32>
    %125 = arith.mulf %122, %122 : vector<128x128xf32>
    %cst_114 = arith.constant dense<0.000000e+00> : vector<128xf32>
    %126 = vector.multi_reduction <add>, %125, %cst_114 [0] : vector<128x128xf32> to vector<128xf32>
    %127 = vector.shape_cast %126 : vector<128xf32> to vector<1x128xf32>
    %128 = tpu.concatenate %124, %127 in 0 : vector<1x128xf32>, vector<1x128xf32> -> vector<2x128xf32>
    %c0_115 = arith.constant 0 : index
    %c0_116 = arith.constant 0 : index
    %129 = vector.load %arg12[%c0_115, %c0_116] : memref<128x4xf32, #tpu.memory_space<vmem>>, vector<128x4xf32>
    %cst_117 = arith.constant dense<0.000000e+00> : vector<2x4xf32>
    %130 = tpu.matmul %128, %129, %cst_117 {dimension_numbers = #tpu.dot_dimension_numbers<[1], [0], [0], [1], [0, 0, 1, 1], [], []>} : vector<2x128xf32>, vector<128x4xf32>, vector<2x4xf32> -> vector<2x4xf32>
    %cst_118 = arith.constant 2.44140625E-4 : f32
    %131 = vector.broadcast %cst_118 : f32 to vector<2x4xf32>
    %132 = arith.mulf %130, %131 : vector<2x4xf32>
    %133 = vector.extract_strided_slice %132 {offsets = [0, 0], sizes = [1, 4], strides = [1, 1]} : vector<2x4xf32> to vector<1x4xf32>
    %134 = vector.extract_strided_slice %132 {offsets = [1, 0], sizes = [1, 4], strides = [1, 1]} : vector<2x4xf32> to vector<1x4xf32>
    %135 = arith.mulf %133, %133 : vector<1x4xf32>
    %136 = arith.subf %134, %135 : vector<1x4xf32>
    %c0_119 = arith.constant 0 : index
    %c0_120 = arith.constant 0 : index
    %137 = vector.load %arg10[%c0_119, %c0_120] : memref<1x4xf32, #tpu.memory_space<vmem>>, vector<1x4xf32>
    %cst_121 = arith.constant 9.99999974E-6 : f32
    %138 = vector.broadcast %cst_121 : f32 to vector<1x4xf32>
    %139 = arith.addf %136, %138 : vector<1x4xf32>
    %140 = math.rsqrt %139 : vector<1x4xf32>
    %141 = arith.mulf %137, %140 : vector<1x4xf32>
    %c0_122 = arith.constant 0 : index
    %c0_123 = arith.constant 0 : index
    %142 = vector.load %arg11[%c0_122, %c0_123] : memref<1x4xf32, #tpu.memory_space<vmem>>, vector<1x4xf32>
    %143 = arith.mulf %133, %141 : vector<1x4xf32>
    %144 = arith.subf %142, %143 : vector<1x4xf32>
    %145 = tpu.concatenate %141, %144 in 0 : vector<1x4xf32>, vector<1x4xf32> -> vector<2x4xf32>
    %c0_124 = arith.constant 0 : index
    %c0_125 = arith.constant 0 : index
    %146 = vector.load %arg13[%c0_124, %c0_125] : memref<4x128xf32, #tpu.memory_space<vmem>>, vector<4x128xf32>
    %cst_126 = arith.constant dense<0.000000e+00> : vector<2x128xf32>
    %147 = tpu.matmul %145, %146, %cst_126 {dimension_numbers = #tpu.dot_dimension_numbers<[1], [0], [0], [1], [0, 0, 1, 1], [], []>} : vector<2x4xf32>, vector<4x128xf32>, vector<2x128xf32> -> vector<2x128xf32>
    %148 = vector.extract_strided_slice %147 {offsets = [0, 0], sizes = [1, 128], strides = [1, 1]} : vector<2x128xf32> to vector<1x128xf32>
    %149 = vector.broadcast %148 : vector<1x128xf32> to vector<128x128xf32>
    %150 = arith.mulf %122, %149 : vector<128x128xf32>
    %151 = vector.extract_strided_slice %147 {offsets = [1, 0], sizes = [1, 128], strides = [1, 1]} : vector<2x128xf32> to vector<1x128xf32>
    %152 = vector.broadcast %151 : vector<1x128xf32> to vector<128x128xf32>
    %153 = arith.addf %150, %152 : vector<128x128xf32>
    %cst_127 = arith.constant 0.000000e+00 : f32
    %154 = vector.broadcast %cst_127 : f32 to vector<128x128xf32>
    %155 = arith.maximumf %153, %154 : vector<128x128xf32>
    %c0_128 = arith.constant 0 : index
    %c0_129 = arith.constant 0 : index
    %156 = vector.load %arg14[%c0_128, %c0_129] : memref<128x128xf32, #tpu.memory_space<vmem>>, vector<128x128xf32>
    tpu.vector_store %arg14[%c0_128, %c0_129], %155 {strides = array<i32>} : memref<128x128xf32, #tpu.memory_space<vmem>>, vector<128x128xf32>,
    return
  }
}

</mosaic_0001>

<llo_original>
// kernel: up_forward.1
$region0: #{up_forward.1}
  #allocation0 [shape = 'u32[]', space=smem, size = 0x4, offset = 0x4, fixed_abs, tag = 'smem constant byte address 0x4 - core index']
  #allocation1 [shape = 'u32[144,128]{1,0:T(1,128)}', space=vmem, size = 0x12000, scoped, tag = 'internal scratch']
  #allocation2 [shape = 'bf16[8,32,256]{2,1,0:T(16,128)(2,1)}', space=vmem, size = 0x20000, scoped, tag = 'scratch operand']
  #allocation3 [shape = 'bf16[10,24,128]{2,1,0:T(8,128)(2,1)}', space=vmem, size = 0xf000, scoped, tag = 'scratch operand']
  %s0 = inlined_call_operand.vmem [shape: f32[32,64], index: 0, kind: input, shape index: {}]
  %s1 = inlined_call_operand.vmem [shape: f32[256,256], index: 1, kind: input, shape index: {}]
  %s2 = inlined_call_operand.vmem [shape: f32[64,256], index: 2, kind: input, shape index: {}]
  %s3 = inlined_call_operand.vmem [shape: f32[256,32], index: 3, kind: input, shape index: {}]
  %s4 = inlined_call_operand.vmem [shape: bf16[3,256,128], index: 4, kind: input, shape index: {}]
  %s5 = inlined_call_operand.vmem [shape: f32[1,4], index: 5, kind: input, shape index: {}]
  %s6 = inlined_call_operand.vmem [shape: f32[1,4], index: 6, kind: input, shape index: {}]
  %s7 = inlined_call_operand.vmem [shape: f32[128,4], index: 7, kind: input, shape index: {}, may-alias: {7,12}]
  %s8 = inlined_call_operand.vmem [shape: f32[4,128], index: 8, kind: input, shape index: {}, may-alias: {8,13}]
  %s9 = inlined_call_operand.vmem [shape: bf16[9,128,128], index: 9, kind: input, shape index: {}]
  %s10 = inlined_call_operand.vmem [shape: f32[1,4], index: 10, kind: input, shape index: {}]
  %s11 = inlined_call_operand.vmem [shape: f32[1,4], index: 11, kind: input, shape index: {}]
  %s12 = inlined_call_operand.vmem [shape: f32[128,4], index: 12, kind: input, shape index: {}, may-alias: {7,12}]
  %s13 = inlined_call_operand.vmem [shape: f32[4,128], index: 13, kind: input, shape index: {}, may-alias: {8,13}]
  %s14 = inlined_call_operand.vmem [shape: f32[128,128], index: 14, kind: output, shape index: {}]
  %s15 = sld [smem:[#allocation0]]
  $region66: #{up_forward.1} parent=0
    _
  %s17 = ssub.s32 1, %s15
  %s18 = scalar_select 0, %s17, %s15
  // Predicated region
  $region2: #{up_forward.1} parent=0 // pred_check
    _
  $region3: #{up_forward.1} parent=0 // pred_check_branch
    %20 = sbr.rel (0) target = $region5
  $region4: #{up_forward.1} parent=0 // pred_region
    _
  $region5: #{up_forward.1} parent=0 // pred_fallthru
    _
  // Predicated region
  $region6: #{up_forward.1} parent=0 // pred_check
    _
  $region7: #{up_forward.1} parent=0 // pred_check_branch
    %22 = sbr.rel (0) target = $region9
  $region8: #{up_forward.1} parent=0 // pred_region
    _
  $region9: #{up_forward.1} parent=0 // pred_fallthru
    _
  // Predicated region
  $region10: #{up_forward.1} parent=0 // pred_check
    _
  $region11: #{up_forward.1} parent=0 // pred_check_branch
    %24 = sbr.rel (0) target = $region13
  $region12: #{up_forward.1} parent=0 // pred_region
    _
  $region13: #{up_forward.1} parent=0 // pred_fallthru
    _
  // Predicated region
  $region14: #{up_forward.1} parent=0 // pred_check
    _
  $region15: #{up_forward.1} parent=0 // pred_check_branch
    %26 = sbr.rel (0) target = $region17
  $region16: #{up_forward.1} parent=0 // pred_region
    _
  $region17: #{up_forward.1} parent=0 // pred_fallthru
    _
  // Predicated region
  $region18: #{up_forward.1} parent=0 // pred_check
    _
  $region19: #{up_forward.1} parent=0 // pred_check_branch
    %28 = sbr.rel (0) target = $region21
  $region20: #{up_forward.1} parent=0 // pred_region
    _
  $region21: #{up_forward.1} parent=0 // pred_fallthru
    _
  // Predicated region
  $region22: #{up_forward.1} parent=0 // pred_check
    _
  $region23: #{up_forward.1} parent=0 // pred_check_branch
    %30 = sbr.rel (0) target = $region25
  $region24: #{up_forward.1} parent=0 // pred_region
    _
  $region25: #{up_forward.1} parent=0 // pred_fallthru
    _
  // Predicated region
  $region26: #{up_forward.1} parent=0 // pred_check
    _
  $region27: #{up_forward.1} parent=0 // pred_check_branch
    %32 = sbr.rel (0) target = $region29
  $region28: #{up_forward.1} parent=0 // pred_region
    _
  $region29: #{up_forward.1} parent=0 // pred_fallthru
    _
  // Predicated region
  $region30: #{up_forward.1} parent=0 // pred_check
    _
  $region31: #{up_forward.1} parent=0 // pred_check_branch
    %34 = sbr.rel (0) target = $region33
  $region32: #{up_forward.1} parent=0 // pred_region
    _
  $region33: #{up_forward.1} parent=0 // pred_fallthru
    _
  // Predicated region
  $region34: #{up_forward.1} parent=0 // pred_check
    _
  $region35: #{up_forward.1} parent=0 // pred_check_branch
    %36 = sbr.rel (0) target = $region37
  $region36: #{up_forward.1} parent=0 // pred_region
    _
  $region37: #{up_forward.1} parent=0 // pred_fallthru
    _
  // Predicated region
  $region38: #{up_forward.1} parent=0 // pred_check
    _
  $region39: #{up_forward.1} parent=0 // pred_check_branch
    %38 = sbr.rel (0) target = $region41
  $region40: #{up_forward.1} parent=0 // pred_region
    _
  $region41: #{up_forward.1} parent=0 // pred_fallthru
    _
  // Predicated region
  $region42: #{up_forward.1} parent=0 // pred_check
    _
  $region43: #{up_forward.1} parent=0 // pred_check_branch
    %40 = sbr.rel (0) target = $region45
  $region44: #{up_forward.1} parent=0 // pred_region
    _
  $region45: #{up_forward.1} parent=0 // pred_fallthru
    _
  // Predicated region
  $region46: #{up_forward.1} parent=0 // pred_check
    _
  $region47: #{up_forward.1} parent=0 // pred_check_branch
    %42 = sbr.rel (0) target = $region49
  $region48: #{up_forward.1} parent=0 // pred_region
    _
  $region49: #{up_forward.1} parent=0 // pred_fallthru
    _
  // Predicated region
  $region50: #{up_forward.1} parent=0 // pred_check
    _
  $region51: #{up_forward.1} parent=0 // pred_check_branch
    %44 = sbr.rel (0) target = $region53
  $region52: #{up_forward.1} parent=0 // pred_region
    _
  $region53: #{up_forward.1} parent=0 // pred_fallthru
    _
  // Predicated region
  $region54: #{up_forward.1} parent=0 // pred_check
    _
  $region55: #{up_forward.1} parent=0 // pred_check_branch
    %46 = sbr.rel (0) target = $region57
  $region56: #{up_forward.1} parent=0 // pred_region
    _
  $region57: #{up_forward.1} parent=0 // pred_fallthru
    _
  %v48 = vld [vmem:[%s0] sm:$0xff]
  %v49 = vld [vmem:[%s0 + $0x8] sm:$0xff]
  %v50 = vld [vmem:[%s0 + $0x10] sm:$0xff]
  %v51 = vld [vmem:[%s0 + $0x18] sm:$0xff]
  %v52 = vld [vmem:[%s2] sm:$0xff]
  %v53 = vld [vmem:[%s2 + $0x8] sm:$0xff]
  %v54 = vld [vmem:[%s2 + $0x10] sm:$0xff]
  %v55 = vld [vmem:[%s2 + $0x18] sm:$0xff]
  %v56 = vld [vmem:[%s2 + $0x20] sm:$0xff]
  %v57 = vld [vmem:[%s2 + $0x28] sm:$0xff]
  %v58 = vld [vmem:[%s2 + $0x30] sm:$0xff]
  %v59 = vld [vmem:[%s2 + $0x38] sm:$0xff]
  %v60 = vld [vmem:[%s2 + $0x40] sm:$0xff]
  %v61 = vld [vmem:[%s2 + $0x48] sm:$0xff]
  %v62 = vld [vmem:[%s2 + $0x50] sm:$0xff]
  %v63 = vld [vmem:[%s2 + $0x58] sm:$0xff]
  %v64 = vld [vmem:[%s2 + $0x60] sm:$0xff]
  %v65 = vld [vmem:[%s2 + $0x68] sm:$0xff]
  %v66 = vld [vmem:[%s2 + $0x70] sm:$0xff]
  %v67 = vld [vmem:[%s2 + $0x78] sm:$0xff]
  %vm68 = vcmask 523264
  %v70 = vsel %vm68, %v48, 0
  %v73 = vsel %vm68, %v49, 0
  %v76 = vsel %vm68, %v50, 0
  %v79 = vsel %vm68, %v51, 0
  %81 = vmatprep.subr.mxu0 %v53
  %82 = vmatpush1.msra.mxu0 %v52
  %83 = vmatprep.subr.mxu0 %v55
  %84 = vmatpush1.msra.mxu0 %v54
  %85 = vmatprep.subr.mxu0 %v57
  %86 = vmatpush1.msra.mxu0 %v56
  %87 = vmatprep.subr.mxu0 %v59
  %88 = vmatpush1.msra.mxu0 %v58
  %89 = vmatprep.subr.mxu0 %v61
  %90 = vmatpush1.msra.mxu0 %v60
  %91 = vmatprep.subr.mxu0 %v63
  %92 = vmatpush1.msra.mxu0 %v62
  %93 = vmatprep.subr.mxu0 %v65
  %94 = vmatpush1.msra.mxu0 %v64
  %95 = vmatprep.subr.mxu0 %v67
  %96 = vmatpush1.msra.mxu0 %v66
  %97 = vmatprep.subr.mxu0 0.0
  %98 = vmatpush1.msra.mxu0 0.0
  %99 = vmatprep.subr.mxu0 0.0
  %100 = vmatpush1.msra.mxu0 0.0
  %101 = vmatprep.subr.mxu0 0.0
  %102 = vmatpush1.msra.mxu0 0.0
  %103 = vmatprep.subr.mxu0 0.0
  %104 = vmatpush1.msra.mxu0 0.0
  %105 = vmatprep.subr.mxu0 0.0
  %106 = vmatpush1.msra.mxu0 0.0
  %107 = vmatprep.subr.mxu0 0.0
  %108 = vmatpush1.msra.mxu0 0.0
  %109 = vmatprep.subr.mxu0 0.0
  %110 = vmatpush1.msra.mxu0 0.0
  %111 = vmatprep.subr.mxu0 0.0
  %112 = vmatpush1.msra.mxu0 0.0
  %113 = vmatprep.subr.mxu0 0.0
  %114 = vmatpush1.msra.mxu0 0.0
  %115 = vmatprep.subr.mxu0 0.0
  %116 = vmatpush1.msra.mxu0 0.0
  %117 = vmatprep.subr.mxu0 0.0
  %118 = vmatpush1.msra.mxu0 0.0
  %119 = vmatprep.subr.mxu0 0.0
  %120 = vmatpush1.msra.mxu0 0.0
  %121 = vmatprep.subr.mxu0 0.0
  %122 = vmatpush1.msra.mxu0 0.0
  %123 = vmatprep.subr.mxu0 0.0
  %124 = vmatpush1.msra.mxu0 0.0
  %125 = vmatprep.subr.mxu0 0.0
  %126 = vmatpush1.msra.mxu0 0.0
  %127 = vmatprep.subr.mxu0 0.0
  %128 = vmatpush1.msra.mxu0 0.0
  %129 = vmatprep.subr.mxu0 0.0
  %130 = vmatpush1.msra.mxu0 0.0
  %131 = vmatprep.subr.mxu0 0.0
  %132 = vmatpush1.msra.mxu0 0.0
  %133 = vmatprep.subr.mxu0 0.0
  %134 = vmatpush1.msra.mxu0 0.0
  %135 = vmatprep.subr.mxu0 0.0
  %136 = vmatpush1.msra.mxu0 0.0
  %137 = vmatprep.subr.mxu0 0.0
  %138 = vmatpush1.msra.mxu0 0.0
  %139 = vmatprep.subr.mxu0 0.0
  %140 = vmatpush1.msra.mxu0 0.0
  %141 = vmatprep.subr.mxu0 0.0
  %142 = vmatpush1.msra.mxu0 0.0
  %143 = vmatprep.subr.mxu0 0.0
  %144 = vmatpush1.msra.mxu0 0.0
  %145 = vmatprep.mubr.f32.mxu0 0.0
  %146 = vmatmul.mubr.f32.gmra.mrb[0].mxu0 %v70
  %v147 = vpop.f32.mrb[0].mxu0
  %v148 = vadd.f32 0.0, %v147
  %v149 = vpop.f32.mrb[0].mxu0
  %v150 = vadd.f32 0.0, %v149
  %151 = vmatprep.mubr.f32.mxu0 0.0
  %152 = vmatmul.mubr.f32.gmra.mrb[0].mxu0 %v73
  %v153 = vpop.f32.mrb[0].mxu0
  %v154 = vadd.f32 0.0, %v153
  %v155 = vpop.f32.mrb[0].mxu0
  %v156 = vadd.f32 0.0, %v155
  %157 = vmatprep.mubr.f32.mxu0 0.0
  %158 = vmatmul.mubr.f32.gmra.mrb[0].mxu0 %v76
  %v159 = vpop.f32.mrb[0].mxu0
  %v160 = vadd.f32 0.0, %v159
  %v161 = vpop.f32.mrb[0].mxu0
  %v162 = vadd.f32 0.0, %v161
  %163 = vmatprep.mubr.f32.mxu0 0.0
  %164 = vmatmul.mubr.f32.gmra.mrb[0].mxu0 %v79
  %v165 = vpop.f32.mrb[0].mxu0
  %v166 = vadd.f32 0.0, %v165
  %v167 = vpop.f32.mrb[0].mxu0
  %v168 = vadd.f32 0.0, %v167
  %169 = vdwg.mxu0
  %v170 = vld [vmem:[%s3] sm:$0xff]
  %v171 = vld [vmem:[%s3 + $0x8] sm:$0xff]
  %v172 = vld [vmem:[%s3 + $0x10] sm:$0xff]
  %v173 = vld [vmem:[%s3 + $0x18] sm:$0xff]
  %v174 = vld [vmem:[%s3 + $0x20] sm:$0xff]
  %v175 = vld [vmem:[%s3 + $0x28] sm:$0xff]
  %v176 = vld [vmem:[%s3 + $0x30] sm:$0xff]
  %v177 = vld [vmem:[%s3 + $0x38] sm:$0xff]
  %v178 = vld [vmem:[%s3 + $0x40] sm:$0xff]
  %v179 = vld [vmem:[%s3 + $0x48] sm:$0xff]
  %v180 = vld [vmem:[%s3 + $0x50] sm:$0xff]
  %v181 = vld [vmem:[%s3 + $0x58] sm:$0xff]
  %v182 = vld [vmem:[%s3 + $0x60] sm:$0xff]
  %v183 = vld [vmem:[%s3 + $0x68] sm:$0xff]
  %v184 = vld [vmem:[%s3 + $0x70] sm:$0xff]
  %v185 = vld [vmem:[%s3 + $0x78] sm:$0xff]
  %v186 = vld [vmem:[%s3 + $0x80] sm:$0xff]
  %v187 = vld [vmem:[%s3 + $0x88] sm:$0xff]
  %v188 = vld [vmem:[%s3 + $0x90] sm:$0xff]
  %v189 = vld [vmem:[%s3 + $0x98] sm:$0xff]
  %v190 = vld [vmem:[%s3 + $0xa0] sm:$0xff]
  %v191 = vld [vmem:[%s3 + $0xa8] sm:$0xff]
  %v192 = vld [vmem:[%s3 + $0xb0] sm:$0xff]
  %v193 = vld [vmem:[%s3 + $0xb8] sm:$0xff]
  %v194 = vld [vmem:[%s3 + $0xc0] sm:$0xff]
  %v195 = vld [vmem:[%s3 + $0xc8] sm:$0xff]
  %v196 = vld [vmem:[%s3 + $0xd0] sm:$0xff]
  %v197 = vld [vmem:[%s3 + $0xd8] sm:$0xff]
  %v198 = vld [vmem:[%s3 + $0xe0] sm:$0xff]
  %v199 = vld [vmem:[%s3 + $0xe8] sm:$0xff]
  %v200 = vld [vmem:[%s3 + $0xf0] sm:$0xff]
  %v201 = vld [vmem:[%s3 + $0xf8] sm:$0xff]
  %v202 = vld [vmem:[%s1] sm:$0xff]
  %v203 = vld [vmem:[%s1 + $0x8] sm:$0xff]
  %v204 = vld [vmem:[%s1 + $0x10] sm:$0xff]
  %v205 = vld [vmem:[%s1 + $0x18] sm:$0xff]
  %v206 = vld [vmem:[%s1 + $0x20] sm:$0xff]
  %v207 = vld [vmem:[%s1 + $0x28] sm:$0xff]
  %v208 = vld [vmem:[%s1 + $0x30] sm:$0xff]
  %v209 = vld [vmem:[%s1 + $0x38] sm:$0xff]
  %v210 = vld [vmem:[%s1 + $0x40] sm:$0xff]
  %v211 = vld [vmem:[%s1 + $0x48] sm:$0xff]
  %v212 = vld [vmem:[%s1 + $0x50] sm:$0xff]
  %v213 = vld [vmem:[%s1 + $0x58] sm:$0xff]
  %v214 = vld [vmem:[%s1 + $0x60] sm:$0xff]
  %v215 = vld [vmem:[%s1 + $0x68] sm:$0xff]
  %v216 = vld [vmem:[%s1 + $0x70] sm:$0xff]
  %v217 = vld [vmem:[%s1 + $0x78] sm:$0xff]
  %v218 = vld [vmem:[%s1 + $0x80] sm:$0xff]
  %v219 = vld [vmem:[%s1 + $0x88] sm:$0xff]
  %v220 = vld [vmem:[%s1 + $0x90] sm:$0xff]
  %v221 = vld [vmem:[%s1 + $0x98] sm:$0xff]
  %v222 = vld [vmem:[%s1 + $0xa0] sm:$0xff]
  %v223 = vld [vmem:[%s1 + $0xa8] sm:$0xff]
  %v224 = vld [vmem:[%s1 + $0xb0] sm:$0xff]
  %v225 = vld [vmem:[%s1 + $0xb8] sm:$0xff]
  %v226 = vld [vmem:[%s1 + $0xc0] sm:$0xff]
  %v227 = vld [vmem:[%s1 + $0xc8] sm:$0xff]
  %v228 = vld [vmem:[%s1 + $0xd0] sm:$0xff]
  %v229 = vld [vmem:[%s1 + $0xd8] sm:$0xff]
  %v230 = vld [vmem:[%s1 + $0xe0] sm:$0xff]
  %v231 = vld [vmem:[%s1 + $0xe8] sm:$0xff]
  %v232 = vld [vmem:[%s1 + $0xf0] sm:$0xff]
  %v233 = vld [vmem:[%s1 + $0xf8] sm:$0xff]
  %v234 = vld [vmem:[%s1 + $0x100] sm:$0xff]
  %v235 = vld [vmem:[%s1 + $0x108] sm:$0xff]
  %v236 = vld [vmem:[%s1 + $0x110] sm:$0xff]
  %v237 = vld [vmem:[%s1 + $0x118] sm:$0xff]
  %v238 = vld [vmem:[%s1 + $0x120] sm:$0xff]
  %v239 = vld [vmem:[%s1 + $0x128] sm:$0xff]
  %v240 = vld [vmem:[%s1 + $0x130] sm:$0xff]
  %v241 = vld [vmem:[%s1 + $0x138] sm:$0xff]
  %v242 = vld [vmem:[%s1 + $0x140] sm:$0xff]
  %v243 = vld [vmem:[%s1 + $0x148] sm:$0xff]
  %v244 = vld [vmem:[%s1 + $0x150] sm:$0xff]
  %v245 = vld [vmem:[%s1 + $0x158] sm:$0xff]
  %v246 = vld [vmem:[%s1 + $0x160] sm:$0xff]
  %v247 = vld [vmem:[%s1 + $0x168] sm:$0xff]
  %v248 = vld [vmem:[%s1 + $0x170] sm:$0xff]
  %v249 = vld [vmem:[%s1 + $0x178] sm:$0xff]
  %v250 = vld [vmem:[%s1 + $0x180] sm:$0xff]
  %v251 = vld [vmem:[%s1 + $0x188] sm:$0xff]
  %v252 = vld [vmem:[%s1 + $0x190] sm:$0xff]
  %v253 = vld [vmem:[%s1 + $0x198] sm:$0xff]
  %v254 = vld [vmem:[%s1 + $0x1a0] sm:$0xff]
  %v255 = vld [vmem:[%s1 + $0x1a8] sm:$0xff]
  %v256 = vld [vmem:[%s1 + $0x1b0] sm:$0xff]
  %v257 = vld [vmem:[%s1 + $0x1b8] sm:$0xff]
  %v258 = vld [vmem:[%s1 + $0x1c0] sm:$0xff]
  %v259 = vld [vmem:[%s1 + $0x1c8] sm:$0xff]
  %v260 = vld [vmem:[%s1 + $0x1d0] sm:$0xff]
  %v261 = vld [vmem:[%s1 + $0x1d8] sm:$0xff]
  %v262 = vld [vmem:[%s1 + $0x1e0] sm:$0xff]
  %v263 = vld [vmem:[%s1 + $0x1e8] sm:$0xff]
  %v264 = vld [vmem:[%s1 + $0x1f0] sm:$0xff]
  %v265 = vld [vmem:[%s1 + $0x1f8] sm:$0xff]
  %vm266 = vcmask 261120
  %v268 = vsel %vm266, %v170, 0
  %v271 = vsel %vm266, %v171, 0
  %v274 = vsel %vm266, %v172, 0
  %v277 = vsel %vm266, %v173, 0
  %v280 = vsel %vm266, %v174, 0
  %v283 = vsel %vm266, %v175, 0
  %v286 = vsel %vm266, %v176, 0
  %v289 = vsel %vm266, %v177, 0
  %v292 = vsel %vm266, %v178, 0
  %v295 = vsel %vm266, %v179, 0
  %v298 = vsel %vm266, %v180, 0
  %v301 = vsel %vm266, %v181, 0
  %v304 = vsel %vm266, %v182, 0
  %v307 = vsel %vm266, %v183, 0
  %v310 = vsel %vm266, %v184, 0
  %v313 = vsel %vm266, %v185, 0
  %v316 = vsel %vm266, %v186, 0
  %v319 = vsel %vm266, %v187, 0
  %v322 = vsel %vm266, %v188, 0
  %v325 = vsel %vm266, %v189, 0
  %v328 = vsel %vm266, %v190, 0
  %v331 = vsel %vm266, %v191, 0
  %v334 = vsel %vm266, %v192, 0
  %v337 = vsel %vm266, %v193, 0
  %v340 = vsel %vm266, %v194, 0
  %v343 = vsel %vm266, %v195, 0
  %v346 = vsel %vm266, %v196, 0
  %v349 = vsel %vm266, %v197, 0
  %v352 = vsel %vm266, %v198, 0
  %v355 = vsel %vm266, %v199, 0
  %v358 = vsel %vm266, %v200, 0
  %v361 = vsel %vm266, %v201, 0
  %363 = vmatprep.subr.mxu0 %v150
  %364 = vmatpush1.msra.mxu0 %v148
  %365 = vmatprep.subr.mxu0 %v156
  %366 = vmatpush1.msra.mxu0 %v154
  %367 = vmatprep.subr.mxu0 %v162
  %368 = vmatpush1.msra.mxu0 %v160
  %369 = vmatprep.subr.mxu0 %v168
  %370 = vmatpush1.msra.mxu0 %v166
  %371 = vmatprep.subr.mxu0 0.0
  %372 = vmatpush1.msra.mxu0 0.0
  %373 = vmatprep.subr.mxu0 0.0
  %374 = vmatpush1.msra.mxu0 0.0
  %375 = vmatprep.subr.mxu0 0.0
  %376 = vmatpush1.msra.mxu0 0.0
  %377 = vmatprep.subr.mxu0 0.0
  %378 = vmatpush1.msra.mxu0 0.0
  %379 = vmatprep.subr.mxu0 0.0
  %380 = vmatpush1.msra.mxu0 0.0
  %381 = vmatprep.subr.mxu0 0.0
  %382 = vmatpush1.msra.mxu0 0.0
  %383 = vmatprep.subr.mxu0 0.0
  %384 = vmatpush1.msra.mxu0 0.0
  %385 = vmatprep.subr.mxu0 0.0
  %386 = vmatpush1.msra.mxu0 0.0
  %387 = vmatprep.subr.mxu0 0.0
  %388 = vmatpush1.msra.mxu0 0.0
  %389 = vmatprep.subr.mxu0 0.0
  %390 = vmatpush1.msra.mxu0 0.0
  %391 = vmatprep.subr.mxu0 0.0
  %392 = vmatpush1.msra.mxu0 0.0
  %393 = vmatprep.subr.mxu0 0.0
  %394 = vmatpush1.msra.mxu0 0.0
  %395 = vmatprep.subr.mxu0 0.0
  %396 = vmatpush1.msra.mxu0 0.0
  %397 = vmatprep.subr.mxu0 0.0
  %398 = vmatpush1.msra.mxu0 0.0
  %399 = vmatprep.subr.mxu0 0.0
  %400 = vmatpush1.msra.mxu0 0.0
  %401 = vmatprep.subr.mxu0 0.0
  %402 = vmatpush1.msra.mxu0 0.0
  %403 = vmatprep.subr.mxu0 0.0
  %404 = vmatpush1.msra.mxu0 0.0
  %405 = vmatprep.subr.mxu0 0.0
  %406 = vmatpush1.msra.mxu0 0.0
  %407 = vmatprep.subr.mxu0 0.0
  %408 = vmatpush1.msra.mxu0 0.0
  %409 = vmatprep.subr.mxu0 0.0
  %410 = vmatpush1.msra.mxu0 0.0
  %411 = vmatprep.subr.mxu0 0.0
  %412 = vmatpush1.msra.mxu0 0.0
  %413 = vmatprep.subr.mxu0 0.0
  %414 = vmatpush1.msra.mxu0 0.0
  %415 = vmatprep.subr.mxu0 0.0
  %416 = vmatpush1.msra.mxu0 0.0
  %417 = vmatprep.subr.mxu0 0.0
  %418 = vmatpush1.msra.mxu0 0.0
  %419 = vmatprep.subr.mxu0 0.0
  %420 = vmatpush1.msra.mxu0 0.0
  %421 = vmatprep.subr.mxu0 0.0
  %422 = vmatpush1.msra.mxu0 0.0
  %423 = vmatprep.subr.mxu0 0.0
  %424 = vmatpush1.msra.mxu0 0.0
  %425 = vmatprep.subr.mxu0 0.0
  %426 = vmatpush1.msra.mxu0 0.0
  %427 = vmatprep.mubr.f32.mxu0 0.0
  %428 = vmatmul.mubr.f32.gmra.mrb[0].mxu0 %v268
  %v429 = vpop.f32.mrb[0].mxu0
  %v430 = vadd.f32 %v202, %v429
  %v431 = vpop.f32.mrb[0].mxu0
  %v432 = vadd.f32 %v203, %v431
  %433 = vmatprep.mubr.f32.mxu0 0.0
  %434 = vmatmul.mubr.f32.gmra.mrb[0].mxu0 %v271
  %v435 = vpop.f32.mrb[0].mxu0
  %v436 = vadd.f32 %v204, %v435
  %v437 = vpop.f32.mrb[0].mxu0
  %v438 = vadd.f32 %v205, %v437
  %439 = vmatprep.mubr.f32.mxu0 0.0
  %440 = vmatmul.mubr.f32.gmra.mrb[0].mxu0 %v274
  %v441 = vpop.f32.mrb[0].mxu0
  %v442 = vadd.f32 %v206, %v441
  %v443 = vpop.f32.mrb[0].mxu0
  %v444 = vadd.f32 %v207, %v443
  %445 = vmatprep.mubr.f32.mxu0 0.0
  %446 = vmatmul.mubr.f32.gmra.mrb[0].mxu0 %v277
  %v447 = vpop.f32.mrb[0].mxu0
  %v448 = vadd.f32 %v208, %v447
  %v449 = vpop.f32.mrb[0].mxu0
  %v450 = vadd.f32 %v209, %v449
  %451 = vmatprep.mubr.f32.mxu0 0.0
  %452 = vmatmul.mubr.f32.gmra.mrb[0].mxu0 %v280
  %v453 = vpop.f32.mrb[0].mxu0
  %v454 = vadd.f32 %v210, %v453
  %v455 = vpop.f32.mrb[0].mxu0
  %v456 = vadd.f32 %v211, %v455
  %457 = vmatprep.mubr.f32.mxu0 0.0
  %458 = vmatmul.mubr.f32.gmra.mrb[0].mxu0 %v283
  %v459 = vpop.f32.mrb[0].mxu0
  %v460 = vadd.f32 %v212, %v459
  %v461 = vpop.f32.mrb[0].mxu0
  %v462 = vadd.f32 %v213, %v461
  %463 = vmatprep.mubr.f32.mxu0 0.0
  %464 = vmatmul.mubr.f32.gmra.mrb[0].mxu0 %v286
  %v465 = vpop.f32.mrb[0].mxu0
  %v466 = vadd.f32 %v214, %v465
  %v467 = vpop.f32.mrb[0].mxu0
  %v468 = vadd.f32 %v215, %v467
  %469 = vmatprep.mubr.f32.mxu0 0.0
  %470 = vmatmul.mubr.f32.gmra.mrb[0].mxu0 %v289
  %v471 = vpop.f32.mrb[0].mxu0
  %v472 = vadd.f32 %v216, %v471
  %v473 = vpop.f32.mrb[0].mxu0
  %v474 = vadd.f32 %v217, %v473
  %475 = vmatprep.mubr.f32.mxu0 0.0
  %476 = vmatmul.mubr.f32.gmra.mrb[0].mxu0 %v292
  %v477 = vpop.f32.mrb[0].mxu0
  %v478 = vadd.f32 %v218, %v477
  %v479 = vpop.f32.mrb[0].mxu0
  %v480 = vadd.f32 %v219, %v479
  %481 = vmatprep.mubr.f32.mxu0 0.0
  %482 = vmatmul.mubr.f32.gmra.mrb[0].mxu0 %v295
  %v483 = vpop.f32.mrb[0].mxu0
  %v484 = vadd.f32 %v220, %v483
  %v485 = vpop.f32.mrb[0].mxu0
  %v486 = vadd.f32 %v221, %v485
  %487 = vmatprep.mubr.f32.mxu0 0.0
  %488 = vmatmul.mubr.f32.gmra.mrb[0].mxu0 %v298
  %v489 = vpop.f32.mrb[0].mxu0
  %v490 = vadd.f32 %v222, %v489
  %v491 = vpop.f32.mrb[0].mxu0
  %v492 = vadd.f32 %v223, %v491
  %493 = vmatprep.mubr.f32.mxu0 0.0
  %494 = vmatmul.mubr.f32.gmra.mrb[0].mxu0 %v301
  %v495 = vpop.f32.mrb[0].mxu0
  %v496 = vadd.f32 %v224, %v495
  %v497 = vpop.f32.mrb[0].mxu0
  %v498 = vadd.f32 %v225, %v497
  %499 = vmatprep.mubr.f32.mxu0 0.0
  %500 = vmatmul.mubr.f32.gmra.mrb[0].mxu0 %v304
  %v501 = vpop.f32.mrb[0].mxu0
  %v502 = vadd.f32 %v226, %v501
  %v503 = vpop.f32.mrb[0].mxu0
  %v504 = vadd.f32 %v227, %v503
  %505 = vmatprep.mubr.f32.mxu0 0.0
  %506 = vmatmul.mubr.f32.gmra.mrb[0].mxu0 %v307
  %v507 = vpop.f32.mrb[0].mxu0
  %v508 = vadd.f32 %v228, %v507
  %v509 = vpop.f32.mrb[0].mxu0
  %v510 = vadd.f32 %v229, %v509
  %511 = vmatprep.mubr.f32.mxu0 0.0
  %512 = vmatmul.mubr.f32.gmra.mrb[0].mxu0 %v310
  %v513 = vpop.f32.mrb[0].mxu0
  %v514 = vadd.f32 %v230, %v513
  %v515 = vpop.f32.mrb[0].mxu0
  %v516 = vadd.f32 %v231, %v515
  %517 = vmatprep.mubr.f32.mxu0 0.0
  %518 = vmatmul.mubr.f32.gmra.mrb[0].mxu0 %v313
  %v519 = vpop.f32.mrb[0].mxu0
  %v520 = vadd.f32 %v232, %v519
  %v521 = vpop.f32.mrb[0].mxu0
  %v522 = vadd.f32 %v233, %v521
  %523 = vmatprep.mubr.f32.mxu0 0.0
  %524 = vmatmul.mubr.f32.gmra.mrb[0].mxu0 %v316
  %v525 = vpop.f32.mrb[0].mxu0
  %v526 = vadd.f32 %v234, %v525
  %v527 = vpop.f32.mrb[0].mxu0
  %v528 = vadd.f32 %v235, %v527
  %529 = vmatprep.mubr.f32.mxu0 0.0
  %530 = vmatmul.mubr.f32.gmra.mrb[0].mxu0 %v319
  %v531 = vpop.f32.mrb[0].mxu0
  %v532 = vadd.f32 %v236, %v531
  %v533 = vpop.f32.mrb[0].mxu0
  %v534 = vadd.f32 %v237, %v533
  %535 = vmatprep.mubr.f32.mxu0 0.0
  %536 = vmatmul.mubr.f32.gmra.mrb[0].mxu0 %v322
  %v537 = vpop.f32.mrb[0].mxu0
  %v538 = vadd.f32 %v238, %v537
  %v539 = vpop.f32.mrb[0].mxu0
  %v540 = vadd.f32 %v239, %v539
  %541 = vmatprep.mubr.f32.mxu0 0.0
  %542 = vmatmul.mubr.f32.gmra.mrb[0].mxu0 %v325
  %v543 = vpop.f32.mrb[0].mxu0
  %v544 = vadd.f32 %v240, %v543
  %v545 = vpop.f32.mrb[0].mxu0
  %v546 = vadd.f32 %v241, %v545
  %547 = vmatprep.mubr.f32.mxu0 0.0
  %548 = vmatmul.mubr.f32.gmra.mrb[0].mxu0 %v328
  %v549 = vpop.f32.mrb[0].mxu0
  %v550 = vadd.f32 %v242, %v549
  %v551 = vpop.f32.mrb[0].mxu0
  %v552 = vadd.f32 %v243, %v551
  %553 = vmatprep.mubr.f32.mxu0 0.0
  %554 = vmatmul.mubr.f32.gmra.mrb[0].mxu0 %v331
  %v555 = vpop.f32.mrb[0].mxu0
  %v556 = vadd.f32 %v244, %v555
  %v557 = vpop.f32.mrb[0].mxu0
  %v558 = vadd.f32 %v245, %v557
  %559 = vmatprep.mubr.f32.mxu0 0.0
  %560 = vmatmul.mubr.f32.gmra.mrb[0].mxu0 %v334
  %v561 = vpop.f32.mrb[0].mxu0
  %v562 = vadd.f32 %v246, %v561
  %v563 = vpop.f32.mrb[0].mxu0
  %v564 = vadd.f32 %v247, %v563
  %565 = vmatprep.mubr.f32.mxu0 0.0
  %566 = vmatmul.mubr.f32.gmra.mrb[0].mxu0 %v337
  %v567 = vpop.f32.mrb[0].mxu0
  %v568 = vadd.f32 %v248, %v567
  %v569 = vpop.f32.mrb[0].mxu0
  %v570 = vadd.f32 %v249, %v569
  %571 = vmatprep.mubr.f32.mxu0 0.0
  %572 = vmatmul.mubr.f32.gmra.mrb[0].mxu0 %v340
  %v573 = vpop.f32.mrb[0].mxu0
  %v574 = vadd.f32 %v250, %v573
  %v575 = vpop.f32.mrb[0].mxu0
  %v576 = vadd.f32 %v251, %v575
  %577 = vmatprep.mubr.f32.mxu0 0.0
  %578 = vmatmul.mubr.f32.gmra.mrb[0].mxu0 %v343
  %v579 = vpop.f32.mrb[0].mxu0
  %v580 = vadd.f32 %v252, %v579
  %v581 = vpop.f32.mrb[0].mxu0
  %v582 = vadd.f32 %v253, %v581
  %583 = vmatprep.mubr.f32.mxu0 0.0
  %584 = vmatmul.mubr.f32.gmra.mrb[0].mxu0 %v346
  %v585 = vpop.f32.mrb[0].mxu0
  %v586 = vadd.f32 %v254, %v585
  %v587 = vpop.f32.mrb[0].mxu0
  %v588 = vadd.f32 %v255, %v587
  %589 = vmatprep.mubr.f32.mxu0 0.0
  %590 = vmatmul.mubr.f32.gmra.mrb[0].mxu0 %v349
  %v591 = vpop.f32.mrb[0].mxu0
  %v592 = vadd.f32 %v256, %v591
  %v593 = vpop.f32.mrb[0].mxu0
  %v594 = vadd.f32 %v257, %v593
  %595 = vmatprep.mubr.f32.mxu0 0.0
  %596 = vmatmul.mubr.f32.gmra.mrb[0].mxu0 %v352
  %v597 = vpop.f32.mrb[0].mxu0
  %v598 = vadd.f32 %v258, %v597
  %v599 = vpop.f32.mrb[0].mxu0
  %v600 = vadd.f32 %v259, %v599
  %601 = vmatprep.mubr.f32.mxu0 0.0
  %602 = vmatmul.mubr.f32.gmra.mrb[0].mxu0 %v355
  %v603 = vpop.f32.mrb[0].mxu0
  %v604 = vadd.f32 %v260, %v603
  %v605 = vpop.f32.mrb[0].mxu0
  %v606 = vadd.f32 %v261, %v605
  %607 = vmatprep.mubr.f32.mxu0 0.0
  %608 = vmatmul.mubr.f32.gmra.mrb[0].mxu0 %v358
  %v609 = vpop.f32.mrb[0].mxu0
  %v610 = vadd.f32 %v262, %v609
  %v611 = vpop.f32.mrb[0].mxu0
  %v612 = vadd.f32 %v263, %v611
  %613 = vmatprep.mubr.f32.mxu0 0.0
  %614 = vmatmul.mubr.f32.gmra.mrb[0].mxu0 %v361
  %v615 = vpop.f32.mrb[0].mxu0
  %v616 = vadd.f32 %v264, %v615
  %v617 = vpop.f32.mrb[0].mxu0
  %v618 = vadd.f32 %v265, %v617
  %619 = vdwg.mxu0
  %v620 = vpack.c.bf16 %v436, %v430
  %v621 = vpack.c.bf16 %v438, %v432
  %v622 = vpack.c.bf16 %v448, %v442
  %v623 = vpack.c.bf16 %v450, %v444
  %v624 = vpack.c.bf16 %v460, %v454
  %v625 = vpack.c.bf16 %v462, %v456
  %v626 = vpack.c.bf16 %v472, %v466
  %v627 = vpack.c.bf16 %v474, %v468
  %v628 = vpack.c.bf16 %v484, %v478
  %v629 = vpack.c.bf16 %v486, %v480
  %v630 = vpack.c.bf16 %v496, %v490
  %v631 = vpack.c.bf16 %v498, %v492
  %v632 = vpack.c.bf16 %v508, %v502
  %v633 = vpack.c.bf16 %v510, %v504
  %v634 = vpack.c.bf16 %v520, %v514
  %v635 = vpack.c.bf16 %v522, %v516
  %v636 = vpack.c.bf16 %v532, %v526
  %v637 = vpack.c.bf16 %v534, %v528
  %v638 = vpack.c.bf16 %v544, %v538
  %v639 = vpack.c.bf16 %v546, %v540
  %v640 = vpack.c.bf16 %v556, %v550
  %v641 = vpack.c.bf16 %v558, %v552
  %v642 = vpack.c.bf16 %v568, %v562
  %v643 = vpack.c.bf16 %v570, %v564
  %v644 = vpack.c.bf16 %v580, %v574
  %v645 = vpack.c.bf16 %v582, %v576
  %v646 = vpack.c.bf16 %v592, %v586
  %v647 = vpack.c.bf16 %v594, %v588
  %v648 = vpack.c.bf16 %v604, %v598
  %v649 = vpack.c.bf16 %v606, %v600
  %v650 = vpack.c.bf16 %v616, %v610
  %v651 = vpack.c.bf16 %v618, %v612
  %652 = vst [vmem:[#allocation2] sm:$0xff] %v620
  %653 = vst [vmem:[#allocation2 + $0x8] sm:$0xff] %v621
  %654 = vst [vmem:[#allocation2 + $0x10] sm:$0xff] %v622
  %655 = vst [vmem:[#allocation2 + $0x18] sm:$0xff] %v623
  %656 = vst [vmem:[#allocation2 + $0x20] sm:$0xff] %v624
  %657 = vst [vmem:[#allocation2 + $0x28] sm:$0xff] %v625
  %658 = vst [vmem:[#allocation2 + $0x30] sm:$0xff] %v626
  %659 = vst [vmem:[#allocation2 + $0x38] sm:$0xff] %v627
  %660 = vst [vmem:[#allocation2 + $0x40] sm:$0xff] %v628
  %661 = vst [vmem:[#allocation2 + $0x48] sm:$0xff] %v629
  %662 = vst [vmem:[#allocation2 + $0x50] sm:$0xff] %v630
  %663 = vst [vmem:[#allocation2 + $0x58] sm:$0xff] %v631
  %664 = vst [vmem:[#allocation2 + $0x60] sm:$0xff] %v632
  %665 = vst [vmem:[#allocation2 + $0x68] sm:$0xff] %v633
  %666 = vst [vmem:[#allocation2 + $0x70] sm:$0xff] %v634
  %667 = vst [vmem:[#allocation2 + $0x78] sm:$0xff] %v635
  %668 = vst [vmem:[#allocation2 + $0x80] sm:$0xff] %v636
  %669 = vst [vmem:[#allocation2 + $0x88] sm:$0xff] %v637
  %670 = vst [vmem:[#allocation2 + $0x90] sm:$0xff] %v638
  %671 = vst [vmem:[#allocation2 + $0x98] sm:$0xff] %v639
  %672 = vst [vmem:[#allocation2 + $0xa0] sm:$0xff] %v640
  %673 = vst [vmem:[#allocation2 + $0xa8] sm:$0xff] %v641
  %674 = vst [vmem:[#allocation2 + $0xb0] sm:$0xff] %v642
  %675 = vst [vmem:[#allocation2 + $0xb8] sm:$0xff] %v643
  %676 = vst [vmem:[#allocation2 + $0xc0] sm:$0xff] %v644
  %677 = vst [vmem:[#allocation2 + $0xc8] sm:$0xff] %v645
  %678 = vst [vmem:[#allocation2 + $0xd0] sm:$0xff] %v646
  %679 = vst [vmem:[#allocation2 + $0xd8] sm:$0xff] %v647
  %680 = vst [vmem:[#allocation2 + $0xe0] sm:$0xff] %v648
  %681 = vst [vmem:[#allocation2 + $0xe8] sm:$0xff] %v649
  %682 = vst [vmem:[#allocation2 + $0xf0] sm:$0xff] %v650
  %683 = vst [vmem:[#allocation2 + $0xf8] sm:$0xff] %v651
  %v684 = vld [vmem:[#allocation2] sm:$0xff]
  %v685 = vld [vmem:[#allocation2 + $0x8] sm:$0xff]
  %v686 = vld [vmem:[#allocation2 + $0x10] sm:$0xf]
  %v687 = vld [vmem:[#allocation2 + $0x18] sm:$0xf]
  %v688 = vld [vmem:[#allocation2 + $0x20] sm:$0xff]
  %v689 = vld [vmem:[#allocation2 + $0x28] sm:$0xff]
  %v690 = vld [vmem:[#allocation2 + $0x30] sm:$0xf]
  %v691 = vld [vmem:[#allocation2 + $0x38] sm:$0xf]
  %v692 = vld [vmem:[#allocation2 + $0x40] sm:$0xff]
  %v693 = vld [vmem:[#allocation2 + $0x48] sm:$0xff]
  %v694 = vld [vmem:[#allocation2 + $0x50] sm:$0xf]
  %v695 = vld [vmem:[#allocation2 + $0x58] sm:$0xf]
  %v696 = vld [vmem:[#allocation2 + $0x60] sm:$0xff]
  %v697 = vld [vmem:[#allocation2 + $0x68] sm:$0xff]
  %v698 = vld [vmem:[#allocation2 + $0x70] sm:$0xf]
  %v699 = vld [vmem:[#allocation2 + $0x78] sm:$0xf]
  %v700 = vld [vmem:[#allocation2 + $0x80] sm:$0xff]
  %v701 = vld [vmem:[#allocation2 + $0x88] sm:$0xff]
  %v702 = vld [vmem:[#allocation2 + $0x90] sm:$0xf]
  %v703 = vld [vmem:[#allocation2 + $0x98] sm:$0xf]
  %v704 = vld [vmem:[#allocation2 + $0xa0] sm:$0xff]
  %v705 = vld [vmem:[#allocation2 + $0xa8] sm:$0xff]
  %v706 = vld [vmem:[#allocation2 + $0xb0] sm:$0xf]
  %v707 = vld [vmem:[#allocation2 + $0xb8] sm:$0xf]
  %v708 = vld [vmem:[#allocation2 + $0xc0] sm:$0xff]
  %v709 = vld [vmem:[#allocation2 + $0xc8] sm:$0xff]
  %v710 = vld [vmem:[#allocation2 + $0xd0] sm:$0xf]
  %v711 = vld [vmem:[#allocation2 + $0xd8] sm:$0xf]
  %v712 = vld [vmem:[#allocation2 + $0xe0] sm:$0xff]
  %v713 = vld [vmem:[#allocation2 + $0xe8] sm:$0xff]
  %v714 = vld [vmem:[#allocation2 + $0xf0] sm:$0xf]
  %v715 = vld [vmem:[#allocation2 + $0xf8] sm:$0xf]
  %v748 = vunpack.c.l.b16 %v684
  %v749 = vunpack.c.l.b16 %v685
  %v750 = vunpack.c.h.b16 %v684
  %v751 = vunpack.c.h.b16 %v685
  %v752 = vunpack.c.l.b16 %v686
  %v753 = vunpack.c.l.b16 %v687
  %v754 = vunpack.c.l.b16 %v688
  %v755 = vunpack.c.l.b16 %v689
  %v756 = vunpack.c.h.b16 %v688
  %v757 = vunpack.c.h.b16 %v689
  %v758 = vunpack.c.l.b16 %v690
  %v759 = vunpack.c.l.b16 %v691
  %v760 = vunpack.c.l.b16 %v692
  %v761 = vunpack.c.l.b16 %v693
  %v762 = vunpack.c.h.b16 %v692
  %v763 = vunpack.c.h.b16 %v693
  %v764 = vunpack.c.l.b16 %v694
  %v765 = vunpack.c.l.b16 %v695
  %v766 = vunpack.c.l.b16 %v696
  %v767 = vunpack.c.l.b16 %v697
  %v768 = vunpack.c.h.b16 %v696
  %v769 = vunpack.c.h.b16 %v697
  %v770 = vunpack.c.l.b16 %v698
  %v771 = vunpack.c.l.b16 %v699
  %v772 = vunpack.c.l.b16 %v700
  %v773 = vunpack.c.l.b16 %v701
  %v774 = vunpack.c.h.b16 %v700
  %v775 = vunpack.c.h.b16 %v701
  %v776 = vunpack.c.l.b16 %v702
  %v777 = vunpack.c.l.b16 %v703
  %v778 = vunpack.c.l.b16 %v704
  %v779 = vunpack.c.l.b16 %v705
  %v780 = vunpack.c.h.b16 %v704
  %v781 = vunpack.c.h.b16 %v705
  %v782 = vunpack.c.l.b16 %v706
  %v783 = vunpack.c.l.b16 %v707
  %v784 = vunpack.c.l.b16 %v708
  %v785 = vunpack.c.l.b16 %v709
  %v786 = vunpack.c.h.b16 %v708
  %v787 = vunpack.c.h.b16 %v709
  %v788 = vunpack.c.l.b16 %v710
  %v789 = vunpack.c.l.b16 %v711
  %v790 = vunpack.c.l.b16 %v712
  %v791 = vunpack.c.l.b16 %v713
  %v792 = vunpack.c.h.b16 %v712
  %v793 = vunpack.c.h.b16 %v713
  %v794 = vunpack.c.l.b16 %v714
  %v795 = vunpack.c.l.b16 %v715
  %v796 = vld [vmem:[%s4] sm:$0xf]
  %v797 = vld [vmem:[%s4 + $0x4] sm:$0xf]
  %v798 = vld [vmem:[%s4 + $0x8] sm:$0xf]
  %v799 = vld [vmem:[%s4 + $0xc] sm:$0xf]
  %v800 = vld [vmem:[%s4 + $0x10] sm:$0xf]
  %v801 = vld [vmem:[%s4 + $0x14] sm:$0xf]
  %v802 = vld [vmem:[%s4 + $0x18] sm:$0xf]
  %v803 = vld [vmem:[%s4 + $0x1c] sm:$0xf]
  %v804 = vld [vmem:[%s4 + $0x20] sm:$0xf]
  %v805 = vld [vmem:[%s4 + $0x24] sm:$0xf]
  %v806 = vld [vmem:[%s4 + $0x28] sm:$0xf]
  %v807 = vld [vmem:[%s4 + $0x2c] sm:$0xf]
  %v808 = vld [vmem:[%s4 + $0x30] sm:$0xf]
  %v809 = vld [vmem:[%s4 + $0x34] sm:$0xf]
  %v810 = vld [vmem:[%s4 + $0x38] sm:$0xf]
  %v811 = vld [vmem:[%s4 + $0x3c] sm:$0xf]
  %v812 = vld [vmem:[%s4 + $0x40] sm:$0xf]
  %v813 = vld [vmem:[%s4 + $0x44] sm:$0xf]
  %v814 = vld [vmem:[%s4 + $0x48] sm:$0xf]
  %v815 = vld [vmem:[%s4 + $0x4c] sm:$0xf]
  %v816 = vld [vmem:[%s4 + $0x50] sm:$0xf]
  %v817 = vld [vmem:[%s4 + $0x54] sm:$0xf]
  %v818 = vld [vmem:[%s4 + $0x58] sm:$0xf]
  %v819 = vld [vmem:[%s4 + $0x5c] sm:$0xf]
  %v820 = vld [vmem:[%s4 + $0x60] sm:$0xf]
  %v821 = vld [vmem:[%s4 + $0x64] sm:$0xf]
  %v822 = vld [vmem:[%s4 + $0x68] sm:$0xf]
  %v823 = vld [vmem:[%s4 + $0x6c] sm:$0xf]
  %v824 = vld [vmem:[%s4 + $0x70] sm:$0xf]
  %v825 = vld [vmem:[%s4 + $0x74] sm:$0xf]
  %v826 = vld [vmem:[%s4 + $0x78] sm:$0xf]
  %v827 = vld [vmem:[%s4 + $0x7c] sm:$0xf]
  %v828 = vld [vmem:[#allocation2 + $0x10] sm:$0x1f]
  %v829 = vld [vmem:[#allocation2 + $0x18] sm:$0x1f]
  %v830 = vld [vmem:[#allocation2 + $0x30] sm:$0x1f]
  %v831 = vld [vmem:[#allocation2 + $0x38] sm:$0x1f]
  %v832 = vld [vmem:[#allocation2 + $0x50] sm:$0x1f]
  %v833 = vld [vmem:[#allocation2 + $0x58] sm:$0x1f]
  %v834 = vld [vmem:[#allocation2 + $0x70] sm:$0x1f]
  %v835 = vld [vmem:[#allocation2 + $0x78] sm:$0x1f]
  %v836 = vld [vmem:[#allocation2 + $0x90] sm:$0x1f]
  %v837 = vld [vmem:[#allocation2 + $0x98] sm:$0x1f]
  %v838 = vld [vmem:[#allocation2 + $0xb0] sm:$0x1f]
  %v839 = vld [vmem:[#allocation2 + $0xb8] sm:$0x1f]
  %v840 = vld [vmem:[#allocation2 + $0xd0] sm:$0x1f]
  %v841 = vld [vmem:[#allocation2 + $0xd8] sm:$0x1f]
  %v842 = vld [vmem:[#allocation2 + $0xf0] sm:$0x1f]
  %v843 = vld [vmem:[#allocation2 + $0xf8] sm:$0x1f]
  %v860 = vunpack.c.l.b16 %v828
  %v861 = vunpack.c.l.b16 %v829
  %v862 = vunpack.c.h.b16 %v828
  %v863 = vunpack.c.h.b16 %v829
  %v864 = vunpack.c.l.b16 %v830
  %v865 = vunpack.c.l.b16 %v831
  %v866 = vunpack.c.h.b16 %v830
  %v867 = vunpack.c.h.b16 %v831
  %v868 = vunpack.c.l.b16 %v832
  %v869 = vunpack.c.l.b16 %v833
  %v870 = vunpack.c.h.b16 %v832
  %v871 = vunpack.c.h.b16 %v833
  %v872 = vunpack.c.l.b16 %v834
  %v873 = vunpack.c.l.b16 %v835
  %v874 = vunpack.c.h.b16 %v834
  %v875 = vunpack.c.h.b16 %v835
  %v876 = vunpack.c.l.b16 %v836
  %v877 = vunpack.c.l.b16 %v837
  %v878 = vunpack.c.h.b16 %v836
  %v879 = vunpack.c.h.b16 %v837
  %v880 = vunpack.c.l.b16 %v838
  %v881 = vunpack.c.l.b16 %v839
  %v882 = vunpack.c.h.b16 %v838
  %v883 = vunpack.c.h.b16 %v839
  %v884 = vunpack.c.l.b16 %v840
  %v885 = vunpack.c.l.b16 %v841
  %v886 = vunpack.c.h.b16 %v840
  %v887 = vunpack.c.h.b16 %v841
  %v888 = vunpack.c.l.b16 %v842
  %v889 = vunpack.c.l.b16 %v843
  %v890 = vunpack.c.h.b16 %v842
  %v891 = vunpack.c.h.b16 %v843
  %v892 = vpack.c.b16 %v749, %v748
  %v893 = vpack.c.b16 %v751, %v750
  %v894 = vpack.c.b16 %v861, %v860
  %v895 = vpack.c.b16 %v863, %v862
  %v896 = vpack.c.b16 %v755, %v754
  %v897 = vpack.c.b16 %v757, %v756
  %v898 = vpack.c.b16 %v865, %v864
  %v899 = vpack.c.b16 %v867, %v866
  %v900 = vpack.c.b16 %v761, %v760
  %v901 = vpack.c.b16 %v763, %v762
  %v902 = vpack.c.b16 %v869, %v868
  %v903 = vpack.c.b16 %v871, %v870
  %v904 = vpack.c.b16 %v767, %v766
  %v905 = vpack.c.b16 %v769, %v768
  %v906 = vpack.c.b16 %v873, %v872
  %v907 = vpack.c.b16 %v875, %v874
  %v908 = vpack.c.b16 %v773, %v772
  %v909 = vpack.c.b16 %v775, %v774
  %v910 = vpack.c.b16 %v877, %v876
  %v911 = vpack.c.b16 %v879, %v878
  %v912 = vpack.c.b16 %v779, %v778
  %v913 = vpack.c.b16 %v781, %v780
  %v914 = vpack.c.b16 %v881, %v880
  %v915 = vpack.c.b16 %v883, %v882
  %v916 = vpack.c.b16 %v785, %v784
  %v917 = vpack.c.b16 %v787, %v786
  %v918 = vpack.c.b16 %v885, %v884
  %v919 = vpack.c.b16 %v887, %v886
  %v920 = vpack.c.b16 %v791, %v790
  %v921 = vpack.c.b16 %v793, %v792
  %v922 = vpack.c.b16 %v889, %v888
  %v923 = vpack.c.b16 %v891, %v890
  %vm924 = vsmask.f32 3328
  %vm925 = vsmask.f32 7440
  %vm926 = vmor %vm924, %vm925
  %v928 = vshrl.u32 %v892, 16
  %v930 = vrot.slane %v928, 4
  %v931 = vshll.u32 %v892, 16
  %v933 = vrot.slane %v931, 5
  %v934 = vor.u32 %v930, %v933
  %v935 = vrot.slane %v934, 4
  %v937 = vshll.u32 %v893, 16
  %v939 = vrot.slane %v937, 5
  %v940 = vsel %vm926, %v935, %v939
  %v941 = vshrl.u32 %v893, 16
  %v943 = vrot.slane %v941, 4
  %v944 = vor.u32 %v943, %v939
  %v945 = vrot.slane %v944, 4
  %v947 = vshll.u32 %v894, 16
  %v949 = vrot.slane %v947, 5
  %v950 = vsel %vm926, %v945, %v949
  %v951 = vshrl.u32 %v894, 16
  %v953 = vrot.slane %v951, 4
  %v954 = vor.u32 %v953, %v949
  %v955 = vrot.slane %v954, 4
  %v957 = vshll.u32 %v895, 16
  %v959 = vrot.slane %v957, 5
  %v960 = vsel %vm926, %v955, %v959
  %v962 = vshrl.u32 %v896, 16
  %v964 = vrot.slane %v962, 4
  %v965 = vshll.u32 %v896, 16
  %v967 = vrot.slane %v965, 5
  %v968 = vor.u32 %v964, %v967
  %v969 = vrot.slane %v968, 4
  %v971 = vshll.u32 %v897, 16
  %v973 = vrot.slane %v971, 5
  %v974 = vsel %vm926, %v969, %v973
  %v975 = vshrl.u32 %v897, 16
  %v977 = vrot.slane %v975, 4
  %v978 = vor.u32 %v977, %v973
  %v979 = vrot.slane %v978, 4
  %v981 = vshll.u32 %v898, 16
  %v983 = vrot.slane %v981, 5
  %v984 = vsel %vm926, %v979, %v983
  %v985 = vshrl.u32 %v898, 16
  %v987 = vrot.slane %v985, 4
  %v988 = vor.u32 %v987, %v983
  %v989 = vrot.slane %v988, 4
  %v991 = vshll.u32 %v899, 16
  %v993 = vrot.slane %v991, 5
  %v994 = vsel %vm926, %v989, %v993
  %v996 = vshrl.u32 %v900, 16
  %v998 = vrot.slane %v996, 4
  %v999 = vshll.u32 %v900, 16
  %v1001 = vrot.slane %v999, 5
  %v1002 = vor.u32 %v998, %v1001
  %v1003 = vrot.slane %v1002, 4
  %v1005 = vshll.u32 %v901, 16
  %v1007 = vrot.slane %v1005, 5
  %v1008 = vsel %vm926, %v1003, %v1007
  %v1009 = vshrl.u32 %v901, 16
  %v1011 = vrot.slane %v1009, 4
  %v1012 = vor.u32 %v1011, %v1007
  %v1013 = vrot.slane %v1012, 4
  %v1015 = vshll.u32 %v902, 16
  %v1017 = vrot.slane %v1015, 5
  %v1018 = vsel %vm926, %v1013, %v1017
  %v1019 = vshrl.u32 %v902, 16
  %v1021 = vrot.slane %v1019, 4
  %v1022 = vor.u32 %v1021, %v1017
  %v1023 = vrot.slane %v1022, 4
  %v1025 = vshll.u32 %v903, 16
  %v1027 = vrot.slane %v1025, 5
  %v1028 = vsel %vm926, %v1023, %v1027
  %v1030 = vshrl.u32 %v904, 16
  %v1032 = vrot.slane %v1030, 4
  %v1033 = vshll.u32 %v904, 16
  %v1035 = vrot.slane %v1033, 5
  %v1036 = vor.u32 %v1032, %v1035
  %v1037 = vrot.slane %v1036, 4
  %v1039 = vshll.u32 %v905, 16
  %v1041 = vrot.slane %v1039, 5
  %v1042 = vsel %vm926, %v1037, %v1041
  %v1043 = vshrl.u32 %v905, 16
  %v1045 = vrot.slane %v1043, 4
  %v1046 = vor.u32 %v1045, %v1041
  %v1047 = vrot.slane %v1046, 4
  %v1049 = vshll.u32 %v906, 16
  %v1051 = vrot.slane %v1049, 5
  %v1052 = vsel %vm926, %v1047, %v1051
  %v1053 = vshrl.u32 %v906, 16
  %v1055 = vrot.slane %v1053, 4
  %v1056 = vor.u32 %v1055, %v1051
  %v1057 = vrot.slane %v1056, 4
  %v1059 = vshll.u32 %v907, 16
  %v1061 = vrot.slane %v1059, 5
  %v1062 = vsel %vm926, %v1057, %v1061
  %v1064 = vshrl.u32 %v908, 16
  %v1066 = vrot.slane %v1064, 4
  %v1067 = vshll.u32 %v908, 16
  %v1069 = vrot.slane %v1067, 5
  %v1070 = vor.u32 %v1066, %v1069
  %v1071 = vrot.slane %v1070, 4
  %v1073 = vshll.u32 %v909, 16
  %v1075 = vrot.slane %v1073, 5
  %v1076 = vsel %vm926, %v1071, %v1075
  %v1077 = vshrl.u32 %v909, 16
  %v1079 = vrot.slane %v1077, 4
  %v1080 = vor.u32 %v1079, %v1075
  %v1081 = vrot.slane %v1080, 4
  %v1083 = vshll.u32 %v910, 16
  %v1085 = vrot.slane %v1083, 5
  %v1086 = vsel %vm926, %v1081, %v1085
  %v1087 = vshrl.u32 %v910, 16
  %v1089 = vrot.slane %v1087, 4
  %v1090 = vor.u32 %v1089, %v1085
  %v1091 = vrot.slane %v1090, 4
  %v1093 = vshll.u32 %v911, 16
  %v1095 = vrot.slane %v1093, 5
  %v1096 = vsel %vm926, %v1091, %v1095
  %v1098 = vshrl.u32 %v912, 16
  %v1100 = vrot.slane %v1098, 4
  %v1101 = vshll.u32 %v912, 16
  %v1103 = vrot.slane %v1101, 5
  %v1104 = vor.u32 %v1100, %v1103
  %v1105 = vrot.slane %v1104, 4
  %v1107 = vshll.u32 %v913, 16
  %v1109 = vrot.slane %v1107, 5
  %v1110 = vsel %vm926, %v1105, %v1109
  %v1111 = vshrl.u32 %v913, 16
  %v1113 = vrot.slane %v1111, 4
  %v1114 = vor.u32 %v1113, %v1109
  %v1115 = vrot.slane %v1114, 4
  %v1117 = vshll.u32 %v914, 16
  %v1119 = vrot.slane %v1117, 5
  %v1120 = vsel %vm926, %v1115, %v1119
  %v1121 = vshrl.u32 %v914, 16
  %v1123 = vrot.slane %v1121, 4
  %v1124 = vor.u32 %v1123, %v1119
  %v1125 = vrot.slane %v1124, 4
  %v1127 = vshll.u32 %v915, 16
  %v1129 = vrot.slane %v1127, 5
  %v1130 = vsel %vm926, %v1125, %v1129
  %v1132 = vshrl.u32 %v916, 16
  %v1134 = vrot.slane %v1132, 4
  %v1135 = vshll.u32 %v916, 16
  %v1137 = vrot.slane %v1135, 5
  %v1138 = vor.u32 %v1134, %v1137
  %v1139 = vrot.slane %v1138, 4
  %v1141 = vshll.u32 %v917, 16
  %v1143 = vrot.slane %v1141, 5
  %v1144 = vsel %vm926, %v1139, %v1143
  %v1145 = vshrl.u32 %v917, 16
  %v1147 = vrot.slane %v1145, 4
  %v1148 = vor.u32 %v1147, %v1143
  %v1149 = vrot.slane %v1148, 4
  %v1151 = vshll.u32 %v918, 16
  %v1153 = vrot.slane %v1151, 5
  %v1154 = vsel %vm926, %v1149, %v1153
  %v1155 = vshrl.u32 %v918, 16
  %v1157 = vrot.slane %v1155, 4
  %v1158 = vor.u32 %v1157, %v1153
  %v1159 = vrot.slane %v1158, 4
  %v1161 = vshll.u32 %v919, 16
  %v1163 = vrot.slane %v1161, 5
  %v1164 = vsel %vm926, %v1159, %v1163
  %v1166 = vshrl.u32 %v920, 16
  %v1168 = vrot.slane %v1166, 4
  %v1169 = vshll.u32 %v920, 16
  %v1171 = vrot.slane %v1169, 5
  %v1172 = vor.u32 %v1168, %v1171
  %v1173 = vrot.slane %v1172, 4
  %v1175 = vshll.u32 %v921, 16
  %v1177 = vrot.slane %v1175, 5
  %v1178 = vsel %vm926, %v1173, %v1177
  %v1179 = vshrl.u32 %v921, 16
  %v1181 = vrot.slane %v1179, 4
  %v1182 = vor.u32 %v1181, %v1177
  %v1183 = vrot.slane %v1182, 4
  %v1185 = vshll.u32 %v922, 16
  %v1187 = vrot.slane %v1185, 5
  %v1188 = vsel %vm926, %v1183, %v1187
  %v1189 = vshrl.u32 %v922, 16
  %v1191 = vrot.slane %v1189, 4
  %v1192 = vor.u32 %v1191, %v1187
  %v1193 = vrot.slane %v1192, 4
  %v1195 = vshll.u32 %v923, 16
  %v1197 = vrot.slane %v1195, 5
  %v1198 = vsel %vm926, %v1193, %v1197
  %s1199 = scalar_lea.vmem %s4, 128
  %v1200 = vld [vmem:[%s1199] sm:$0xf]
  %v1201 = vld [vmem:[%s1199 + $0x4] sm:$0xf]
  %v1202 = vld [vmem:[%s1199 + $0x8] sm:$0xf]
  %v1203 = vld [vmem:[%s1199 + $0xc] sm:$0xf]
  %v1204 = vld [vmem:[%s1199 + $0x10] sm:$0xf]
  %v1205 = vld [vmem:[%s1199 + $0x14] sm:$0xf]
  %v1206 = vld [vmem:[%s1199 + $0x18] sm:$0xf]
  %v1207 = vld [vmem:[%s1199 + $0x1c] sm:$0xf]
  %v1208 = vld [vmem:[%s1199 + $0x20] sm:$0xf]
  %v1209 = vld [vmem:[%s1199 + $0x24] sm:$0xf]
  %v1210 = vld [vmem:[%s1199 + $0x28] sm:$0xf]
  %v1211 = vld [vmem:[%s1199 + $0x2c] sm:$0xf]
  %v1212 = vld [vmem:[%s1199 + $0x30] sm:$0xf]
  %v1213 = vld [vmem:[%s1199 + $0x34] sm:$0xf]
  %v1214 = vld [vmem:[%s1199 + $0x38] sm:$0xf]
  %v1215 = vld [vmem:[%s1199 + $0x3c] sm:$0xf]
  %v1216 = vld [vmem:[%s1199 + $0x40] sm:$0xf]
  %v1217 = vld [vmem:[%s1199 + $0x44] sm:$0xf]
  %v1218 = vld [vmem:[%s1199 + $0x48] sm:$0xf]
  %v1219 = vld [vmem:[%s1199 + $0x4c] sm:$0xf]
  %v1220 = vld [vmem:[%s1199 + $0x50] sm:$0xf]
  %v1221 = vld [vmem:[%s1199 + $0x54] sm:$0xf]
  %v1222 = vld [vmem:[%s1199 + $0x58] sm:$0xf]
  %v1223 = vld [vmem:[%s1199 + $0x5c] sm:$0xf]
  %v1224 = vld [vmem:[%s1199 + $0x60] sm:$0xf]
  %v1225 = vld [vmem:[%s1199 + $0x64] sm:$0xf]
  %v1226 = vld [vmem:[%s1199 + $0x68] sm:$0xf]
  %v1227 = vld [vmem:[%s1199 + $0x6c] sm:$0xf]
  %v1228 = vld [vmem:[%s1199 + $0x70] sm:$0xf]
  %v1229 = vld [vmem:[%s1199 + $0x74] sm:$0xf]
  %v1230 = vld [vmem:[%s1199 + $0x78] sm:$0xf]
  %v1231 = vld [vmem:[%s1199 + $0x7c] sm:$0xf]
  %v1232 = vunpack.c.l.b16 %v940
  %v1233 = vunpack.c.h.b16 %v940
  %v1234 = vunpack.c.l.b16 %v950
  %v1235 = vunpack.c.h.b16 %v950
  %v1236 = vunpack.c.l.b16 %v960
  %v1237 = vunpack.c.h.b16 %v960
  %v1238 = vunpack.c.l.b16 %v974
  %v1239 = vunpack.c.h.b16 %v974
  %v1240 = vunpack.c.l.b16 %v984
  %v1241 = vunpack.c.h.b16 %v984
  %v1242 = vunpack.c.l.b16 %v994
  %v1243 = vunpack.c.h.b16 %v994
  %v1244 = vunpack.c.l.b16 %v1008
  %v1245 = vunpack.c.h.b16 %v1008
  %v1246 = vunpack.c.l.b16 %v1018
  %v1247 = vunpack.c.h.b16 %v1018
  %v1248 = vunpack.c.l.b16 %v1028
  %v1249 = vunpack.c.h.b16 %v1028
  %v1250 = vunpack.c.l.b16 %v1042
  %v1251 = vunpack.c.h.b16 %v1042
  %v1252 = vunpack.c.l.b16 %v1052
  %v1253 = vunpack.c.h.b16 %v1052
  %v1254 = vunpack.c.l.b16 %v1062
  %v1255 = vunpack.c.h.b16 %v1062
  %v1256 = vunpack.c.l.b16 %v1076
  %v1257 = vunpack.c.h.b16 %v1076
  %v1258 = vunpack.c.l.b16 %v1086
  %v1259 = vunpack.c.h.b16 %v1086
  %v1260 = vunpack.c.l.b16 %v1096
  %v1261 = vunpack.c.h.b16 %v1096
  %v1262 = vunpack.c.l.b16 %v1110
  %v1263 = vunpack.c.h.b16 %v1110
  %v1264 = vunpack.c.l.b16 %v1120
  %v1265 = vunpack.c.h.b16 %v1120
  %v1266 = vunpack.c.l.b16 %v1130
  %v1267 = vunpack.c.h.b16 %v1130
  %v1268 = vunpack.c.l.b16 %v1144
  %v1269 = vunpack.c.h.b16 %v1144
  %v1270 = vunpack.c.l.b16 %v1154
  %v1271 = vunpack.c.h.b16 %v1154
  %v1272 = vunpack.c.l.b16 %v1164
  %v1273 = vunpack.c.h.b16 %v1164
  %v1274 = vunpack.c.l.b16 %v1178
  %v1275 = vunpack.c.h.b16 %v1178
  %v1276 = vunpack.c.l.b16 %v1188
  %v1277 = vunpack.c.h.b16 %v1188
  %v1278 = vunpack.c.l.b16 %v1198
  %v1279 = vunpack.c.h.b16 %v1198
  %v1280 = vpack.c.b16 %v1234, %v1232
  %v1281 = vpack.c.b16 %v1235, %v1233
  %v1282 = vpack.c.b16 %v1238, %v1236
  %v1283 = vpack.c.b16 %v1239, %v1237
  %v1284 = vpack.c.b16 %v1242, %v1240
  %v1285 = vpack.c.b16 %v1243, %v1241
  %v1286 = vpack.c.b16 %v1246, %v1244
  %v1287 = vpack.c.b16 %v1247, %v1245
  %v1288 = vpack.c.b16 %v1250, %v1248
  %v1289 = vpack.c.b16 %v1251, %v1249
  %v1290 = vpack.c.b16 %v1254, %v1252
  %v1291 = vpack.c.b16 %v1255, %v1253
  %v1292 = vpack.c.b16 %v1258, %v1256
  %v1293 = vpack.c.b16 %v1259, %v1257
  %v1294 = vpack.c.b16 %v1262, %v1260
  %v1295 = vpack.c.b16 %v1263, %v1261
  %v1296 = vpack.c.b16 %v1266, %v1264
  %v1297 = vpack.c.b16 %v1267, %v1265
  %v1298 = vpack.c.b16 %v1270, %v1268
  %v1299 = vpack.c.b16 %v1271, %v1269
  %v1300 = vpack.c.b16 %v1274, %v1272
  %v1301 = vpack.c.b16 %v1275, %v1273
  %v1302 = vpack.c.b16 %v1278, %v1276
  %v1303 = vpack.c.b16 %v1279, %v1277
  %v1360 = vunpack.c.l.b16 %v1200
  %v1361 = vunpack.c.l.b16 %v1201
  %v1362 = vunpack.c.l.b16 %v1202
  %v1363 = vunpack.c.l.b16 %v1203
  %v1364 = vunpack.c.l.b16 %v1204
  %v1365 = vunpack.c.l.b16 %v1205
  %v1366 = vunpack.c.l.b16 %v1206
  %v1367 = vunpack.c.l.b16 %v1207
  %v1368 = vunpack.c.l.b16 %v1208
  %v1369 = vunpack.c.l.b16 %v1209
  %v1370 = vunpack.c.l.b16 %v1210
  %v1371 = vunpack.c.l.b16 %v1211
  %v1372 = vunpack.c.l.b16 %v1212
  %v1373 = vunpack.c.l.b16 %v1213
  %v1374 = vunpack.c.l.b16 %v1214
  %v1375 = vunpack.c.l.b16 %v1215
  %v1376 = vunpack.c.l.b16 %v1216
  %v1377 = vunpack.c.l.b16 %v1217
  %v1378 = vunpack.c.l.b16 %v1218
  %v1379 = vunpack.c.l.b16 %v1219
  %v1380 = vunpack.c.l.b16 %v1220
  %v1381 = vunpack.c.l.b16 %v1221
  %v1382 = vunpack.c.l.b16 %v1222
  %v1383 = vunpack.c.l.b16 %v1223
  %v1384 = vunpack.c.l.b16 %v1224
  %v1385 = vunpack.c.l.b16 %v1225
  %v1386 = vunpack.c.l.b16 %v1226
  %v1387 = vunpack.c.l.b16 %v1227
  %v1388 = vunpack.c.l.b16 %v1228
  %v1389 = vunpack.c.l.b16 %v1229
  %v1390 = vunpack.c.l.b16 %v1230
  %v1391 = vunpack.c.l.b16 %v1231
  %v1392 = vpack.c.b16 %v1361, %v1360
  %v1393 = vpack.c.b16 %v1363, %v1362
  %v1394 = vpack.c.b16 %v1365, %v1364
  %v1395 = vpack.c.b16 %v1367, %v1366
  %v1396 = vpack.c.b16 %v1369, %v1368
  %v1397 = vpack.c.b16 %v1371, %v1370
  %v1398 = vpack.c.b16 %v1373, %v1372
  %v1399 = vpack.c.b16 %v1375, %v1374
  %v1400 = vpack.c.b16 %v1377, %v1376
  %v1401 = vpack.c.b16 %v1379, %v1378
  %v1402 = vpack.c.b16 %v1381, %v1380
  %v1403 = vpack.c.b16 %v1383, %v1382
  %v1404 = vpack.c.b16 %v1385, %v1384
  %v1405 = vpack.c.b16 %v1387, %v1386
  %v1406 = vpack.c.b16 %v1389, %v1388
  %v1407 = vpack.c.b16 %v1391, %v1390
  %1424 = vmatprep.subr.bf16.mxu0 0
  %1425 = vmatpush1.bf16.msra.mxu0 %v1392
  %1426 = vmatprep.subr.bf16.mxu0 0
  %1427 = vmatpush1.bf16.msra.mxu0 %v1393
  %1428 = vmatprep.subr.bf16.mxu0 0
  %1429 = vmatpush1.bf16.msra.mxu0 %v1394
  %1430 = vmatprep.subr.bf16.mxu0 0
  %1431 = vmatpush1.bf16.msra.mxu0 %v1395
  %1432 = vmatprep.subr.bf16.mxu0 0
  %1433 = vmatpush1.bf16.msra.mxu0 %v1396
  %1434 = vmatprep.subr.bf16.mxu0 0
  %1435 = vmatpush1.bf16.msra.mxu0 %v1397
  %1436 = vmatprep.subr.bf16.mxu0 0
  %1437 = vmatpush1.bf16.msra.mxu0 %v1398
  %1438 = vmatprep.subr.bf16.mxu0 0
  %1439 = vmatpush1.bf16.msra.mxu0 %v1399
  %1440 = vmatprep.subr.bf16.mxu0 0
  %1441 = vmatpush1.bf16.msra.mxu0 %v1400
  %1442 = vmatprep.subr.bf16.mxu0 0
  %1443 = vmatpush1.bf16.msra.mxu0 %v1401
  %1444 = vmatprep.subr.bf16.mxu0 0
  %1445 = vmatpush1.bf16.msra.mxu0 %v1402
  %1446 = vmatprep.subr.bf16.mxu0 0
  %1447 = vmatpush1.bf16.msra.mxu0 %v1403
  %1448 = vmatprep.subr.bf16.mxu0 0
  %1449 = vmatpush1.bf16.msra.mxu0 %v1404
  %1450 = vmatprep.subr.bf16.mxu0 0
  %1451 = vmatpush1.bf16.msra.mxu0 %v1405
  %1452 = vmatprep.subr.bf16.mxu0 0
  %1453 = vmatpush1.bf16.msra.mxu0 %v1406
  %1454 = vmatprep.subr.bf16.mxu0 0
  %1455 = vmatpush1.bf16.msra.mxu0 %v1407
  %1456 = vmatprep.mubr.bf16.mxu0 %v1281
  %1457 = vmatmul.mubr.bf16.gmra.mrb[0].mxu0 %v1280
  %v1458 = vpop.f32.mrb[0].mxu0
  %v1459 = vadd.f32 0.0, %v1458
  %v1460 = vpop.f32.mrb[0].mxu0
  %v1461 = vpop.f32.mrb[0].mxu0
  %v1462 = vadd.f32 0.0, %v1461
  %v1463 = vpop.f32.mrb[0].mxu0
  %1464 = vmatprep.mubr.bf16.mxu0 %v1283
  %1465 = vmatmul.mubr.bf16.gmra.mrb[0].mxu0 %v1282
  %v1466 = vpop.f32.mrb[0].mxu0
  %v1467 = vadd.f32 0.0, %v1466
  %v1468 = vpop.f32.mrb[0].mxu0
  %v1469 = vpop.f32.mrb[0].mxu0
  %v1470 = vadd.f32 0.0, %v1469
  %v1471 = vpop.f32.mrb[0].mxu0
  %1472 = vmatprep.mubr.bf16.mxu0 %v1285
  %1473 = vmatmul.mubr.bf16.gmra.mrb[0].mxu0 %v1284
  %v1474 = vpop.f32.mrb[0].mxu0
  %v1475 = vadd.f32 0.0, %v1474
  %v1476 = vpop.f32.mrb[0].mxu0
  %v1477 = vpop.f32.mrb[0].mxu0
  %v1478 = vadd.f32 0.0, %v1477
  %v1479 = vpop.f32.mrb[0].mxu0
  %1480 = vmatprep.mubr.bf16.mxu0 %v1287
  %1481 = vmatmul.mubr.bf16.gmra.mrb[0].mxu0 %v1286
  %v1482 = vpop.f32.mrb[0].mxu0
  %v1483 = vadd.f32 0.0, %v1482
  %v1484 = vpop.f32.mrb[0].mxu0
  %v1485 = vpop.f32.mrb[0].mxu0
  %v1486 = vadd.f32 0.0, %v1485
  %v1487 = vpop.f32.mrb[0].mxu0
  %1488 = vmatprep.mubr.bf16.mxu0 %v1289
  %1489 = vmatmul.mubr.bf16.gmra.mrb[0].mxu0 %v1288
  %v1490 = vpop.f32.mrb[0].mxu0
  %v1491 = vadd.f32 0.0, %v1490
  %v1492 = vpop.f32.mrb[0].mxu0
  %v1493 = vpop.f32.mrb[0].mxu0
  %v1494 = vadd.f32 0.0, %v1493
  %v1495 = vpop.f32.mrb[0].mxu0
  %1496 = vmatprep.mubr.bf16.mxu0 %v1291
  %1497 = vmatmul.mubr.bf16.gmra.mrb[0].mxu0 %v1290
  %v1498 = vpop.f32.mrb[0].mxu0
  %v1499 = vadd.f32 0.0, %v1498
  %v1500 = vpop.f32.mrb[0].mxu0
  %v1501 = vpop.f32.mrb[0].mxu0
  %v1502 = vadd.f32 0.0, %v1501
  %v1503 = vpop.f32.mrb[0].mxu0
  %1504 = vmatprep.mubr.bf16.mxu0 %v1293
  %1505 = vmatmul.mubr.bf16.gmra.mrb[0].mxu0 %v1292
  %v1506 = vpop.f32.mrb[0].mxu0
  %v1507 = vadd.f32 0.0, %v1506
  %v1508 = vpop.f32.mrb[0].mxu0
  %v1509 = vpop.f32.mrb[0].mxu0
  %v1510 = vadd.f32 0.0, %v1509
  %v1511 = vpop.f32.mrb[0].mxu0
  %1512 = vmatprep.mubr.bf16.mxu0 %v1295
  %1513 = vmatmul.mubr.bf16.gmra.mrb[0].mxu0 %v1294
  %v1514 = vpop.f32.mrb[0].mxu0
  %v1515 = vadd.f32 0.0, %v1514
  %v1516 = vpop.f32.mrb[0].mxu0
  %v1517 = vpop.f32.mrb[0].mxu0
  %v1518 = vadd.f32 0.0, %v1517
  %v1519 = vpop.f32.mrb[0].mxu0
  %1520 = vmatprep.mubr.bf16.mxu0 %v1297
  %1521 = vmatmul.mubr.bf16.gmra.mrb[0].mxu0 %v1296
  %v1522 = vpop.f32.mrb[0].mxu0
  %v1523 = vadd.f32 0.0, %v1522
  %v1524 = vpop.f32.mrb[0].mxu0
  %v1525 = vpop.f32.mrb[0].mxu0
  %v1526 = vadd.f32 0.0, %v1525
  %v1527 = vpop.f32.mrb[0].mxu0
  %1528 = vmatprep.mubr.bf16.mxu0 %v1299
  %1529 = vmatmul.mubr.bf16.gmra.mrb[0].mxu0 %v1298
  %v1530 = vpop.f32.mrb[0].mxu0
  %v1531 = vadd.f32 0.0, %v1530
  %v1532 = vpop.f32.mrb[0].mxu0
  %v1533 = vpop.f32.mrb[0].mxu0
  %v1534 = vadd.f32 0.0, %v1533
  %v1535 = vpop.f32.mrb[0].mxu0
  %1536 = vmatprep.mubr.bf16.mxu0 %v1301
  %1537 = vmatmul.mubr.bf16.gmra.mrb[0].mxu0 %v1300
  %v1538 = vpop.f32.mrb[0].mxu0
  %v1539 = vadd.f32 0.0, %v1538
  %v1540 = vpop.f32.mrb[0].mxu0
  %v1541 = vpop.f32.mrb[0].mxu0
  %v1542 = vadd.f32 0.0, %v1541
  %v1543 = vpop.f32.mrb[0].mxu0
  %1544 = vmatprep.mubr.bf16.mxu0 %v1303
  %1545 = vmatmul.mubr.bf16.gmra.mrb[0].mxu0 %v1302
  %v1546 = vpop.f32.mrb[0].mxu0
  %v1547 = vadd.f32 0.0, %v1546
  %v1548 = vpop.f32.mrb[0].mxu0
  %v1549 = vpop.f32.mrb[0].mxu0
  %v1550 = vadd.f32 0.0, %v1549
  %v1551 = vpop.f32.mrb[0].mxu0
  %1552 = vdwg.mxu0
  %v1553 = vpack.c.b16 %v750, %v748
  %v1554 = vpack.c.b16 %v751, %v749
  %v1555 = vpack.c.b16 %v754, %v752
  %v1556 = vpack.c.b16 %v755, %v753
  %v1557 = vpack.c.b16 %v758, %v756
  %v1558 = vpack.c.b16 %v759, %v757
  %v1559 = vpack.c.b16 %v762, %v760
  %v1560 = vpack.c.b16 %v763, %v761
  %v1561 = vpack.c.b16 %v766, %v764
  %v1562 = vpack.c.b16 %v767, %v765
  %v1563 = vpack.c.b16 %v770, %v768
  %v1564 = vpack.c.b16 %v771, %v769
  %v1565 = vpack.c.b16 %v774, %v772
  %v1566 = vpack.c.b16 %v775, %v773
  %v1567 = vpack.c.b16 %v778, %v776
  %v1568 = vpack.c.b16 %v779, %v777
  %v1569 = vpack.c.b16 %v782, %v780
  %v1570 = vpack.c.b16 %v783, %v781
  %v1571 = vpack.c.b16 %v786, %v784
  %v1572 = vpack.c.b16 %v787, %v785
  %v1573 = vpack.c.b16 %v790, %v788
  %v1574 = vpack.c.b16 %v791, %v789
  %v1575 = vpack.c.b16 %v794, %v792
  %v1576 = vpack.c.b16 %v795, %v793
  %v1633 = vunpack.c.l.b16 %v796
  %v1634 = vunpack.c.l.b16 %v797
  %v1635 = vunpack.c.l.b16 %v798
  %v1636 = vunpack.c.l.b16 %v799
  %v1637 = vunpack.c.l.b16 %v800
  %v1638 = vunpack.c.l.b16 %v801
  %v1639 = vunpack.c.l.b16 %v802
  %v1640 = vunpack.c.l.b16 %v803
  %v1641 = vunpack.c.l.b16 %v804
  %v1642 = vunpack.c.l.b16 %v805
  %v1643 = vunpack.c.l.b16 %v806
  %v1644 = vunpack.c.l.b16 %v807
  %v1645 = vunpack.c.l.b16 %v808
  %v1646 = vunpack.c.l.b16 %v809
  %v1647 = vunpack.c.l.b16 %v810
  %v1648 = vunpack.c.l.b16 %v811
  %v1649 = vunpack.c.l.b16 %v812
  %v1650 = vunpack.c.l.b16 %v813
  %v1651 = vunpack.c.l.b16 %v814
  %v1652 = vunpack.c.l.b16 %v815
  %v1653 = vunpack.c.l.b16 %v816
  %v1654 = vunpack.c.l.b16 %v817
  %v1655 = vunpack.c.l.b16 %v818
  %v1656 = vunpack.c.l.b16 %v819
  %v1657 = vunpack.c.l.b16 %v820
  %v1658 = vunpack.c.l.b16 %v821
  %v1659 = vunpack.c.l.b16 %v822
  %v1660 = vunpack.c.l.b16 %v823
  %v1661 = vunpack.c.l.b16 %v824
  %v1662 = vunpack.c.l.b16 %v825
  %v1663 = vunpack.c.l.b16 %v826
  %v1664 = vunpack.c.l.b16 %v827
  %v1665 = vpack.c.b16 %v1634, %v1633
  %v1666 = vpack.c.b16 %v1636, %v1635
  %v1667 = vpack.c.b16 %v1638, %v1637
  %v1668 = vpack.c.b16 %v1640, %v1639
  %v1669 = vpack.c.b16 %v1642, %v1641
  %v1670 = vpack.c.b16 %v1644, %v1643
  %v1671 = vpack.c.b16 %v1646, %v1645
  %v1672 = vpack.c.b16 %v1648, %v1647
  %v1673 = vpack.c.b16 %v1650, %v1649
  %v1674 = vpack.c.b16 %v1652, %v1651
  %v1675 = vpack.c.b16 %v1654, %v1653
  %v1676 = vpack.c.b16 %v1656, %v1655
  %v1677 = vpack.c.b16 %v1658, %v1657
  %v1678 = vpack.c.b16 %v1660, %v1659
  %v1679 = vpack.c.b16 %v1662, %v1661
  %v1680 = vpack.c.b16 %v1664, %v1663
  %1697 = vmatprep.subr.bf16.mxu0 0
  %1698 = vmatpush1.bf16.msra.mxu0 %v1665
  %1699 = vmatprep.subr.bf16.mxu0 0
  %1700 = vmatpush1.bf16.msra.mxu0 %v1666
  %1701 = vmatprep.subr.bf16.mxu0 0
  %1702 = vmatpush1.bf16.msra.mxu0 %v1667
  %1703 = vmatprep.subr.bf16.mxu0 0
  %1704 = vmatpush1.bf16.msra.mxu0 %v1668
  %1705 = vmatprep.subr.bf16.mxu0 0
  %1706 = vmatpush1.bf16.msra.mxu0 %v1669
  %1707 = vmatprep.subr.bf16.mxu0 0
  %1708 = vmatpush1.bf16.msra.mxu0 %v1670
  %1709 = vmatprep.subr.bf16.mxu0 0
  %1710 = vmatpush1.bf16.msra.mxu0 %v1671
  %1711 = vmatprep.subr.bf16.mxu0 0
  %1712 = vmatpush1.bf16.msra.mxu0 %v1672
  %1713 = vmatprep.subr.bf16.mxu0 0
  %1714 = vmatpush1.bf16.msra.mxu0 %v1673
  %1715 = vmatprep.subr.bf16.mxu0 0
  %1716 = vmatpush1.bf16.msra.mxu0 %v1674
  %1717 = vmatprep.subr.bf16.mxu0 0
  %1718 = vmatpush1.bf16.msra.mxu0 %v1675
  %1719 = vmatprep.subr.bf16.mxu0 0
  %1720 = vmatpush1.bf16.msra.mxu0 %v1676
  %1721 = vmatprep.subr.bf16.mxu0 0
  %1722 = vmatpush1.bf16.msra.mxu0 %v1677
  %1723 = vmatprep.subr.bf16.mxu0 0
  %1724 = vmatpush1.bf16.msra.mxu0 %v1678
  %1725 = vmatprep.subr.bf16.mxu0 0
  %1726 = vmatpush1.bf16.msra.mxu0 %v1679
  %1727 = vmatprep.subr.bf16.mxu0 0
  %1728 = vmatpush1.bf16.msra.mxu0 %v1680
  %1729 = vmatprep.mubr.bf16.mxu0 %v1554
  %1730 = vmatmul.mubr.bf16.gmra.mrb[0].mxu0 %v1553
  %v1731 = vpop.f32.mrb[0].mxu0
  %v1732 = vadd.f32 %v1459, %v1731
  %v1733 = vpop.f32.mrb[0].mxu0
  %v1734 = vpop.f32.mrb[0].mxu0
  %v1735 = vadd.f32 %v1462, %v1734
  %v1736 = vpop.f32.mrb[0].mxu0
  %1737 = vmatprep.mubr.bf16.mxu0 %v1556
  %1738 = vmatmul.mubr.bf16.gmra.mrb[0].mxu0 %v1555
  %v1739 = vpop.f32.mrb[0].mxu0
  %v1740 = vadd.f32 %v1467, %v1739
  %v1741 = vpop.f32.mrb[0].mxu0
  %v1742 = vpop.f32.mrb[0].mxu0
  %v1743 = vadd.f32 %v1470, %v1742
  %v1744 = vpop.f32.mrb[0].mxu0
  %1745 = vmatprep.mubr.bf16.mxu0 %v1558
  %1746 = vmatmul.mubr.bf16.gmra.mrb[0].mxu0 %v1557
  %v1747 = vpop.f32.mrb[0].mxu0
  %v1748 = vadd.f32 %v1475, %v1747
  %v1749 = vpop.f32.mrb[0].mxu0
  %v1750 = vpop.f32.mrb[0].mxu0
  %v1751 = vadd.f32 %v1478, %v1750
  %v1752 = vpop.f32.mrb[0].mxu0
  %1753 = vmatprep.mubr.bf16.mxu0 %v1560
  %1754 = vmatmul.mubr.bf16.gmra.mrb[0].mxu0 %v1559
  %v1755 = vpop.f32.mrb[0].mxu0
  %v1756 = vadd.f32 %v1483, %v1755
  %v1757 = vpop.f32.mrb[0].mxu0
  %v1758 = vpop.f32.mrb[0].mxu0
  %v1759 = vadd.f32 %v1486, %v1758
  %v1760 = vpop.f32.mrb[0].mxu0
  %1761 = vmatprep.mubr.bf16.mxu0 %v1562
  %1762 = vmatmul.mubr.bf16.gmra.mrb[0].mxu0 %v1561
  %v1763 = vpop.f32.mrb[0].mxu0
  %v1764 = vadd.f32 %v1491, %v1763
  %v1765 = vpop.f32.mrb[0].mxu0
  %v1766 = vpop.f32.mrb[0].mxu0
  %v1767 = vadd.f32 %v1494, %v1766
  %v1768 = vpop.f32.mrb[0].mxu0
  %1769 = vmatprep.mubr.bf16.mxu0 %v1564
  %1770 = vmatmul.mubr.bf16.gmra.mrb[0].mxu0 %v1563
  %v1771 = vpop.f32.mrb[0].mxu0
  %v1772 = vadd.f32 %v1499, %v1771
  %v1773 = vpop.f32.mrb[0].mxu0
  %v1774 = vpop.f32.mrb[0].mxu0
  %v1775 = vadd.f32 %v1502, %v1774
  %v1776 = vpop.f32.mrb[0].mxu0
  %1777 = vmatprep.mubr.bf16.mxu0 %v1566
  %1778 = vmatmul.mubr.bf16.gmra.mrb[0].mxu0 %v1565
  %v1779 = vpop.f32.mrb[0].mxu0
  %v1780 = vadd.f32 %v1507, %v1779
  %v1781 = vpop.f32.mrb[0].mxu0
  %v1782 = vpop.f32.mrb[0].mxu0
  %v1783 = vadd.f32 %v1510, %v1782
  %v1784 = vpop.f32.mrb[0].mxu0
  %1785 = vmatprep.mubr.bf16.mxu0 %v1568
  %1786 = vmatmul.mubr.bf16.gmra.mrb[0].mxu0 %v1567
  %v1787 = vpop.f32.mrb[0].mxu0
  %v1788 = vadd.f32 %v1515, %v1787
  %v1789 = vpop.f32.mrb[0].mxu0
  %v1790 = vpop.f32.mrb[0].mxu0
  %v1791 = vadd.f32 %v1518, %v1790
  %v1792 = vpop.f32.mrb[0].mxu0
  %1793 = vmatprep.mubr.bf16.mxu0 %v1570
  %1794 = vmatmul.mubr.bf16.gmra.mrb[0].mxu0 %v1569
  %v1795 = vpop.f32.mrb[0].mxu0
  %v1796 = vadd.f32 %v1523, %v1795
  %v1797 = vpop.f32.mrb[0].mxu0
  %v1798 = vpop.f32.mrb[0].mxu0
  %v1799 = vadd.f32 %v1526, %v1798
  %v1800 = vpop.f32.mrb[0].mxu0
  %1801 = vmatprep.mubr.bf16.mxu0 %v1572
  %1802 = vmatmul.mubr.bf16.gmra.mrb[0].mxu0 %v1571
  %v1803 = vpop.f32.mrb[0].mxu0
  %v1804 = vadd.f32 %v1531, %v1803
  %v1805 = vpop.f32.mrb[0].mxu0
  %v1806 = vpop.f32.mrb[0].mxu0
  %v1807 = vadd.f32 %v1534, %v1806
  %v1808 = vpop.f32.mrb[0].mxu0
  %1809 = vmatprep.mubr.bf16.mxu0 %v1574
  %1810 = vmatmul.mubr.bf16.gmra.mrb[0].mxu0 %v1573
  %v1811 = vpop.f32.mrb[0].mxu0
  %v1812 = vadd.f32 %v1539, %v1811
  %v1813 = vpop.f32.mrb[0].mxu0
  %v1814 = vpop.f32.mrb[0].mxu0
  %v1815 = vadd.f32 %v1542, %v1814
  %v1816 = vpop.f32.mrb[0].mxu0
  %1817 = vmatprep.mubr.bf16.mxu0 %v1576
  %1818 = vmatmul.mubr.bf16.gmra.mrb[0].mxu0 %v1575
  %v1819 = vpop.f32.mrb[0].mxu0
  %v1820 = vadd.f32 %v1547, %v1819
  %v1821 = vpop.f32.mrb[0].mxu0
  %v1822 = vpop.f32.mrb[0].mxu0
  %v1823 = vadd.f32 %v1550, %v1822
  %v1824 = vpop.f32.mrb[0].mxu0
  %1825 = vdwg.mxu0
  %v1826 = vld [vmem:[#allocation2] sm:$0xfe]
  %v1827 = vld [vmem:[#allocation2 + $0x8] sm:$0xfe]
  %v1828 = vld [vmem:[#allocation2 + $0x20] sm:$0xfe]
  %v1829 = vld [vmem:[#allocation2 + $0x28] sm:$0xfe]
  %v1830 = vld [vmem:[#allocation2 + $0x40] sm:$0xfe]
  %v1831 = vld [vmem:[#allocation2 + $0x48] sm:$0xfe]
  %v1832 = vld [vmem:[#allocation2 + $0x60] sm:$0xfe]
  %v1833 = vld [vmem:[#allocation2 + $0x68] sm:$0xfe]
  %v1834 = vld [vmem:[#allocation2 + $0x80] sm:$0xfe]
  %v1835 = vld [vmem:[#allocation2 + $0x88] sm:$0xfe]
  %v1836 = vld [vmem:[#allocation2 + $0xa0] sm:$0xfe]
  %v1837 = vld [vmem:[#allocation2 + $0xa8] sm:$0xfe]
  %v1838 = vld [vmem:[#allocation2 + $0xc0] sm:$0xfe]
  %v1839 = vld [vmem:[#allocation2 + $0xc8] sm:$0xfe]
  %v1840 = vld [vmem:[#allocation2 + $0xe0] sm:$0xfe]
  %v1841 = vld [vmem:[#allocation2 + $0xe8] sm:$0xfe]
  %v1858 = vunpack.c.l.b16 %v1826
  %v1859 = vunpack.c.l.b16 %v1827
  %v1860 = vunpack.c.h.b16 %v1826
  %v1861 = vunpack.c.h.b16 %v1827
  %v1862 = vunpack.c.l.b16 %v1828
  %v1863 = vunpack.c.l.b16 %v1829
  %v1864 = vunpack.c.h.b16 %v1828
  %v1865 = vunpack.c.h.b16 %v1829
  %v1866 = vunpack.c.l.b16 %v1830
  %v1867 = vunpack.c.l.b16 %v1831
  %v1868 = vunpack.c.h.b16 %v1830
  %v1869 = vunpack.c.h.b16 %v1831
  %v1870 = vunpack.c.l.b16 %v1832
  %v1871 = vunpack.c.l.b16 %v1833
  %v1872 = vunpack.c.h.b16 %v1832
  %v1873 = vunpack.c.h.b16 %v1833
  %v1874 = vunpack.c.l.b16 %v1834
  %v1875 = vunpack.c.l.b16 %v1835
  %v1876 = vunpack.c.h.b16 %v1834
  %v1877 = vunpack.c.h.b16 %v1835
  %v1878 = vunpack.c.l.b16 %v1836
  %v1879 = vunpack.c.l.b16 %v1837
  %v1880 = vunpack.c.h.b16 %v1836
  %v1881 = vunpack.c.h.b16 %v1837
  %v1882 = vunpack.c.l.b16 %v1838
  %v1883 = vunpack.c.l.b16 %v1839
  %v1884 = vunpack.c.h.b16 %v1838
  %v1885 = vunpack.c.h.b16 %v1839
  %v1886 = vunpack.c.l.b16 %v1840
  %v1887 = vunpack.c.l.b16 %v1841
  %v1888 = vunpack.c.h.b16 %v1840
  %v1889 = vunpack.c.h.b16 %v1841
  %v1890 = vpack.c.b16 %v1859, %v1858
  %v1891 = vpack.c.b16 %v1861, %v1860
  %v1892 = vpack.c.b16 %v1863, %v1862
  %v1893 = vpack.c.b16 %v1865, %v1864
  %v1894 = vpack.c.b16 %v1867, %v1866
  %v1895 = vpack.c.b16 %v1869, %v1868
  %v1896 = vpack.c.b16 %v1871, %v1870
  %v1897 = vpack.c.b16 %v1873, %v1872
  %v1898 = vpack.c.b16 %v1875, %v1874
  %v1899 = vpack.c.b16 %v1877, %v1876
  %v1900 = vpack.c.b16 %v1879, %v1878
  %v1901 = vpack.c.b16 %v1881, %v1880
  %v1902 = vpack.c.b16 %v1883, %v1882
  %v1903 = vpack.c.b16 %v1885, %v1884
  %v1904 = vpack.c.b16 %v1887, %v1886
  %v1905 = vpack.c.b16 %v1889, %v1888
  %vm1906 = vcmask 1042432
  %vm1907 = vcmask 1046532
  %vm1908 = vmor %vm1906, %vm1907
  %v1909 = vrot.slane %v1890, 5
  %v1910 = vrot.slane %v1909, 4
  %v1911 = vrot.slane %v1891, 5
  %v1912 = vsel %vm1908, %v1910, %v1911
  %v1913 = vrot.slane %v1911, 4
  %v1914 = vrot.slane %v894, 5
  %v1915 = vsel %vm1908, %v1913, %v1914
  %v1916 = vrot.slane %v1914, 4
  %v1917 = vrot.slane %v895, 5
  %v1918 = vsel %vm1908, %v1916, %v1917
  %v1919 = vrot.slane %v1892, 5
  %v1920 = vrot.slane %v1919, 4
  %v1921 = vrot.slane %v1893, 5
  %v1922 = vsel %vm1908, %v1920, %v1921
  %v1923 = vrot.slane %v1921, 4
  %v1924 = vrot.slane %v898, 5
  %v1925 = vsel %vm1908, %v1923, %v1924
  %v1926 = vrot.slane %v1924, 4
  %v1927 = vrot.slane %v899, 5
  %v1928 = vsel %vm1908, %v1926, %v1927
  %v1929 = vrot.slane %v1894, 5
  %v1930 = vrot.slane %v1929, 4
  %v1931 = vrot.slane %v1895, 5
  %v1932 = vsel %vm1908, %v1930, %v1931
  %v1933 = vrot.slane %v1931, 4
  %v1934 = vrot.slane %v902, 5
  %v1935 = vsel %vm1908, %v1933, %v1934
  %v1936 = vrot.slane %v1934, 4
  %v1937 = vrot.slane %v903, 5
  %v1938 = vsel %vm1908, %v1936, %v1937
  %v1939 = vrot.slane %v1896, 5
  %v1940 = vrot.slane %v1939, 4
  %v1941 = vrot.slane %v1897, 5
  %v1942 = vsel %vm1908, %v1940, %v1941
  %v1943 = vrot.slane %v1941, 4
  %v1944 = vrot.slane %v906, 5
  %v1945 = vsel %vm1908, %v1943, %v1944
  %v1946 = vrot.slane %v1944, 4
  %v1947 = vrot.slane %v907, 5
  %v1948 = vsel %vm1908, %v1946, %v1947
  %v1949 = vrot.slane %v1898, 5
  %v1950 = vrot.slane %v1949, 4
  %v1951 = vrot.slane %v1899, 5
  %v1952 = vsel %vm1908, %v1950, %v1951
  %v1953 = vrot.slane %v1951, 4
  %v1954 = vrot.slane %v910, 5
  %v1955 = vsel %vm1908, %v1953, %v1954
  %v1956 = vrot.slane %v1954, 4
  %v1957 = vrot.slane %v911, 5
  %v1958 = vsel %vm1908, %v1956, %v1957
  %v1959 = vrot.slane %v1900, 5
  %v1960 = vrot.slane %v1959, 4
  %v1961 = vrot.slane %v1901, 5
  %v1962 = vsel %vm1908, %v1960, %v1961
  %v1963 = vrot.slane %v1961, 4
  %v1964 = vrot.slane %v914, 5
  %v1965 = vsel %vm1908, %v1963, %v1964
  %v1966 = vrot.slane %v1964, 4
  %v1967 = vrot.slane %v915, 5
  %v1968 = vsel %vm1908, %v1966, %v1967
  %v1969 = vrot.slane %v1902, 5
  %v1970 = vrot.slane %v1969, 4
  %v1971 = vrot.slane %v1903, 5
  %v1972 = vsel %vm1908, %v1970, %v1971
  %v1973 = vrot.slane %v1971, 4
  %v1974 = vrot.slane %v918, 5
  %v1975 = vsel %vm1908, %v1973, %v1974
  %v1976 = vrot.slane %v1974, 4
  %v1977 = vrot.slane %v919, 5
  %v1978 = vsel %vm1908, %v1976, %v1977
  %v1979 = vrot.slane %v1904, 5
  %v1980 = vrot.slane %v1979, 4
  %v1981 = vrot.slane %v1905, 5
  %v1982 = vsel %vm1908, %v1980, %v1981
  %v1983 = vrot.slane %v1981, 4
  %v1984 = vrot.slane %v922, 5
  %v1985 = vsel %vm1908, %v1983, %v1984
  %v1986 = vrot.slane %v1984, 4
  %v1987 = vrot.slane %v923, 5
  %v1988 = vsel %vm1908, %v1986, %v1987
  %s1989 = scalar_lea.vmem %s4, 256
  %v1990 = vld [vmem:[%s1989] sm:$0xf]
  %v1991 = vld [vmem:[%s1989 + $0x4] sm:$0xf]
  %v1992 = vld [vmem:[%s1989 + $0x8] sm:$0xf]
  %v1993 = vld [vmem:[%s1989 + $0xc] sm:$0xf]
  %v1994 = vld [vmem:[%s1989 + $0x10] sm:$0xf]
  %v1995 = vld [vmem:[%s1989 + $0x14] sm:$0xf]
  %v1996 = vld [vmem:[%s1989 + $0x18] sm:$0xf]
  %v1997 = vld [vmem:[%s1989 + $0x1c] sm:$0xf]
  %v1998 = vld [vmem:[%s1989 + $0x20] sm:$0xf]
  %v1999 = vld [vmem:[%s1989 + $0x24] sm:$0xf]
  %v2000 = vld [vmem:[%s1989 + $0x28] sm:$0xf]
  %v2001 = vld [vmem:[%s1989 + $0x2c] sm:$0xf]
  %v2002 = vld [vmem:[%s1989 + $0x30] sm:$0xf]
  %v2003 = vld [vmem:[%s1989 + $0x34] sm:$0xf]
  %v2004 = vld [vmem:[%s1989 + $0x38] sm:$0xf]
  %v2005 = vld [vmem:[%s1989 + $0x3c] sm:$0xf]
  %v2006 = vld [vmem:[%s1989 + $0x40] sm:$0xf]
  %v2007 = vld [vmem:[%s1989 + $0x44] sm:$0xf]
  %v2008 = vld [vmem:[%s1989 + $0x48] sm:$0xf]
  %v2009 = vld [vmem:[%s1989 + $0x4c] sm:$0xf]
  %v2010 = vld [vmem:[%s1989 + $0x50] sm:$0xf]
  %v2011 = vld [vmem:[%s1989 + $0x54] sm:$0xf]
  %v2012 = vld [vmem:[%s1989 + $0x58] sm:$0xf]
  %v2013 = vld [vmem:[%s1989 + $0x5c] sm:$0xf]
  %v2014 = vld [vmem:[%s1989 + $0x60] sm:$0xf]
  %v2015 = vld [vmem:[%s1989 + $0x64] sm:$0xf]
  %v2016 = vld [vmem:[%s1989 + $0x68] sm:$0xf]
  %v2017 = vld [vmem:[%s1989 + $0x6c] sm:$0xf]
  %v2018 = vld [vmem:[%s1989 + $0x70] sm:$0xf]
  %v2019 = vld [vmem:[%s1989 + $0x74] sm:$0xf]
  %v2020 = vld [vmem:[%s1989 + $0x78] sm:$0xf]
  %v2021 = vld [vmem:[%s1989 + $0x7c] sm:$0xf]
  %v2022 = vunpack.c.l.b16 %v1912
  %v2023 = vunpack.c.h.b16 %v1912
  %v2024 = vunpack.c.l.b16 %v1915
  %v2025 = vunpack.c.h.b16 %v1915
  %v2026 = vunpack.c.l.b16 %v1918
  %v2027 = vunpack.c.h.b16 %v1918
  %v2028 = vunpack.c.l.b16 %v1922
  %v2029 = vunpack.c.h.b16 %v1922
  %v2030 = vunpack.c.l.b16 %v1925
  %v2031 = vunpack.c.h.b16 %v1925
  %v2032 = vunpack.c.l.b16 %v1928
  %v2033 = vunpack.c.h.b16 %v1928
  %v2034 = vunpack.c.l.b16 %v1932
  %v2035 = vunpack.c.h.b16 %v1932
  %v2036 = vunpack.c.l.b16 %v1935
  %v2037 = vunpack.c.h.b16 %v1935
  %v2038 = vunpack.c.l.b16 %v1938
  %v2039 = vunpack.c.h.b16 %v1938
  %v2040 = vunpack.c.l.b16 %v1942
  %v2041 = vunpack.c.h.b16 %v1942
  %v2042 = vunpack.c.l.b16 %v1945
  %v2043 = vunpack.c.h.b16 %v1945
  %v2044 = vunpack.c.l.b16 %v1948
  %v2045 = vunpack.c.h.b16 %v1948
  %v2046 = vunpack.c.l.b16 %v1952
  %v2047 = vunpack.c.h.b16 %v1952
  %v2048 = vunpack.c.l.b16 %v1955
  %v2049 = vunpack.c.h.b16 %v1955
  %v2050 = vunpack.c.l.b16 %v1958
  %v2051 = vunpack.c.h.b16 %v1958
  %v2052 = vunpack.c.l.b16 %v1962
  %v2053 = vunpack.c.h.b16 %v1962
  %v2054 = vunpack.c.l.b16 %v1965
  %v2055 = vunpack.c.h.b16 %v1965
  %v2056 = vunpack.c.l.b16 %v1968
  %v2057 = vunpack.c.h.b16 %v1968
  %v2058 = vunpack.c.l.b16 %v1972
  %v2059 = vunpack.c.h.b16 %v1972
  %v2060 = vunpack.c.l.b16 %v1975
  %v2061 = vunpack.c.h.b16 %v1975
  %v2062 = vunpack.c.l.b16 %v1978
  %v2063 = vunpack.c.h.b16 %v1978
  %v2064 = vunpack.c.l.b16 %v1982
  %v2065 = vunpack.c.h.b16 %v1982
  %v2066 = vunpack.c.l.b16 %v1985
  %v2067 = vunpack.c.h.b16 %v1985
  %v2068 = vunpack.c.l.b16 %v1988
  %v2069 = vunpack.c.h.b16 %v1988
  %v2070 = vpack.c.b16 %v2024, %v2022
  %v2071 = vpack.c.b16 %v2025, %v2023
  %v2072 = vpack.c.b16 %v2028, %v2026
  %v2073 = vpack.c.b16 %v2029, %v2027
  %v2074 = vpack.c.b16 %v2032, %v2030
  %v2075 = vpack.c.b16 %v2033, %v2031
  %v2076 = vpack.c.b16 %v2036, %v2034
  %v2077 = vpack.c.b16 %v2037, %v2035
  %v2078 = vpack.c.b16 %v2040, %v2038
  %v2079 = vpack.c.b16 %v2041, %v2039
  %v2080 = vpack.c.b16 %v2044, %v2042
  %v2081 = vpack.c.b16 %v2045, %v2043
  %v2082 = vpack.c.b16 %v2048, %v2046
  %v2083 = vpack.c.b16 %v2049, %v2047
  %v2084 = vpack.c.b16 %v2052, %v2050
  %v2085 = vpack.c.b16 %v2053, %v2051
  %v2086 = vpack.c.b16 %v2056, %v2054
  %v2087 = vpack.c.b16 %v2057, %v2055
  %v2088 = vpack.c.b16 %v2060, %v2058
  %v2089 = vpack.c.b16 %v2061, %v2059
  %v2090 = vpack.c.b16 %v2064, %v2062
  %v2091 = vpack.c.b16 %v2065, %v2063
  %v2092 = vpack.c.b16 %v2068, %v2066
  %v2093 = vpack.c.b16 %v2069, %v2067
  %v2150 = vunpack.c.l.b16 %v1990
  %v2151 = vunpack.c.l.b16 %v1991
  %v2152 = vunpack.c.l.b16 %v1992
  %v2153 = vunpack.c.l.b16 %v1993
  %v2154 = vunpack.c.l.b16 %v1994
  %v2155 = vunpack.c.l.b16 %v1995
  %v2156 = vunpack.c.l.b16 %v1996
  %v2157 = vunpack.c.l.b16 %v1997
  %v2158 = vunpack.c.l.b16 %v1998
  %v2159 = vunpack.c.l.b16 %v1999
  %v2160 = vunpack.c.l.b16 %v2000
  %v2161 = vunpack.c.l.b16 %v2001
  %v2162 = vunpack.c.l.b16 %v2002
  %v2163 = vunpack.c.l.b16 %v2003
  %v2164 = vunpack.c.l.b16 %v2004
  %v2165 = vunpack.c.l.b16 %v2005
  %v2166 = vunpack.c.l.b16 %v2006
  %v2167 = vunpack.c.l.b16 %v2007
  %v2168 = vunpack.c.l.b16 %v2008
  %v2169 = vunpack.c.l.b16 %v2009
  %v2170 = vunpack.c.l.b16 %v2010
  %v2171 = vunpack.c.l.b16 %v2011
  %v2172 = vunpack.c.l.b16 %v2012
  %v2173 = vunpack.c.l.b16 %v2013
  %v2174 = vunpack.c.l.b16 %v2014
  %v2175 = vunpack.c.l.b16 %v2015
  %v2176 = vunpack.c.l.b16 %v2016
  %v2177 = vunpack.c.l.b16 %v2017
  %v2178 = vunpack.c.l.b16 %v2018
  %v2179 = vunpack.c.l.b16 %v2019
  %v2180 = vunpack.c.l.b16 %v2020
  %v2181 = vunpack.c.l.b16 %v2021
  %v2182 = vpack.c.b16 %v2151, %v2150
  %v2183 = vpack.c.b16 %v2153, %v2152
  %v2184 = vpack.c.b16 %v2155, %v2154
  %v2185 = vpack.c.b16 %v2157, %v2156
  %v2186 = vpack.c.b16 %v2159, %v2158
  %v2187 = vpack.c.b16 %v2161, %v2160
  %v2188 = vpack.c.b16 %v2163, %v2162
  %v2189 = vpack.c.b16 %v2165, %v2164
  %v2190 = vpack.c.b16 %v2167, %v2166
  %v2191 = vpack.c.b16 %v2169, %v2168
  %v2192 = vpack.c.b16 %v2171, %v2170
  %v2193 = vpack.c.b16 %v2173, %v2172
  %v2194 = vpack.c.b16 %v2175, %v2174
  %v2195 = vpack.c.b16 %v2177, %v2176
  %v2196 = vpack.c.b16 %v2179, %v2178
  %v2197 = vpack.c.b16 %v2181, %v2180
  %2214 = vmatprep.subr.bf16.mxu0 0
  %2215 = vmatpush1.bf16.msra.mxu0 %v2182
  %2216 = vmatprep.subr.bf16.mxu0 0
  %2217 = vmatpush1.bf16.msra.mxu0 %v2183
  %2218 = vmatprep.subr.bf16.mxu0 0
  %2219 = vmatpush1.bf16.msra.mxu0 %v2184
  %2220 = vmatprep.subr.bf16.mxu0 0
  %2221 = vmatpush1.bf16.msra.mxu0 %v2185
  %2222 = vmatprep.subr.bf16.mxu0 0
  %2223 = vmatpush1.bf16.msra.mxu0 %v2186
  %2224 = vmatprep.subr.bf16.mxu0 0
  %2225 = vmatpush1.bf16.msra.mxu0 %v2187
  %2226 = vmatprep.subr.bf16.mxu0 0
  %2227 = vmatpush1.bf16.msra.mxu0 %v2188
  %2228 = vmatprep.subr.bf16.mxu0 0
  %2229 = vmatpush1.bf16.msra.mxu0 %v2189
  %2230 = vmatprep.subr.bf16.mxu0 0
  %2231 = vmatpush1.bf16.msra.mxu0 %v2190
  %2232 = vmatprep.subr.bf16.mxu0 0
  %2233 = vmatpush1.bf16.msra.mxu0 %v2191
  %2234 = vmatprep.subr.bf16.mxu0 0
  %2235 = vmatpush1.bf16.msra.mxu0 %v2192
  %2236 = vmatprep.subr.bf16.mxu0 0
  %2237 = vmatpush1.bf16.msra.mxu0 %v2193
  %2238 = vmatprep.subr.bf16.mxu0 0
  %2239 = vmatpush1.bf16.msra.mxu0 %v2194
  %2240 = vmatprep.subr.bf16.mxu0 0
  %2241 = vmatpush1.bf16.msra.mxu0 %v2195
  %2242 = vmatprep.subr.bf16.mxu0 0
  %2243 = vmatpush1.bf16.msra.mxu0 %v2196
  %2244 = vmatprep.subr.bf16.mxu0 0
  %2245 = vmatpush1.bf16.msra.mxu0 %v2197
  %2246 = vmatprep.mubr.bf16.mxu0 %v2071
  %2247 = vmatmul.mubr.bf16.gmra.mrb[0].mxu0 %v2070
  %v2248 = vpop.f32.mrb[0].mxu0
  %v2249 = vadd.f32 0.0, %v2248
  %v2250 = vpop.f32.mrb[0].mxu0
  %v2251 = vpop.f32.mrb[0].mxu0
  %v2252 = vadd.f32 0.0, %v2251
  %v2253 = vpop.f32.mrb[0].mxu0
  %2254 = vmatprep.mubr.bf16.mxu0 %v2073
  %2255 = vmatmul.mubr.bf16.gmra.mrb[0].mxu0 %v2072
  %v2256 = vpop.f32.mrb[0].mxu0
  %v2257 = vadd.f32 0.0, %v2256
  %v2258 = vpop.f32.mrb[0].mxu0
  %v2259 = vpop.f32.mrb[0].mxu0
  %v2260 = vadd.f32 0.0, %v2259
  %v2261 = vpop.f32.mrb[0].mxu0
  %2262 = vmatprep.mubr.bf16.mxu0 %v2075
  %2263 = vmatmul.mubr.bf16.gmra.mrb[0].mxu0 %v2074
  %v2264 = vpop.f32.mrb[0].mxu0
  %v2265 = vadd.f32 0.0, %v2264
  %v2266 = vpop.f32.mrb[0].mxu0
  %v2267 = vpop.f32.mrb[0].mxu0
  %v2268 = vadd.f32 0.0, %v2267
  %v2269 = vpop.f32.mrb[0].mxu0
  %2270 = vmatprep.mubr.bf16.mxu0 %v2077
  %2271 = vmatmul.mubr.bf16.gmra.mrb[0].mxu0 %v2076
  %v2272 = vpop.f32.mrb[0].mxu0
  %v2273 = vadd.f32 0.0, %v2272
  %v2274 = vpop.f32.mrb[0].mxu0
  %v2275 = vpop.f32.mrb[0].mxu0
  %v2276 = vadd.f32 0.0, %v2275
  %v2277 = vpop.f32.mrb[0].mxu0
  %2278 = vmatprep.mubr.bf16.mxu0 %v2079
  %2279 = vmatmul.mubr.bf16.gmra.mrb[0].mxu0 %v2078
  %v2280 = vpop.f32.mrb[0].mxu0
  %v2281 = vadd.f32 0.0, %v2280
  %v2282 = vpop.f32.mrb[0].mxu0
  %v2283 = vpop.f32.mrb[0].mxu0
  %v2284 = vadd.f32 0.0, %v2283
  %v2285 = vpop.f32.mrb[0].mxu0
  %2286 = vmatprep.mubr.bf16.mxu0 %v2081
  %2287 = vmatmul.mubr.bf16.gmra.mrb[0].mxu0 %v2080
  %v2288 = vpop.f32.mrb[0].mxu0
  %v2289 = vadd.f32 0.0, %v2288
  %v2290 = vpop.f32.mrb[0].mxu0
  %v2291 = vpop.f32.mrb[0].mxu0
  %v2292 = vadd.f32 0.0, %v2291
  %v2293 = vpop.f32.mrb[0].mxu0
  %2294 = vmatprep.mubr.bf16.mxu0 %v2083
  %2295 = vmatmul.mubr.bf16.gmra.mrb[0].mxu0 %v2082
  %v2296 = vpop.f32.mrb[0].mxu0
  %v2297 = vadd.f32 0.0, %v2296
  %v2298 = vpop.f32.mrb[0].mxu0
  %v2299 = vpop.f32.mrb[0].mxu0
  %v2300 = vadd.f32 0.0, %v2299
  %v2301 = vpop.f32.mrb[0].mxu0
  %2302 = vmatprep.mubr.bf16.mxu0 %v2085
  %2303 = vmatmul.mubr.bf16.gmra.mrb[0].mxu0 %v2084
  %v2304 = vpop.f32.mrb[0].mxu0
  %v2305 = vadd.f32 0.0, %v2304
  %v2306 = vpop.f32.mrb[0].mxu0
  %v2307 = vpop.f32.mrb[0].mxu0
  %v2308 = vadd.f32 0.0, %v2307
  %v2309 = vpop.f32.mrb[0].mxu0
  %2310 = vmatprep.mubr.bf16.mxu0 %v2087
  %2311 = vmatmul.mubr.bf16.gmra.mrb[0].mxu0 %v2086
  %v2312 = vpop.f32.mrb[0].mxu0
  %v2313 = vadd.f32 0.0, %v2312
  %v2314 = vpop.f32.mrb[0].mxu0
  %v2315 = vpop.f32.mrb[0].mxu0
  %v2316 = vadd.f32 0.0, %v2315
  %v2317 = vpop.f32.mrb[0].mxu0
  %2318 = vmatprep.mubr.bf16.mxu0 %v2089
  %2319 = vmatmul.mubr.bf16.gmra.mrb[0].mxu0 %v2088
  %v2320 = vpop.f32.mrb[0].mxu0
  %v2321 = vadd.f32 0.0, %v2320
  %v2322 = vpop.f32.mrb[0].mxu0
  %v2323 = vpop.f32.mrb[0].mxu0
  %v2324 = vadd.f32 0.0, %v2323
  %v2325 = vpop.f32.mrb[0].mxu0
  %2326 = vmatprep.mubr.bf16.mxu0 %v2091
  %2327 = vmatmul.mubr.bf16.gmra.mrb[0].mxu0 %v2090
  %v2328 = vpop.f32.mrb[0].mxu0
  %v2329 = vadd.f32 0.0, %v2328
  %v2330 = vpop.f32.mrb[0].mxu0
  %v2331 = vpop.f32.mrb[0].mxu0
  %v2332 = vadd.f32 0.0, %v2331
  %v2333 = vpop.f32.mrb[0].mxu0
  %2334 = vmatprep.mubr.bf16.mxu0 %v2093
  %2335 = vmatmul.mubr.bf16.gmra.mrb[0].mxu0 %v2092
  %v2336 = vpop.f32.mrb[0].mxu0
  %v2337 = vadd.f32 0.0, %v2336
  %v2338 = vpop.f32.mrb[0].mxu0
  %v2339 = vpop.f32.mrb[0].mxu0
  %v2340 = vadd.f32 0.0, %v2339
  %v2341 = vpop.f32.mrb[0].mxu0
  %2342 = vdwg.mxu0
  %v2343 = vadd.f32 %v1732, %v2249
  %v2344 = vadd.f32 %v1735, %v2252
  %v2345 = vadd.f32 %v1740, %v2257
  %v2346 = vadd.f32 %v1743, %v2260
  %v2347 = vadd.f32 %v1748, %v2265
  %v2348 = vadd.f32 %v1751, %v2268
  %v2349 = vadd.f32 %v1756, %v2273
  %v2350 = vadd.f32 %v1759, %v2276
  %v2351 = vadd.f32 %v1764, %v2281
  %v2352 = vadd.f32 %v1767, %v2284
  %v2353 = vadd.f32 %v1772, %v2289
  %v2354 = vadd.f32 %v1775, %v2292
  %v2355 = vadd.f32 %v1780, %v2297
  %v2356 = vadd.f32 %v1783, %v2300
  %v2357 = vadd.f32 %v1788, %v2305
  %v2358 = vadd.f32 %v1791, %v2308
  %v2359 = vadd.f32 %v1796, %v2313
  %v2360 = vadd.f32 %v1799, %v2316
  %v2361 = vadd.f32 %v1804, %v2321
  %v2362 = vadd.f32 %v1807, %v2324
  %v2363 = vadd.f32 %v1812, %v2329
  %v2364 = vadd.f32 %v1815, %v2332
  %v2365 = vadd.f32 %v1820, %v2337
  %v2366 = vadd.f32 %v1823, %v2340
  %v2367 = vadd.f32 %v2343, %v2344
  %v2368 = vadd.f32 %v2367, %v2345
  %v2369 = vadd.f32 %v2368, %v2346
  %v2370 = vadd.f32 %v2369, %v2347
  %v2371 = vadd.f32 %v2370, %v2348
  %v2372 = vadd.f32 %v2371, %v2349
  %v2373 = vadd.f32 %v2372, %v2350
  %v2374 = vadd.f32 %v2373, %v2351
  %v2375 = vadd.f32 %v2374, %v2352
  %v2376 = vadd.f32 %v2375, %v2353
  %v2377 = vadd.f32 %v2376, %v2354
  %v2378 = vadd.f32 %v2377, %v2355
  %v2379 = vadd.f32 %v2378, %v2356
  %v2380 = vadd.f32 %v2379, %v2357
  %v2381 = vadd.f32 %v2380, %v2358
  %v2382 = vadd.f32 %v2381, %v2359
  %v2383 = vadd.f32 %v2382, %v2360
  %v2384 = vadd.f32 %v2383, %v2361
  %v2385 = vadd.f32 %v2384, %v2362
  %v2386 = vadd.f32 %v2385, %v2363
  %v2387 = vadd.f32 %v2386, %v2364
  %v2388 = vadd.f32 %v2387, %v2365
  %v2389 = vadd.f32 %v2388, %v2366
  %v2390 = vrot.slane %v2389, 4
  %v2391 = vadd.f32 %v2389, %v2390
  %v2392 = vrot.slane %v2391, 2
  %v2393 = vadd.f32 %v2391, %v2392
  %v2394 = vrot.slane %v2393, 1
  %v2395 = vadd.f32 %v2393, %v2394
  %v2396 = vmul.f32 %v2343, %v2343
  %v2397 = vmul.f32 %v2344, %v2344
  %v2398 = vmul.f32 %v2345, %v2345
  %v2399 = vmul.f32 %v2346, %v2346
  %v2400 = vmul.f32 %v2347, %v2347
  %v2401 = vmul.f32 %v2348, %v2348
  %v2402 = vmul.f32 %v2349, %v2349
  %v2403 = vmul.f32 %v2350, %v2350
  %v2404 = vmul.f32 %v2351, %v2351
  %v2405 = vmul.f32 %v2352, %v2352
  %v2406 = vmul.f32 %v2353, %v2353
  %v2407 = vmul.f32 %v2354, %v2354
  %v2408 = vmul.f32 %v2355, %v2355
  %v2409 = vmul.f32 %v2356, %v2356
  %v2410 = vmul.f32 %v2357, %v2357
  %v2411 = vmul.f32 %v2358, %v2358
  %v2412 = vmul.f32 %v2359, %v2359
  %v2413 = vmul.f32 %v2360, %v2360
  %v2414 = vmul.f32 %v2361, %v2361
  %v2415 = vmul.f32 %v2362, %v2362
  %v2416 = vmul.f32 %v2363, %v2363
  %v2417 = vmul.f32 %v2364, %v2364
  %v2418 = vmul.f32 %v2365, %v2365
  %v2419 = vmul.f32 %v2366, %v2366
  %v2420 = vadd.f32 %v2396, %v2397
  %v2421 = vadd.f32 %v2420, %v2398
  %v2422 = vadd.f32 %v2421, %v2399
  %v2423 = vadd.f32 %v2422, %v2400
  %v2424 = vadd.f32 %v2423, %v2401
  %v2425 = vadd.f32 %v2424, %v2402
  %v2426 = vadd.f32 %v2425, %v2403
  %v2427 = vadd.f32 %v2426, %v2404
  %v2428 = vadd.f32 %v2427, %v2405
  %v2429 = vadd.f32 %v2428, %v2406
  %v2430 = vadd.f32 %v2429, %v2407
  %v2431 = vadd.f32 %v2430, %v2408
  %v2432 = vadd.f32 %v2431, %v2409
  %v2433 = vadd.f32 %v2432, %v2410
  %v2434 = vadd.f32 %v2433, %v2411
  %v2435 = vadd.f32 %v2434, %v2412
  %v2436 = vadd.f32 %v2435, %v2413
  %v2437 = vadd.f32 %v2436, %v2414
  %v2438 = vadd.f32 %v2437, %v2415
  %v2439 = vadd.f32 %v2438, %v2416
  %v2440 = vadd.f32 %v2439, %v2417
  %v2441 = vadd.f32 %v2440, %v2418
  %v2442 = vadd.f32 %v2441, %v2419
  %v2443 = vrot.slane %v2442, 4
  %v2444 = vadd.f32 %v2442, %v2443
  %v2445 = vrot.slane %v2444, 2
  %v2446 = vadd.f32 %v2444, %v2445
  %v2447 = vrot.slane %v2446, 1
  %v2448 = vadd.f32 %v2446, %v2447
  %vm2449 = vcmask 1040384
  %v2450 = vsel %vm2449, %v2395, %v2448
  %v2451 = vld [vmem:[%s7] sm:$0xff]
  %v2452 = vld [vmem:[%s7 + $0x8] sm:$0xff]
  %v2453 = vld [vmem:[%s7 + $0x10] sm:$0xff]
  %v2454 = vld [vmem:[%s7 + $0x18] sm:$0xff]
  %v2455 = vld [vmem:[%s7 + $0x20] sm:$0xff]
  %v2456 = vld [vmem:[%s7 + $0x28] sm:$0xff]
  %v2457 = vld [vmem:[%s7 + $0x30] sm:$0xff]
  %v2458 = vld [vmem:[%s7 + $0x38] sm:$0xff]
  %v2459 = vld [vmem:[%s7 + $0x40] sm:$0xff]
  %v2460 = vld [vmem:[%s7 + $0x48] sm:$0xff]
  %v2461 = vld [vmem:[%s7 + $0x50] sm:$0xff]
  %v2462 = vld [vmem:[%s7 + $0x58] sm:$0xff]
  %v2463 = vld [vmem:[%s7 + $0x60] sm:$0xff]
  %v2464 = vld [vmem:[%s7 + $0x68] sm:$0xff]
  %v2465 = vld [vmem:[%s7 + $0x70] sm:$0xff]
  %v2466 = vld [vmem:[%s7 + $0x78] sm:$0xff]
  %2467 = vmatprep.subr.mxu0 0.0
  %2468 = vmatpush1.msra.mxu0 %v2451
  %2469 = vmatprep.subr.mxu0 0.0
  %2470 = vmatpush1.msra.mxu0 %v2452
  %2471 = vmatprep.subr.mxu0 0.0
  %2472 = vmatpush1.msra.mxu0 %v2453
  %2473 = vmatprep.subr.mxu0 0.0
  %2474 = vmatpush1.msra.mxu0 %v2454
  %2475 = vmatprep.subr.mxu0 0.0
  %2476 = vmatpush1.msra.mxu0 %v2455
  %2477 = vmatprep.subr.mxu0 0.0
  %2478 = vmatpush1.msra.mxu0 %v2456
  %2479 = vmatprep.subr.mxu0 0.0
  %2480 = vmatpush1.msra.mxu0 %v2457
  %2481 = vmatprep.subr.mxu0 0.0
  %2482 = vmatpush1.msra.mxu0 %v2458
  %2483 = vmatprep.subr.mxu0 0.0
  %2484 = vmatpush1.msra.mxu0 %v2459
  %2485 = vmatprep.subr.mxu0 0.0
  %2486 = vmatpush1.msra.mxu0 %v2460
  %2487 = vmatprep.subr.mxu0 0.0
  %2488 = vmatpush1.msra.mxu0 %v2461
  %2489 = vmatprep.subr.mxu0 0.0
  %2490 = vmatpush1.msra.mxu0 %v2462
  %2491 = vmatprep.subr.mxu0 0.0
  %2492 = vmatpush1.msra.mxu0 %v2463
  %2493 = vmatprep.subr.mxu0 0.0
  %2494 = vmatpush1.msra.mxu0 %v2464
  %2495 = vmatprep.subr.mxu0 0.0
  %2496 = vmatpush1.msra.mxu0 %v2465
  %2497 = vmatprep.subr.mxu0 0.0
  %2498 = vmatpush1.msra.mxu0 %v2466
  %2499 = vmatprep.subr.mxu0 0.0
  %2500 = vmatpush1.msra.mxu0 0.0
  %2501 = vmatprep.subr.mxu0 0.0
  %2502 = vmatpush1.msra.mxu0 0.0
  %2503 = vmatprep.subr.mxu0 0.0
  %2504 = vmatpush1.msra.mxu0 0.0
  %2505 = vmatprep.subr.mxu0 0.0
  %2506 = vmatpush1.msra.mxu0 0.0
  %2507 = vmatprep.subr.mxu0 0.0
  %2508 = vmatpush1.msra.mxu0 0.0
  %2509 = vmatprep.subr.mxu0 0.0
  %2510 = vmatpush1.msra.mxu0 0.0
  %2511 = vmatprep.subr.mxu0 0.0
  %2512 = vmatpush1.msra.mxu0 0.0
  %2513 = vmatprep.subr.mxu0 0.0
  %2514 = vmatpush1.msra.mxu0 0.0
  %2515 = vmatprep.subr.mxu0 0.0
  %2516 = vmatpush1.msra.mxu0 0.0
  %2517 = vmatprep.subr.mxu0 0.0
  %2518 = vmatpush1.msra.mxu0 0.0
  %2519 = vmatprep.subr.mxu0 0.0
  %2520 = vmatpush1.msra.mxu0 0.0
  %2521 = vmatprep.subr.mxu0 0.0
  %2522 = vmatpush1.msra.mxu0 0.0
  %2523 = vmatprep.subr.mxu0 0.0
  %2524 = vmatpush1.msra.mxu0 0.0
  %2525 = vmatprep.subr.mxu0 0.0
  %2526 = vmatpush1.msra.mxu0 0.0
  %2527 = vmatprep.subr.mxu0 0.0
  %2528 = vmatpush1.msra.mxu0 0.0
  %2529 = vmatprep.subr.mxu0 0.0
  %2530 = vmatpush1.msra.mxu0 0.0
  %2531 = vmatprep.mubr.f32.mxu0 0.0
  %2532 = vmatmul.mubr.f32.gmra.mrb[0].mxu0 %v2450
  %v2533 = vpop.f32.mrb[0].mxu0
  %v2534 = vadd.f32 0.0, %v2533
  %v2535 = vpop.f32.mrb[0].mxu0
  %2536 = vdwg.mxu0
  %v2537 = vmul.f32 %v2534, 0.00021701389
  %v2538 = vmul.f32 %v2537, %v2537
  %v2540 = vrot.slane %v2538, 7
  %v2542 = vsub.f32 %v2537, %v2540
  %v2543 = vld [vmem:[%s5] sm:$0x1]
  %v2544 = vadd.f32 %v2542, 1e-05
  %v2545 = vrsqrt.pop %v2544
  %v2548 = vunpack.c.l.s4 1966171168
  %v2549 = vunpack.c.0.s8 %v2548
  %v2550 = vlaneseq
  %v2551 = vshrl.u32 %v2550, 7
  %v2552 = vsub.s32 %v2549, %v2551
  %v2553 = vrot.slane %v2545, %v2552
  %v2554 = vcombine.high %v2553, %v2553
  %v2556 = vunpack.c.l.s4 1966171168
  %v2557 = vunpack.c.0.s8 %v2556
  %v2558 = vlaneseq
  %v2559 = vshrl.u32 %v2558, 7
  %v2560 = vsub.s32 %v2557, %v2559
  %v2561 = vrot.slane %v2554, %v2560
  %v2563 = vmul.f32 %v2543, %v2561
  %v2564 = vld [vmem:[%s6] sm:$0x1]
  %v2565 = vmul.f32 %v2537, %v2563
  %v2566 = vsub.f32 %v2564, %v2565
  %v2568 = vlaneseq
  %v2569 = vshrl.u32 %v2568, 7
  %v2570 = vsub.s32 0, %v2569
  %v2571 = vrot.slane %v2566, %v2570
  %v2573 = vsel %vm2449, %v2563, %v2571
  %v2574 = vld [vmem:[%s8] sm:$0xf]
  %vm2575 = vcmask 31744
  %v2577 = vsel %vm2575, %v2573, 0
  %vm2579 = vcmask 1043456
  %v2581 = vsel %vm2579, %v2574, 0
  %2583 = vmatprep.subr.mxu0 0.0
  %2584 = vmatpush1.msra.mxu0 %v2581
  %2585 = vmatprep.subr.mxu0 0.0
  %2586 = vmatpush1.msra.mxu0 0.0
  %2587 = vmatprep.subr.mxu0 0.0
  %2588 = vmatpush1.msra.mxu0 0.0
  %2589 = vmatprep.subr.mxu0 0.0
  %2590 = vmatpush1.msra.mxu0 0.0
  %2591 = vmatprep.subr.mxu0 0.0
  %2592 = vmatpush1.msra.mxu0 0.0
  %2593 = vmatprep.subr.mxu0 0.0
  %2594 = vmatpush1.msra.mxu0 0.0
  %2595 = vmatprep.subr.mxu0 0.0
  %2596 = vmatpush1.msra.mxu0 0.0
  %2597 = vmatprep.subr.mxu0 0.0
  %2598 = vmatpush1.msra.mxu0 0.0
  %2599 = vmatprep.subr.mxu0 0.0
  %2600 = vmatpush1.msra.mxu0 0.0
  %2601 = vmatprep.subr.mxu0 0.0
  %2602 = vmatpush1.msra.mxu0 0.0
  %2603 = vmatprep.subr.mxu0 0.0
  %2604 = vmatpush1.msra.mxu0 0.0
  %2605 = vmatprep.subr.mxu0 0.0
  %2606 = vmatpush1.msra.mxu0 0.0
  %2607 = vmatprep.subr.mxu0 0.0
  %2608 = vmatpush1.msra.mxu0 0.0
  %2609 = vmatprep.subr.mxu0 0.0
  %2610 = vmatpush1.msra.mxu0 0.0
  %2611 = vmatprep.subr.mxu0 0.0
  %2612 = vmatpush1.msra.mxu0 0.0
  %2613 = vmatprep.subr.mxu0 0.0
  %2614 = vmatpush1.msra.mxu0 0.0
  %2615 = vmatprep.subr.mxu0 0.0
  %2616 = vmatpush1.msra.mxu0 0.0
  %2617 = vmatprep.subr.mxu0 0.0
  %2618 = vmatpush1.msra.mxu0 0.0
  %2619 = vmatprep.subr.mxu0 0.0
  %2620 = vmatpush1.msra.mxu0 0.0
  %2621 = vmatprep.subr.mxu0 0.0
  %2622 = vmatpush1.msra.mxu0 0.0
  %2623 = vmatprep.subr.mxu0 0.0
  %2624 = vmatpush1.msra.mxu0 0.0
  %2625 = vmatprep.subr.mxu0 0.0
  %2626 = vmatpush1.msra.mxu0 0.0
  %2627 = vmatprep.subr.mxu0 0.0
  %2628 = vmatpush1.msra.mxu0 0.0
  %2629 = vmatprep.subr.mxu0 0.0
  %2630 = vmatpush1.msra.mxu0 0.0
  %2631 = vmatprep.subr.mxu0 0.0
  %2632 = vmatpush1.msra.mxu0 0.0
  %2633 = vmatprep.subr.mxu0 0.0
  %2634 = vmatpush1.msra.mxu0 0.0
  %2635 = vmatprep.subr.mxu0 0.0
  %2636 = vmatpush1.msra.mxu0 0.0
  %2637 = vmatprep.subr.mxu0 0.0
  %2638 = vmatpush1.msra.mxu0 0.0
  %2639 = vmatprep.subr.mxu0 0.0
  %2640 = vmatpush1.msra.mxu0 0.0
  %2641 = vmatprep.subr.mxu0 0.0
  %2642 = vmatpush1.msra.mxu0 0.0
  %2643 = vmatprep.subr.mxu0 0.0
  %2644 = vmatpush1.msra.mxu0 0.0
  %2645 = vmatprep.subr.mxu0 0.0
  %2646 = vmatpush1.msra.mxu0 0.0
  %2647 = vmatprep.mubr.f32.mxu0 0.0
  %2648 = vmatmul.mubr.f32.gmra.mrb[0].mxu0 %v2577
  %v2649 = vpop.f32.mrb[0].mxu0
  %v2650 = vadd.f32 0.0, %v2649
  %v2651 = vpop.f32.mrb[0].mxu0
  %2652 = vdwg.mxu0
  %v2653 = vlaneseq
  %v2654 = vshrl.u32 %v2653, 7
  %v2655 = vsub.s32 0, %v2654
  %v2656 = vrot.slane %v2650, %v2655
  %v2657 = vmul.f32 %v2343, %v2656
  %v2658 = vmul.f32 %v2344, %v2656
  %v2659 = vmul.f32 %v2345, %v2656
  %v2660 = vmul.f32 %v2346, %v2656
  %v2661 = vmul.f32 %v2347, %v2656
  %v2662 = vmul.f32 %v2348, %v2656
  %v2663 = vmul.f32 %v2349, %v2656
  %v2664 = vmul.f32 %v2350, %v2656
  %v2665 = vmul.f32 %v2351, %v2656
  %v2666 = vmul.f32 %v2352, %v2656
  %v2667 = vmul.f32 %v2353, %v2656
  %v2668 = vmul.f32 %v2354, %v2656
  %v2669 = vmul.f32 %v2355, %v2656
  %v2670 = vmul.f32 %v2356, %v2656
  %v2671 = vmul.f32 %v2357, %v2656
  %v2672 = vmul.f32 %v2358, %v2656
  %v2673 = vmul.f32 %v2359, %v2656
  %v2674 = vmul.f32 %v2360, %v2656
  %v2675 = vmul.f32 %v2361, %v2656
  %v2676 = vmul.f32 %v2362, %v2656
  %v2677 = vmul.f32 %v2363, %v2656
  %v2678 = vmul.f32 %v2364, %v2656
  %v2679 = vmul.f32 %v2365, %v2656
  %v2680 = vmul.f32 %v2366, %v2656
  %v2681 = vlaneseq
  %v2682 = vshrl.u32 %v2681, 7
  %v2683 = vsub.s32 1, %v2682
  %v2684 = vrot.slane %v2650, %v2683
  %v2685 = vadd.f32 %v2657, %v2684
  %v2686 = vadd.f32 %v2658, %v2684
  %v2687 = vadd.f32 %v2659, %v2684
  %v2688 = vadd.f32 %v2660, %v2684
  %v2689 = vadd.f32 %v2661, %v2684
  %v2690 = vadd.f32 %v2662, %v2684
  %v2691 = vadd.f32 %v2663, %v2684
  %v2692 = vadd.f32 %v2664, %v2684
  %v2693 = vadd.f32 %v2665, %v2684
  %v2694 = vadd.f32 %v2666, %v2684
  %v2695 = vadd.f32 %v2667, %v2684
  %v2696 = vadd.f32 %v2668, %v2684
  %v2697 = vadd.f32 %v2669, %v2684
  %v2698 = vadd.f32 %v2670, %v2684
  %v2699 = vadd.f32 %v2671, %v2684
  %v2700 = vadd.f32 %v2672, %v2684
  %v2701 = vadd.f32 %v2673, %v2684
  %v2702 = vadd.f32 %v2674, %v2684
  %v2703 = vadd.f32 %v2675, %v2684
  %v2704 = vadd.f32 %v2676, %v2684
  %v2705 = vadd.f32 %v2677, %v2684
  %v2706 = vadd.f32 %v2678, %v2684
  %v2707 = vadd.f32 %v2679, %v2684
  %v2708 = vadd.f32 %v2680, %v2684
  %v2709 = vmax.f32 %v2685, 0.0
  %v2710 = vmax.f32 %v2686, 0.0
  %v2711 = vmax.f32 %v2687, 0.0
  %v2712 = vmax.f32 %v2688, 0.0
  %v2713 = vmax.f32 %v2689, 0.0
  %v2714 = vmax.f32 %v2690, 0.0
  %v2715 = vmax.f32 %v2691, 0.0
  %v2716 = vmax.f32 %v2692, 0.0
  %v2717 = vmax.f32 %v2693, 0.0
  %v2718 = vmax.f32 %v2694, 0.0
  %v2719 = vmax.f32 %v2695, 0.0
  %v2720 = vmax.f32 %v2696, 0.0
  %v2721 = vmax.f32 %v2697, 0.0
  %v2722 = vmax.f32 %v2698, 0.0
  %v2723 = vmax.f32 %v2699, 0.0
  %v2724 = vmax.f32 %v2700, 0.0
  %v2725 = vmax.f32 %v2701, 0.0
  %v2726 = vmax.f32 %v2702, 0.0
  %v2727 = vmax.f32 %v2703, 0.0
  %v2728 = vmax.f32 %v2704, 0.0
  %v2729 = vmax.f32 %v2705, 0.0
  %v2730 = vmax.f32 %v2706, 0.0
  %v2731 = vmax.f32 %v2707, 0.0
  %v2732 = vmax.f32 %v2708, 0.0
  %2733 = vst [vmem:[#allocation3] sm:$0xf] 0
  %2734 = vst [vmem:[#allocation3 + $0x4] sm:$0xf] 0
  %2735 = vst [vmem:[#allocation3 + $0x8] sm:$0xf] 0
  %s2736 = scalar_lea.vmem [#allocation3], 108
  %2737 = vst [vmem:[%s2736] sm:$0xf] 0
  %2738 = vst [vmem:[%s2736 + $0x4] sm:$0xf] 0
  %2739 = vst [vmem:[%s2736 + $0x8] sm:$0xf] 0
  %v2740 = vpack.c.bf16 %v2710, %v2709
  %v2741 = vpack.c.bf16 %v2711, %v2711
  %v2742 = vpack.c.bf16 %v2713, %v2712
  %v2743 = vpack.c.bf16 %v2714, %v2714
  %v2744 = vpack.c.bf16 %v2716, %v2715
  %v2745 = vpack.c.bf16 %v2717, %v2717
  %v2746 = vpack.c.bf16 %v2719, %v2718
  %v2747 = vpack.c.bf16 %v2720, %v2720
  %v2748 = vpack.c.bf16 %v2722, %v2721
  %v2749 = vpack.c.bf16 %v2723, %v2723
  %v2750 = vpack.c.bf16 %v2725, %v2724
  %v2751 = vpack.c.bf16 %v2726, %v2726
  %v2752 = vpack.c.bf16 %v2728, %v2727
  %v2753 = vpack.c.bf16 %v2729, %v2729
  %v2754 = vpack.c.bf16 %v2731, %v2730
  %v2755 = vpack.c.bf16 %v2732, %v2732
  %v2772 = vunpack.c.l.b16 %v2740
  %v2773 = vunpack.c.h.b16 %v2740
  %v2774 = vunpack.c.l.b16 %v2741
  %v2775 = vunpack.c.l.b16 %v2742
  %v2776 = vunpack.c.h.b16 %v2742
  %v2777 = vunpack.c.l.b16 %v2743
  %v2778 = vunpack.c.l.b16 %v2744
  %v2779 = vunpack.c.h.b16 %v2744
  %v2780 = vunpack.c.l.b16 %v2745
  %v2781 = vunpack.c.l.b16 %v2746
  %v2782 = vunpack.c.h.b16 %v2746
  %v2783 = vunpack.c.l.b16 %v2747
  %v2784 = vunpack.c.l.b16 %v2748
  %v2785 = vunpack.c.h.b16 %v2748
  %v2786 = vunpack.c.l.b16 %v2749
  %v2787 = vunpack.c.l.b16 %v2750
  %v2788 = vunpack.c.h.b16 %v2750
  %v2789 = vunpack.c.l.b16 %v2751
  %v2790 = vunpack.c.l.b16 %v2752
  %v2791 = vunpack.c.h.b16 %v2752
  %v2792 = vunpack.c.l.b16 %v2753
  %v2793 = vunpack.c.l.b16 %v2754
  %v2794 = vunpack.c.h.b16 %v2754
  %v2795 = vunpack.c.l.b16 %v2755
  %v2796 = vpack.c.b16 %v2772, %v2772
  %v2797 = vpack.c.b16 %v2773, %v2773
  %v2798 = vpack.c.b16 %v2774, %v2774
  %v2799 = vpack.c.b16 %v2775, %v2775
  %v2800 = vpack.c.b16 %v2776, %v2776
  %v2801 = vpack.c.b16 %v2777, %v2777
  %v2802 = vpack.c.b16 %v2778, %v2778
  %v2803 = vpack.c.b16 %v2779, %v2779
  %v2804 = vpack.c.b16 %v2780, %v2780
  %v2805 = vpack.c.b16 %v2781, %v2781
  %v2806 = vpack.c.b16 %v2782, %v2782
  %v2807 = vpack.c.b16 %v2783, %v2783
  %v2808 = vpack.c.b16 %v2784, %v2784
  %v2809 = vpack.c.b16 %v2785, %v2785
  %v2810 = vpack.c.b16 %v2786, %v2786
  %v2811 = vpack.c.b16 %v2787, %v2787
  %v2812 = vpack.c.b16 %v2788, %v2788
  %v2813 = vpack.c.b16 %v2789, %v2789
  %v2814 = vpack.c.b16 %v2790, %v2790
  %v2815 = vpack.c.b16 %v2791, %v2791
  %v2816 = vpack.c.b16 %v2792, %v2792
  %v2817 = vpack.c.b16 %v2793, %v2793
  %v2818 = vpack.c.b16 %v2794, %v2794
  %v2819 = vpack.c.b16 %v2795, %v2795
  %s2844 = scalar_lea.vmem [#allocation3], 12
  %2845 = vst [vmem:[%s2844] sm:$0xf] %v2796
  %2846 = vst [vmem:[%s2844 + $0x4] sm:$0xf] %v2797
  %2847 = vst [vmem:[%s2844 + $0x8] sm:$0xf] %v2798
  %2848 = vst [vmem:[%s2844 + $0xc] sm:$0xf] %v2799
  %2849 = vst [vmem:[%s2844 + $0x10] sm:$0xf] %v2800
  %2850 = vst [vmem:[%s2844 + $0x14] sm:$0xf] %v2801
  %2851 = vst [vmem:[%s2844 + $0x18] sm:$0xf] %v2802
  %2852 = vst [vmem:[%s2844 + $0x1c] sm:$0xf] %v2803
  %2853 = vst [vmem:[%s2844 + $0x20] sm:$0xf] %v2804
  %2854 = vst [vmem:[%s2844 + $0x24] sm:$0xf] %v2805
  %2855 = vst [vmem:[%s2844 + $0x28] sm:$0xf] %v2806
  %2856 = vst [vmem:[%s2844 + $0x2c] sm:$0xf] %v2807
  %2857 = vst [vmem:[%s2844 + $0x30] sm:$0xf] %v2808
  %2858 = vst [vmem:[%s2844 + $0x34] sm:$0xf] %v2809
  %2859 = vst [vmem:[%s2844 + $0x38] sm:$0xf] %v2810
  %2860 = vst [vmem:[%s2844 + $0x3c] sm:$0xf] %v2811
  %2861 = vst [vmem:[%s2844 + $0x40] sm:$0xf] %v2812
  %2862 = vst [vmem:[%s2844 + $0x44] sm:$0xf] %v2813
  %2863 = vst [vmem:[%s2844 + $0x48] sm:$0xf] %v2814
  %2864 = vst [vmem:[%s2844 + $0x4c] sm:$0xf] %v2815
  %2865 = vst [vmem:[%s2844 + $0x50] sm:$0xf] %v2816
  %2866 = vst [vmem:[%s2844 + $0x54] sm:$0xf] %v2817
  %2867 = vst [vmem:[%s2844 + $0x58] sm:$0xf] %v2818
  %2868 = vst [vmem:[%s2844 + $0x5c] sm:$0xf] %v2819
  %v2869 = vld [vmem:[#allocation3] sm:$0xf]
  %v2870 = vld [vmem:[#allocation3 + $0x4] sm:$0xf]
  %v2871 = vld [vmem:[#allocation3 + $0xc] sm:$0xf]
  %v2872 = vld [vmem:[#allocation3 + $0x10] sm:$0xf]
  %v2873 = vld [vmem:[#allocation3 + $0x18] sm:$0xf]
  %v2874 = vld [vmem:[#allocation3 + $0x1c] sm:$0xf]
  %v2875 = vld [vmem:[#allocation3 + $0x24] sm:$0xf]
  %v2876 = vld [vmem:[#allocation3 + $0x28] sm:$0xf]
  %v2877 = vld [vmem:[#allocation3 + $0x30] sm:$0xf]
  %v2878 = vld [vmem:[#allocation3 + $0x34] sm:$0xf]
  %v2879 = vld [vmem:[#allocation3 + $0x3c] sm:$0xf]
  %v2880 = vld [vmem:[#allocation3 + $0x40] sm:$0xf]
  %v2881 = vld [vmem:[#allocation3 + $0x48] sm:$0xf]
  %v2882 = vld [vmem:[#allocation3 + $0x4c] sm:$0xf]
  %v2883 = vld [vmem:[#allocation3 + $0x54] sm:$0xf]
  %v2884 = vld [vmem:[#allocation3 + $0x58] sm:$0xf]
  %v2885 = vld [vmem:[%s9] sm:$0xf]
  %v2886 = vld [vmem:[%s9 + $0x4] sm:$0xf]
  %v2887 = vld [vmem:[%s9 + $0x8] sm:$0xf]
  %v2888 = vld [vmem:[%s9 + $0xc] sm:$0xf]
  %v2889 = vld [vmem:[%s9 + $0x10] sm:$0xf]
  %v2890 = vld [vmem:[%s9 + $0x14] sm:$0xf]
  %v2891 = vld [vmem:[%s9 + $0x18] sm:$0xf]
  %v2892 = vld [vmem:[%s9 + $0x1c] sm:$0xf]
  %v2893 = vld [vmem:[%s9 + $0x20] sm:$0xf]
  %v2894 = vld [vmem:[%s9 + $0x24] sm:$0xf]
  %v2895 = vld [vmem:[%s9 + $0x28] sm:$0xf]
  %v2896 = vld [vmem:[%s9 + $0x2c] sm:$0xf]
  %v2897 = vld [vmem:[%s9 + $0x30] sm:$0xf]
  %v2898 = vld [vmem:[%s9 + $0x34] sm:$0xf]
  %v2899 = vld [vmem:[%s9 + $0x38] sm:$0xf]
  %v2900 = vld [vmem:[%s9 + $0x3c] sm:$0xf]
  %v2901 = vld [vmem:[#allocation3 + $0x8] sm:$0x1]
  %v2902 = vld [vmem:[#allocation3 + $0x14] sm:$0x1]
  %v2903 = vld [vmem:[#allocation3 + $0x20] sm:$0x1]
  %v2904 = vld [vmem:[#allocation3 + $0x2c] sm:$0x1]
  %v2905 = vld [vmem:[#allocation3 + $0x38] sm:$0x1]
  %v2906 = vld [vmem:[#allocation3 + $0x44] sm:$0x1]
  %v2907 = vld [vmem:[#allocation3 + $0x50] sm:$0x1]
  %v2908 = vld [vmem:[#allocation3 + $0x5c] sm:$0x1]
  %v2910 = vshrl.u32 %v2869, 16
  %v2912 = vrot.slane %v2910, 4
  %v2913 = vshll.u32 %v2869, 16
  %v2915 = vrot.slane %v2913, 5
  %v2916 = vor.u32 %v2912, %v2915
  %v2917 = vrot.slane %v2916, 4
  %v2919 = vshll.u32 %v2870, 16
  %v2921 = vrot.slane %v2919, 5
  %v2922 = vsel %vm926, %v2917, %v2921
  %v2923 = vshrl.u32 %v2870, 16
  %v2925 = vrot.slane %v2923, 4
  %v2926 = vor.u32 %v2925, %v2921
  %v2927 = vrot.slane %v2926, 4
  %v2929 = vshll.u32 %v2901, 16
  %v2931 = vrot.slane %v2929, 5
  %v2932 = vsel %vm926, %v2927, %v2931
  %v2934 = vshrl.u32 %v2871, 16
  %v2936 = vrot.slane %v2934, 4
  %v2937 = vshll.u32 %v2871, 16
  %v2939 = vrot.slane %v2937, 5
  %v2940 = vor.u32 %v2936, %v2939
  %v2941 = vrot.slane %v2940, 4
  %v2943 = vshll.u32 %v2872, 16
  %v2945 = vrot.slane %v2943, 5
  %v2946 = vsel %vm926, %v2941, %v2945
  %v2947 = vshrl.u32 %v2872, 16
  %v2949 = vrot.slane %v2947, 4
  %v2950 = vor.u32 %v2949, %v2945
  %v2951 = vrot.slane %v2950, 4
  %v2953 = vshll.u32 %v2902, 16
  %v2955 = vrot.slane %v2953, 5
  %v2956 = vsel %vm926, %v2951, %v2955
  %v2958 = vshrl.u32 %v2873, 16
  %v2960 = vrot.slane %v2958, 4
  %v2961 = vshll.u32 %v2873, 16
  %v2963 = vrot.slane %v2961, 5
  %v2964 = vor.u32 %v2960, %v2963
  %v2965 = vrot.slane %v2964, 4
  %v2967 = vshll.u32 %v2874, 16
  %v2969 = vrot.slane %v2967, 5
  %v2970 = vsel %vm926, %v2965, %v2969
  %v2971 = vshrl.u32 %v2874, 16
  %v2973 = vrot.slane %v2971, 4
  %v2974 = vor.u32 %v2973, %v2969
  %v2975 = vrot.slane %v2974, 4
  %v2977 = vshll.u32 %v2903, 16
  %v2979 = vrot.slane %v2977, 5
  %v2980 = vsel %vm926, %v2975, %v2979
  %v2982 = vshrl.u32 %v2875, 16
  %v2984 = vrot.slane %v2982, 4
  %v2985 = vshll.u32 %v2875, 16
  %v2987 = vrot.slane %v2985, 5
  %v2988 = vor.u32 %v2984, %v2987
  %v2989 = vrot.slane %v2988, 4
  %v2991 = vshll.u32 %v2876, 16
  %v2993 = vrot.slane %v2991, 5
  %v2994 = vsel %vm926, %v2989, %v2993
  %v2995 = vshrl.u32 %v2876, 16
  %v2997 = vrot.slane %v2995, 4
  %v2998 = vor.u32 %v2997, %v2993
  %v2999 = vrot.slane %v2998, 4
  %v3001 = vshll.u32 %v2904, 16
  %v3003 = vrot.slane %v3001, 5
  %v3004 = vsel %vm926, %v2999, %v3003
  %v3006 = vshrl.u32 %v2877, 16
  %v3008 = vrot.slane %v3006, 4
  %v3009 = vshll.u32 %v2877, 16
  %v3011 = vrot.slane %v3009, 5
  %v3012 = vor.u32 %v3008, %v3011
  %v3013 = vrot.slane %v3012, 4
  %v3015 = vshll.u32 %v2878, 16
  %v3017 = vrot.slane %v3015, 5
  %v3018 = vsel %vm926, %v3013, %v3017
  %v3019 = vshrl.u32 %v2878, 16
  %v3021 = vrot.slane %v3019, 4
  %v3022 = vor.u32 %v3021, %v3017
  %v3023 = vrot.slane %v3022, 4
  %v3025 = vshll.u32 %v2905, 16
  %v3027 = vrot.slane %v3025, 5
  %v3028 = vsel %vm926, %v3023, %v3027
  %v3030 = vshrl.u32 %v2879, 16
  %v3032 = vrot.slane %v3030, 4
  %v3033 = vshll.u32 %v2879, 16
  %v3035 = vrot.slane %v3033, 5
  %v3036 = vor.u32 %v3032, %v3035
  %v3037 = vrot.slane %v3036, 4
  %v3039 = vshll.u32 %v2880, 16
  %v3041 = vrot.slane %v3039, 5
  %v3042 = vsel %vm926, %v3037, %v3041
  %v3043 = vshrl.u32 %v2880, 16
  %v3045 = vrot.slane %v3043, 4
  %v3046 = vor.u32 %v3045, %v3041
  %v3047 = vrot.slane %v3046, 4
  %v3049 = vshll.u32 %v2906, 16
  %v3051 = vrot.slane %v3049, 5
  %v3052 = vsel %vm926, %v3047, %v3051
  %v3054 = vshrl.u32 %v2881, 16
  %v3056 = vrot.slane %v3054, 4
  %v3057 = vshll.u32 %v2881, 16
  %v3059 = vrot.slane %v3057, 5
  %v3060 = vor.u32 %v3056, %v3059
  %v3061 = vrot.slane %v3060, 4
  %v3063 = vshll.u32 %v2882, 16
  %v3065 = vrot.slane %v3063, 5
  %v3066 = vsel %vm926, %v3061, %v3065
  %v3067 = vshrl.u32 %v2882, 16
  %v3069 = vrot.slane %v3067, 4
  %v3070 = vor.u32 %v3069, %v3065
  %v3071 = vrot.slane %v3070, 4
  %v3073 = vshll.u32 %v2907, 16
  %v3075 = vrot.slane %v3073, 5
  %v3076 = vsel %vm926, %v3071, %v3075
  %v3078 = vshrl.u32 %v2883, 16
  %v3080 = vrot.slane %v3078, 4
  %v3081 = vshll.u32 %v2883, 16
  %v3083 = vrot.slane %v3081, 5
  %v3084 = vor.u32 %v3080, %v3083
  %v3085 = vrot.slane %v3084, 4
  %v3087 = vshll.u32 %v2884, 16
  %v3089 = vrot.slane %v3087, 5
  %v3090 = vsel %vm926, %v3085, %v3089
  %v3091 = vshrl.u32 %v2884, 16
  %v3093 = vrot.slane %v3091, 4
  %v3094 = vor.u32 %v3093, %v3089
  %v3095 = vrot.slane %v3094, 4
  %v3097 = vshll.u32 %v2908, 16
  %v3099 = vrot.slane %v3097, 5
  %v3100 = vsel %vm926, %v3095, %v3099
  %s3101 = scalar_lea.vmem %s9, 64
  %v3102 = vld [vmem:[%s3101] sm:$0xf]
  %v3103 = vld [vmem:[%s3101 + $0x4] sm:$0xf]
  %v3104 = vld [vmem:[%s3101 + $0x8] sm:$0xf]
  %v3105 = vld [vmem:[%s3101 + $0xc] sm:$0xf]
  %v3106 = vld [vmem:[%s3101 + $0x10] sm:$0xf]
  %v3107 = vld [vmem:[%s3101 + $0x14] sm:$0xf]
  %v3108 = vld [vmem:[%s3101 + $0x18] sm:$0xf]
  %v3109 = vld [vmem:[%s3101 + $0x1c] sm:$0xf]
  %v3110 = vld [vmem:[%s3101 + $0x20] sm:$0xf]
  %v3111 = vld [vmem:[%s3101 + $0x24] sm:$0xf]
  %v3112 = vld [vmem:[%s3101 + $0x28] sm:$0xf]
  %v3113 = vld [vmem:[%s3101 + $0x2c] sm:$0xf]
  %v3114 = vld [vmem:[%s3101 + $0x30] sm:$0xf]
  %v3115 = vld [vmem:[%s3101 + $0x34] sm:$0xf]
  %v3116 = vld [vmem:[%s3101 + $0x38] sm:$0xf]
  %v3117 = vld [vmem:[%s3101 + $0x3c] sm:$0xf]
  %v3118 = vunpack.c.l.b16 %v2922
  %v3119 = vunpack.c.l.b16 %v2932
  %v3120 = vunpack.c.l.b16 %v2946
  %v3121 = vunpack.c.l.b16 %v2956
  %v3122 = vunpack.c.l.b16 %v2970
  %v3123 = vunpack.c.l.b16 %v2980
  %v3124 = vunpack.c.l.b16 %v2994
  %v3125 = vunpack.c.l.b16 %v3004
  %v3126 = vunpack.c.l.b16 %v3018
  %v3127 = vunpack.c.l.b16 %v3028
  %v3128 = vunpack.c.l.b16 %v3042
  %v3129 = vunpack.c.l.b16 %v3052
  %v3130 = vunpack.c.l.b16 %v3066
  %v3131 = vunpack.c.l.b16 %v3076
  %v3132 = vunpack.c.l.b16 %v3090
  %v3133 = vunpack.c.l.b16 %v3100
  %v3134 = vpack.c.b16 %v3119, %v3118
  %v3135 = vpack.c.b16 %v3121, %v3120
  %v3136 = vpack.c.b16 %v3123, %v3122
  %v3137 = vpack.c.b16 %v3125, %v3124
  %v3138 = vpack.c.b16 %v3127, %v3126
  %v3139 = vpack.c.b16 %v3129, %v3128
  %v3140 = vpack.c.b16 %v3131, %v3130
  %v3141 = vpack.c.b16 %v3133, %v3132
  %v3166 = vunpack.c.l.b16 %v3102
  %v3167 = vunpack.c.l.b16 %v3103
  %v3168 = vunpack.c.l.b16 %v3104
  %v3169 = vunpack.c.l.b16 %v3105
  %v3170 = vunpack.c.l.b16 %v3106
  %v3171 = vunpack.c.l.b16 %v3107
  %v3172 = vunpack.c.l.b16 %v3108
  %v3173 = vunpack.c.l.b16 %v3109
  %v3174 = vunpack.c.l.b16 %v3110
  %v3175 = vunpack.c.l.b16 %v3111
  %v3176 = vunpack.c.l.b16 %v3112
  %v3177 = vunpack.c.l.b16 %v3113
  %v3178 = vunpack.c.l.b16 %v3114
  %v3179 = vunpack.c.l.b16 %v3115
  %v3180 = vunpack.c.l.b16 %v3116
  %v3181 = vunpack.c.l.b16 %v3117
  %v3182 = vpack.c.b16 %v3167, %v3166
  %v3183 = vpack.c.b16 %v3169, %v3168
  %v3184 = vpack.c.b16 %v3171, %v3170
  %v3185 = vpack.c.b16 %v3173, %v3172
  %v3186 = vpack.c.b16 %v3175, %v3174
  %v3187 = vpack.c.b16 %v3177, %v3176
  %v3188 = vpack.c.b16 %v3179, %v3178
  %v3189 = vpack.c.b16 %v3181, %v3180
  %3198 = vmatprep.subr.bf16.mxu0 0
  %3199 = vmatpush1.bf16.msra.mxu0 %v3182
  %3200 = vmatprep.subr.bf16.mxu0 0
  %3201 = vmatpush1.bf16.msra.mxu0 %v3183
  %3202 = vmatprep.subr.bf16.mxu0 0
  %3203 = vmatpush1.bf16.msra.mxu0 %v3184
  %3204 = vmatprep.subr.bf16.mxu0 0
  %3205 = vmatpush1.bf16.msra.mxu0 %v3185
  %3206 = vmatprep.subr.bf16.mxu0 0
  %3207 = vmatpush1.bf16.msra.mxu0 %v3186
  %3208 = vmatprep.subr.bf16.mxu0 0
  %3209 = vmatpush1.bf16.msra.mxu0 %v3187
  %3210 = vmatprep.subr.bf16.mxu0 0
  %3211 = vmatpush1.bf16.msra.mxu0 %v3188
  %3212 = vmatprep.subr.bf16.mxu0 0
  %3213 = vmatpush1.bf16.msra.mxu0 %v3189
  %3214 = vmatprep.subr.bf16.mxu0 0
  %3215 = vmatpush1.bf16.msra.mxu0 0
  %3216 = vmatprep.subr.bf16.mxu0 0
  %3217 = vmatpush1.bf16.msra.mxu0 0
  %3218 = vmatprep.subr.bf16.mxu0 0
  %3219 = vmatpush1.bf16.msra.mxu0 0
  %3220 = vmatprep.subr.bf16.mxu0 0
  %3221 = vmatpush1.bf16.msra.mxu0 0
  %3222 = vmatprep.subr.bf16.mxu0 0
  %3223 = vmatpush1.bf16.msra.mxu0 0
  %3224 = vmatprep.subr.bf16.mxu0 0
  %3225 = vmatpush1.bf16.msra.mxu0 0
  %3226 = vmatprep.subr.bf16.mxu0 0
  %3227 = vmatpush1.bf16.msra.mxu0 0
  %3228 = vmatprep.subr.bf16.mxu0 0
  %3229 = vmatpush1.bf16.msra.mxu0 0
  %3230 = vmatprep.mubr.bf16.mxu0 0
  %3231 = vmatmul.mubr.bf16.gmra.mrb[0].mxu0 %v3134
  %v3232 = vpop.f32.mrb[0].mxu0
  %v3233 = vadd.f32 0.0, %v3232
  %v3234 = vpop.f32.mrb[0].mxu0
  %v3235 = vpop.f32.mrb[0].mxu0
  %v3236 = vadd.f32 0.0, %v3235
  %v3237 = vpop.f32.mrb[0].mxu0
  %3238 = vmatprep.mubr.bf16.mxu0 0
  %3239 = vmatmul.mubr.bf16.gmra.mrb[0].mxu0 %v3135
  %v3240 = vpop.f32.mrb[0].mxu0
  %v3241 = vadd.f32 0.0, %v3240
  %v3242 = vpop.f32.mrb[0].mxu0
  %v3243 = vpop.f32.mrb[0].mxu0
  %v3244 = vadd.f32 0.0, %v3243
  %v3245 = vpop.f32.mrb[0].mxu0
  %3246 = vmatprep.mubr.bf16.mxu0 0
  %3247 = vmatmul.mubr.bf16.gmra.mrb[0].mxu0 %v3136
  %v3248 = vpop.f32.mrb[0].mxu0
  %v3249 = vadd.f32 0.0, %v3248
  %v3250 = vpop.f32.mrb[0].mxu0
  %v3251 = vpop.f32.mrb[0].mxu0
  %v3252 = vadd.f32 0.0, %v3251
  %v3253 = vpop.f32.mrb[0].mxu0
  %3254 = vmatprep.mubr.bf16.mxu0 0
  %3255 = vmatmul.mubr.bf16.gmra.mrb[0].mxu0 %v3137
  %v3256 = vpop.f32.mrb[0].mxu0
  %v3257 = vadd.f32 0.0, %v3256
  %v3258 = vpop.f32.mrb[0].mxu0
  %v3259 = vpop.f32.mrb[0].mxu0
  %v3260 = vadd.f32 0.0, %v3259
  %v3261 = vpop.f32.mrb[0].mxu0
  %3262 = vmatprep.mubr.bf16.mxu0 0
  %3263 = vmatmul.mubr.bf16.gmra.mrb[0].mxu0 %v3138
  %v3264 = vpop.f32.mrb[0].mxu0
  %v3265 = vadd.f32 0.0, %v3264
  %v3266 = vpop.f32.mrb[0].mxu0
  %v3267 = vpop.f32.mrb[0].mxu0
  %v3268 = vadd.f32 0.0, %v3267
  %v3269 = vpop.f32.mrb[0].mxu0
  %3270 = vmatprep.mubr.bf16.mxu0 0
  %3271 = vmatmul.mubr.bf16.gmra.mrb[0].mxu0 %v3139
  %v3272 = vpop.f32.mrb[0].mxu0
  %v3273 = vadd.f32 0.0, %v3272
  %v3274 = vpop.f32.mrb[0].mxu0
  %v3275 = vpop.f32.mrb[0].mxu0
  %v3276 = vadd.f32 0.0, %v3275
  %v3277 = vpop.f32.mrb[0].mxu0
  %3278 = vmatprep.mubr.bf16.mxu0 0
  %3279 = vmatmul.mubr.bf16.gmra.mrb[0].mxu0 %v3140
  %v3280 = vpop.f32.mrb[0].mxu0
  %v3281 = vadd.f32 0.0, %v3280
  %v3282 = vpop.f32.mrb[0].mxu0
  %v3283 = vpop.f32.mrb[0].mxu0
  %v3284 = vadd.f32 0.0, %v3283
  %v3285 = vpop.f32.mrb[0].mxu0
  %3286 = vmatprep.mubr.bf16.mxu0 0
  %3287 = vmatmul.mubr.bf16.gmra.mrb[0].mxu0 %v3141
  %v3288 = vpop.f32.mrb[0].mxu0
  %v3289 = vadd.f32 0.0, %v3288
  %v3290 = vpop.f32.mrb[0].mxu0
  %v3291 = vpop.f32.mrb[0].mxu0
  %v3292 = vadd.f32 0.0, %v3291
  %v3293 = vpop.f32.mrb[0].mxu0
  %3294 = vdwg.mxu0
  %v3311 = vunpack.c.l.b16 %v2869
  %v3312 = vunpack.c.l.b16 %v2870
  %v3313 = vunpack.c.l.b16 %v2871
  %v3314 = vunpack.c.l.b16 %v2872
  %v3315 = vunpack.c.l.b16 %v2873
  %v3316 = vunpack.c.l.b16 %v2874
  %v3317 = vunpack.c.l.b16 %v2875
  %v3318 = vunpack.c.l.b16 %v2876
  %v3319 = vunpack.c.l.b16 %v2877
  %v3320 = vunpack.c.l.b16 %v2878
  %v3321 = vunpack.c.l.b16 %v2879
  %v3322 = vunpack.c.l.b16 %v2880
  %v3323 = vunpack.c.l.b16 %v2881
  %v3324 = vunpack.c.l.b16 %v2882
  %v3325 = vunpack.c.l.b16 %v2883
  %v3326 = vunpack.c.l.b16 %v2884
  %v3327 = vpack.c.b16 %v3312, %v3311
  %v3328 = vpack.c.b16 %v3314, %v3313
  %v3329 = vpack.c.b16 %v3316, %v3315
  %v3330 = vpack.c.b16 %v3318, %v3317
  %v3331 = vpack.c.b16 %v3320, %v3319
  %v3332 = vpack.c.b16 %v3322, %v3321
  %v3333 = vpack.c.b16 %v3324, %v3323
  %v3334 = vpack.c.b16 %v3326, %v3325
  %v3359 = vunpack.c.l.b16 %v2885
  %v3360 = vunpack.c.l.b16 %v2886
  %v3361 = vunpack.c.l.b16 %v2887
  %v3362 = vunpack.c.l.b16 %v2888
  %v3363 = vunpack.c.l.b16 %v2889
  %v3364 = vunpack.c.l.b16 %v2890
  %v3365 = vunpack.c.l.b16 %v2891
  %v3366 = vunpack.c.l.b16 %v2892
  %v3367 = vunpack.c.l.b16 %v2893
  %v3368 = vunpack.c.l.b16 %v2894
  %v3369 = vunpack.c.l.b16 %v2895
  %v3370 = vunpack.c.l.b16 %v2896
  %v3371 = vunpack.c.l.b16 %v2897
  %v3372 = vunpack.c.l.b16 %v2898
  %v3373 = vunpack.c.l.b16 %v2899
  %v3374 = vunpack.c.l.b16 %v2900
  %v3375 = vpack.c.b16 %v3360, %v3359
  %v3376 = vpack.c.b16 %v3362, %v3361
  %v3377 = vpack.c.b16 %v3364, %v3363
  %v3378 = vpack.c.b16 %v3366, %v3365
  %v3379 = vpack.c.b16 %v3368, %v3367
  %v3380 = vpack.c.b16 %v3370, %v3369
  %v3381 = vpack.c.b16 %v3372, %v3371
  %v3382 = vpack.c.b16 %v3374, %v3373
  %3391 = vmatprep.subr.bf16.mxu0 0
  %3392 = vmatpush1.bf16.msra.mxu0 %v3375
  %3393 = vmatprep.subr.bf16.mxu0 0
  %3394 = vmatpush1.bf16.msra.mxu0 %v3376
  %3395 = vmatprep.subr.bf16.mxu0 0
  %3396 = vmatpush1.bf16.msra.mxu0 %v3377
  %3397 = vmatprep.subr.bf16.mxu0 0
  %3398 = vmatpush1.bf16.msra.mxu0 %v3378
  %3399 = vmatprep.subr.bf16.mxu0 0
  %3400 = vmatpush1.bf16.msra.mxu0 %v3379
  %3401 = vmatprep.subr.bf16.mxu0 0
  %3402 = vmatpush1.bf16.msra.mxu0 %v3380
  %3403 = vmatprep.subr.bf16.mxu0 0
  %3404 = vmatpush1.bf16.msra.mxu0 %v3381
  %3405 = vmatprep.subr.bf16.mxu0 0
  %3406 = vmatpush1.bf16.msra.mxu0 %v3382
  %3407 = vmatprep.subr.bf16.mxu0 0
  %3408 = vmatpush1.bf16.msra.mxu0 0
  %3409 = vmatprep.subr.bf16.mxu0 0
  %3410 = vmatpush1.bf16.msra.mxu0 0
  %3411 = vmatprep.subr.bf16.mxu0 0
  %3412 = vmatpush1.bf16.msra.mxu0 0
  %3413 = vmatprep.subr.bf16.mxu0 0
  %3414 = vmatpush1.bf16.msra.mxu0 0
  %3415 = vmatprep.subr.bf16.mxu0 0
  %3416 = vmatpush1.bf16.msra.mxu0 0
  %3417 = vmatprep.subr.bf16.mxu0 0
  %3418 = vmatpush1.bf16.msra.mxu0 0
  %3419 = vmatprep.subr.bf16.mxu0 0
  %3420 = vmatpush1.bf16.msra.mxu0 0
  %3421 = vmatprep.subr.bf16.mxu0 0
  %3422 = vmatpush1.bf16.msra.mxu0 0
  %3423 = vmatprep.mubr.bf16.mxu0 0
  %3424 = vmatmul.mubr.bf16.gmra.mrb[0].mxu0 %v3327
  %v3425 = vpop.f32.mrb[0].mxu0
  %v3426 = vadd.f32 %v3233, %v3425
  %v3427 = vpop.f32.mrb[0].mxu0
  %v3428 = vpop.f32.mrb[0].mxu0
  %v3429 = vadd.f32 %v3236, %v3428
  %v3430 = vpop.f32.mrb[0].mxu0
  %3431 = vmatprep.mubr.bf16.mxu0 0
  %3432 = vmatmul.mubr.bf16.gmra.mrb[0].mxu0 %v3328
  %v3433 = vpop.f32.mrb[0].mxu0
  %v3434 = vadd.f32 %v3241, %v3433
  %v3435 = vpop.f32.mrb[0].mxu0
  %v3436 = vpop.f32.mrb[0].mxu0
  %v3437 = vadd.f32 %v3244, %v3436
  %v3438 = vpop.f32.mrb[0].mxu0
  %3439 = vmatprep.mubr.bf16.mxu0 0
  %3440 = vmatmul.mubr.bf16.gmra.mrb[0].mxu0 %v3329
  %v3441 = vpop.f32.mrb[0].mxu0
  %v3442 = vadd.f32 %v3249, %v3441
  %v3443 = vpop.f32.mrb[0].mxu0
  %v3444 = vpop.f32.mrb[0].mxu0
  %v3445 = vadd.f32 %v3252, %v3444
  %v3446 = vpop.f32.mrb[0].mxu0
  %3447 = vmatprep.mubr.bf16.mxu0 0
  %3448 = vmatmul.mubr.bf16.gmra.mrb[0].mxu0 %v3330
  %v3449 = vpop.f32.mrb[0].mxu0
  %v3450 = vadd.f32 %v3257, %v3449
  %v3451 = vpop.f32.mrb[0].mxu0
  %v3452 = vpop.f32.mrb[0].mxu0
  %v3453 = vadd.f32 %v3260, %v3452
  %v3454 = vpop.f32.mrb[0].mxu0
  %3455 = vmatprep.mubr.bf16.mxu0 0
  %3456 = vmatmul.mubr.bf16.gmra.mrb[0].mxu0 %v3331
  %v3457 = vpop.f32.mrb[0].mxu0
  %v3458 = vadd.f32 %v3265, %v3457
  %v3459 = vpop.f32.mrb[0].mxu0
  %v3460 = vpop.f32.mrb[0].mxu0
  %v3461 = vadd.f32 %v3268, %v3460
  %v3462 = vpop.f32.mrb[0].mxu0
  %3463 = vmatprep.mubr.bf16.mxu0 0
  %3464 = vmatmul.mubr.bf16.gmra.mrb[0].mxu0 %v3332
  %v3465 = vpop.f32.mrb[0].mxu0
  %v3466 = vadd.f32 %v3273, %v3465
  %v3467 = vpop.f32.mrb[0].mxu0
  %v3468 = vpop.f32.mrb[0].mxu0
  %v3469 = vadd.f32 %v3276, %v3468
  %v3470 = vpop.f32.mrb[0].mxu0
  %3471 = vmatprep.mubr.bf16.mxu0 0
  %3472 = vmatmul.mubr.bf16.gmra.mrb[0].mxu0 %v3333
  %v3473 = vpop.f32.mrb[0].mxu0
  %v3474 = vadd.f32 %v3281, %v3473
  %v3475 = vpop.f32.mrb[0].mxu0
  %v3476 = vpop.f32.mrb[0].mxu0
  %v3477 = vadd.f32 %v3284, %v3476
  %v3478 = vpop.f32.mrb[0].mxu0
  %3479 = vmatprep.mubr.bf16.mxu0 0
  %3480 = vmatmul.mubr.bf16.gmra.mrb[0].mxu0 %v3334
  %v3481 = vpop.f32.mrb[0].mxu0
  %v3482 = vadd.f32 %v3289, %v3481
  %v3483 = vpop.f32.mrb[0].mxu0
  %v3484 = vpop.f32.mrb[0].mxu0
  %v3485 = vadd.f32 %v3292, %v3484
  %v3486 = vpop.f32.mrb[0].mxu0
  %3487 = vdwg.mxu0
  %v3488 = vld [vmem:[#allocation3] sm:$0xe]
  %v3489 = vld [vmem:[#allocation3 + $0xc] sm:$0xe]
  %v3490 = vld [vmem:[#allocation3 + $0x18] sm:$0xe]
  %v3491 = vld [vmem:[#allocation3 + $0x24] sm:$0xe]
  %v3492 = vld [vmem:[#allocation3 + $0x30] sm:$0xe]
  %v3493 = vld [vmem:[#allocation3 + $0x3c] sm:$0xe]
  %v3494 = vld [vmem:[#allocation3 + $0x48] sm:$0xe]
  %v3495 = vld [vmem:[#allocation3 + $0x54] sm:$0xe]
  %v3512 = vrot.slane %v3488, 5
  %v3513 = vrot.slane %v3512, 4
  %v3514 = vrot.slane %v2870, 5
  %v3515 = vsel %vm1908, %v3513, %v3514
  %v3516 = vrot.slane %v3514, 4
  %v3517 = vrot.slane %v2901, 5
  %v3518 = vsel %vm1908, %v3516, %v3517
  %v3519 = vrot.slane %v3489, 5
  %v3520 = vrot.slane %v3519, 4
  %v3521 = vrot.slane %v2872, 5
  %v3522 = vsel %vm1908, %v3520, %v3521
  %v3523 = vrot.slane %v3521, 4
  %v3524 = vrot.slane %v2902, 5
  %v3525 = vsel %vm1908, %v3523, %v3524
  %v3526 = vrot.slane %v3490, 5
  %v3527 = vrot.slane %v3526, 4
  %v3528 = vrot.slane %v2874, 5
  %v3529 = vsel %vm1908, %v3527, %v3528
  %v3530 = vrot.slane %v3528, 4
  %v3531 = vrot.slane %v2903, 5
  %v3532 = vsel %vm1908, %v3530, %v3531
  %v3533 = vrot.slane %v3491, 5
  %v3534 = vrot.slane %v3533, 4
  %v3535 = vrot.slane %v2876, 5
  %v3536 = vsel %vm1908, %v3534, %v3535
  %v3537 = vrot.slane %v3535, 4
  %v3538 = vrot.slane %v2904, 5
  %v3539 = vsel %vm1908, %v3537, %v3538
  %v3540 = vrot.slane %v3492, 5
  %v3541 = vrot.slane %v3540, 4
  %v3542 = vrot.slane %v2878, 5
  %v3543 = vsel %vm1908, %v3541, %v3542
  %v3544 = vrot.slane %v3542, 4
  %v3545 = vrot.slane %v2905, 5
  %v3546 = vsel %vm1908, %v3544, %v3545
  %v3547 = vrot.slane %v3493, 5
  %v3548 = vrot.slane %v3547, 4
  %v3549 = vrot.slane %v2880, 5
  %v3550 = vsel %vm1908, %v3548, %v3549
  %v3551 = vrot.slane %v3549, 4
  %v3552 = vrot.slane %v2906, 5
  %v3553 = vsel %vm1908, %v3551, %v3552
  %v3554 = vrot.slane %v3494, 5
  %v3555 = vrot.slane %v3554, 4
  %v3556 = vrot.slane %v2882, 5
  %v3557 = vsel %vm1908, %v3555, %v3556
  %v3558 = vrot.slane %v3556, 4
  %v3559 = vrot.slane %v2907, 5
  %v3560 = vsel %vm1908, %v3558, %v3559
  %v3561 = vrot.slane %v3495, 5
  %v3562 = vrot.slane %v3561, 4
  %v3563 = vrot.slane %v2884, 5
  %v3564 = vsel %vm1908, %v3562, %v3563
  %v3565 = vrot.slane %v3563, 4
  %v3566 = vrot.slane %v2908, 5
  %v3567 = vsel %vm1908, %v3565, %v3566
  %s3568 = scalar_lea.vmem %s9, 128
  %v3569 = vld [vmem:[%s3568] sm:$0xf]
  %v3570 = vld [vmem:[%s3568 + $0x4] sm:$0xf]
  %v3571 = vld [vmem:[%s3568 + $0x8] sm:$0xf]
  %v3572 = vld [vmem:[%s3568 + $0xc] sm:$0xf]
  %v3573 = vld [vmem:[%s3568 + $0x10] sm:$0xf]
  %v3574 = vld [vmem:[%s3568 + $0x14] sm:$0xf]
  %v3575 = vld [vmem:[%s3568 + $0x18] sm:$0xf]
  %v3576 = vld [vmem:[%s3568 + $0x1c] sm:$0xf]
  %v3577 = vld [vmem:[%s3568 + $0x20] sm:$0xf]
  %v3578 = vld [vmem:[%s3568 + $0x24] sm:$0xf]
  %v3579 = vld [vmem:[%s3568 + $0x28] sm:$0xf]
  %v3580 = vld [vmem:[%s3568 + $0x2c] sm:$0xf]
  %v3581 = vld [vmem:[%s3568 + $0x30] sm:$0xf]
  %v3582 = vld [vmem:[%s3568 + $0x34] sm:$0xf]
  %v3583 = vld [vmem:[%s3568 + $0x38] sm:$0xf]
  %v3584 = vld [vmem:[%s3568 + $0x3c] sm:$0xf]
  %v3585 = vunpack.c.l.b16 %v3515
  %v3586 = vunpack.c.l.b16 %v3518
  %v3587 = vunpack.c.l.b16 %v3522
  %v3588 = vunpack.c.l.b16 %v3525
  %v3589 = vunpack.c.l.b16 %v3529
  %v3590 = vunpack.c.l.b16 %v3532
  %v3591 = vunpack.c.l.b16 %v3536
  %v3592 = vunpack.c.l.b16 %v3539
  %v3593 = vunpack.c.l.b16 %v3543
  %v3594 = vunpack.c.l.b16 %v3546
  %v3595 = vunpack.c.l.b16 %v3550
  %v3596 = vunpack.c.l.b16 %v3553
  %v3597 = vunpack.c.l.b16 %v3557
  %v3598 = vunpack.c.l.b16 %v3560
  %v3599 = vunpack.c.l.b16 %v3564
  %v3600 = vunpack.c.l.b16 %v3567
  %v3601 = vpack.c.b16 %v3586, %v3585
  %v3602 = vpack.c.b16 %v3588, %v3587
  %v3603 = vpack.c.b16 %v3590, %v3589
  %v3604 = vpack.c.b16 %v3592, %v3591
  %v3605 = vpack.c.b16 %v3594, %v3593
  %v3606 = vpack.c.b16 %v3596, %v3595
  %v3607 = vpack.c.b16 %v3598, %v3597
  %v3608 = vpack.c.b16 %v3600, %v3599
  %v3633 = vunpack.c.l.b16 %v3569
  %v3634 = vunpack.c.l.b16 %v3570
  %v3635 = vunpack.c.l.b16 %v3571
  %v3636 = vunpack.c.l.b16 %v3572
  %v3637 = vunpack.c.l.b16 %v3573
  %v3638 = vunpack.c.l.b16 %v3574
  %v3639 = vunpack.c.l.b16 %v3575
  %v3640 = vunpack.c.l.b16 %v3576
  %v3641 = vunpack.c.l.b16 %v3577
  %v3642 = vunpack.c.l.b16 %v3578
  %v3643 = vunpack.c.l.b16 %v3579
  %v3644 = vunpack.c.l.b16 %v3580
  %v3645 = vunpack.c.l.b16 %v3581
  %v3646 = vunpack.c.l.b16 %v3582
  %v3647 = vunpack.c.l.b16 %v3583
  %v3648 = vunpack.c.l.b16 %v3584
  %v3649 = vpack.c.b16 %v3634, %v3633
  %v3650 = vpack.c.b16 %v3636, %v3635
  %v3651 = vpack.c.b16 %v3638, %v3637
  %v3652 = vpack.c.b16 %v3640, %v3639
  %v3653 = vpack.c.b16 %v3642, %v3641
  %v3654 = vpack.c.b16 %v3644, %v3643
  %v3655 = vpack.c.b16 %v3646, %v3645
  %v3656 = vpack.c.b16 %v3648, %v3647
  %3665 = vmatprep.subr.bf16.mxu0 0
  %3666 = vmatpush1.bf16.msra.mxu0 %v3649
  %3667 = vmatprep.subr.bf16.mxu0 0
  %3668 = vmatpush1.bf16.msra.mxu0 %v3650
  %3669 = vmatprep.subr.bf16.mxu0 0
  %3670 = vmatpush1.bf16.msra.mxu0 %v3651
  %3671 = vmatprep.subr.bf16.mxu0 0
  %3672 = vmatpush1.bf16.msra.mxu0 %v3652
  %3673 = vmatprep.subr.bf16.mxu0 0
  %3674 = vmatpush1.bf16.msra.mxu0 %v3653
  %3675 = vmatprep.subr.bf16.mxu0 0
  %3676 = vmatpush1.bf16.msra.mxu0 %v3654
  %3677 = vmatprep.subr.bf16.mxu0 0
  %3678 = vmatpush1.bf16.msra.mxu0 %v3655
  %3679 = vmatprep.subr.bf16.mxu0 0
  %3680 = vmatpush1.bf16.msra.mxu0 %v3656
  %3681 = vmatprep.subr.bf16.mxu0 0
  %3682 = vmatpush1.bf16.msra.mxu0 0
  %3683 = vmatprep.subr.bf16.mxu0 0
  %3684 = vmatpush1.bf16.msra.mxu0 0
  %3685 = vmatprep.subr.bf16.mxu0 0
  %3686 = vmatpush1.bf16.msra.mxu0 0
  %3687 = vmatprep.subr.bf16.mxu0 0
  %3688 = vmatpush1.bf16.msra.mxu0 0
  %3689 = vmatprep.subr.bf16.mxu0 0
  %3690 = vmatpush1.bf16.msra.mxu0 0
  %3691 = vmatprep.subr.bf16.mxu0 0
  %3692 = vmatpush1.bf16.msra.mxu0 0
  %3693 = vmatprep.subr.bf16.mxu0 0
  %3694 = vmatpush1.bf16.msra.mxu0 0
  %3695 = vmatprep.subr.bf16.mxu0 0
  %3696 = vmatpush1.bf16.msra.mxu0 0
  %3697 = vmatprep.mubr.bf16.mxu0 0
  %3698 = vmatmul.mubr.bf16.gmra.mrb[0].mxu0 %v3601
  %v3699 = vpop.f32.mrb[0].mxu0
  %v3700 = vadd.f32 0.0, %v3699
  %v3701 = vpop.f32.mrb[0].mxu0
  %v3702 = vpop.f32.mrb[0].mxu0
  %v3703 = vadd.f32 0.0, %v3702
  %v3704 = vpop.f32.mrb[0].mxu0
  %3705 = vmatprep.mubr.bf16.mxu0 0
  %3706 = vmatmul.mubr.bf16.gmra.mrb[0].mxu0 %v3602
  %v3707 = vpop.f32.mrb[0].mxu0
  %v3708 = vadd.f32 0.0, %v3707
  %v3709 = vpop.f32.mrb[0].mxu0
  %v3710 = vpop.f32.mrb[0].mxu0
  %v3711 = vadd.f32 0.0, %v3710
  %v3712 = vpop.f32.mrb[0].mxu0
  %3713 = vmatprep.mubr.bf16.mxu0 0
  %3714 = vmatmul.mubr.bf16.gmra.mrb[0].mxu0 %v3603
  %v3715 = vpop.f32.mrb[0].mxu0
  %v3716 = vadd.f32 0.0, %v3715
  %v3717 = vpop.f32.mrb[0].mxu0
  %v3718 = vpop.f32.mrb[0].mxu0
  %v3719 = vadd.f32 0.0, %v3718
  %v3720 = vpop.f32.mrb[0].mxu0
  %3721 = vmatprep.mubr.bf16.mxu0 0
  %3722 = vmatmul.mubr.bf16.gmra.mrb[0].mxu0 %v3604
  %v3723 = vpop.f32.mrb[0].mxu0
  %v3724 = vadd.f32 0.0, %v3723
  %v3725 = vpop.f32.mrb[0].mxu0
  %v3726 = vpop.f32.mrb[0].mxu0
  %v3727 = vadd.f32 0.0, %v3726
  %v3728 = vpop.f32.mrb[0].mxu0
  %3729 = vmatprep.mubr.bf16.mxu0 0
  %3730 = vmatmul.mubr.bf16.gmra.mrb[0].mxu0 %v3605
  %v3731 = vpop.f32.mrb[0].mxu0
  %v3732 = vadd.f32 0.0, %v3731
  %v3733 = vpop.f32.mrb[0].mxu0
  %v3734 = vpop.f32.mrb[0].mxu0
  %v3735 = vadd.f32 0.0, %v3734
  %v3736 = vpop.f32.mrb[0].mxu0
  %3737 = vmatprep.mubr.bf16.mxu0 0
  %3738 = vmatmul.mubr.bf16.gmra.mrb[0].mxu0 %v3606
  %v3739 = vpop.f32.mrb[0].mxu0
  %v3740 = vadd.f32 0.0, %v3739
  %v3741 = vpop.f32.mrb[0].mxu0
  %v3742 = vpop.f32.mrb[0].mxu0
  %v3743 = vadd.f32 0.0, %v3742
  %v3744 = vpop.f32.mrb[0].mxu0
  %3745 = vmatprep.mubr.bf16.mxu0 0
  %3746 = vmatmul.mubr.bf16.gmra.mrb[0].mxu0 %v3607
  %v3747 = vpop.f32.mrb[0].mxu0
  %v3748 = vadd.f32 0.0, %v3747
  %v3749 = vpop.f32.mrb[0].mxu0
  %v3750 = vpop.f32.mrb[0].mxu0
  %v3751 = vadd.f32 0.0, %v3750
  %v3752 = vpop.f32.mrb[0].mxu0
  %3753 = vmatprep.mubr.bf16.mxu0 0
  %3754 = vmatmul.mubr.bf16.gmra.mrb[0].mxu0 %v3608
  %v3755 = vpop.f32.mrb[0].mxu0
  %v3756 = vadd.f32 0.0, %v3755
  %v3757 = vpop.f32.mrb[0].mxu0
  %v3758 = vpop.f32.mrb[0].mxu0
  %v3759 = vadd.f32 0.0, %v3758
  %v3760 = vpop.f32.mrb[0].mxu0
  %3761 = vdwg.mxu0
  %v3762 = vadd.f32 %v3426, %v3700
  %v3763 = vadd.f32 %v3429, %v3703
  %v3764 = vadd.f32 %v3434, %v3708
  %v3765 = vadd.f32 %v3437, %v3711
  %v3766 = vadd.f32 %v3442, %v3716
  %v3767 = vadd.f32 %v3445, %v3719
  %v3768 = vadd.f32 %v3450, %v3724
  %v3769 = vadd.f32 %v3453, %v3727
  %v3770 = vadd.f32 %v3458, %v3732
  %v3771 = vadd.f32 %v3461, %v3735
  %v3772 = vadd.f32 %v3466, %v3740
  %v3773 = vadd.f32 %v3469, %v3743
  %v3774 = vadd.f32 %v3474, %v3748
  %v3775 = vadd.f32 %v3477, %v3751
  %v3776 = vadd.f32 %v3482, %v3756
  %v3777 = vadd.f32 %v3485, %v3759
  %v3778 = vld [vmem:[%s2844] sm:$0xf]
  %v3779 = vld [vmem:[%s2844 + $0x4] sm:$0xf]
  %v3780 = vld [vmem:[%s2844 + $0xc] sm:$0xf]
  %v3781 = vld [vmem:[%s2844 + $0x10] sm:$0xf]
  %v3782 = vld [vmem:[%s2844 + $0x18] sm:$0xf]
  %v3783 = vld [vmem:[%s2844 + $0x1c] sm:$0xf]
  %v3784 = vld [vmem:[%s2844 + $0x24] sm:$0xf]
  %v3785 = vld [vmem:[%s2844 + $0x28] sm:$0xf]
  %v3786 = vld [vmem:[%s2844 + $0x30] sm:$0xf]
  %v3787 = vld [vmem:[%s2844 + $0x34] sm:$0xf]
  %v3788 = vld [vmem:[%s2844 + $0x3c] sm:$0xf]
  %v3789 = vld [vmem:[%s2844 + $0x40] sm:$0xf]
  %v3790 = vld [vmem:[%s2844 + $0x48] sm:$0xf]
  %v3791 = vld [vmem:[%s2844 + $0x4c] sm:$0xf]
  %v3792 = vld [vmem:[%s2844 + $0x54] sm:$0xf]
  %v3793 = vld [vmem:[%s2844 + $0x58] sm:$0xf]
  %s3794 = scalar_lea.vmem %s9, 192
  %v3795 = vld [vmem:[%s3794] sm:$0xf]
  %v3796 = vld [vmem:[%s3794 + $0x4] sm:$0xf]
  %v3797 = vld [vmem:[%s3794 + $0x8] sm:$0xf]
  %v3798 = vld [vmem:[%s3794 + $0xc] sm:$0xf]
  %v3799 = vld [vmem:[%s3794 + $0x10] sm:$0xf]
  %v3800 = vld [vmem:[%s3794 + $0x14] sm:$0xf]
  %v3801 = vld [vmem:[%s3794 + $0x18] sm:$0xf]
  %v3802 = vld [vmem:[%s3794 + $0x1c] sm:$0xf]
  %v3803 = vld [vmem:[%s3794 + $0x20] sm:$0xf]
  %v3804 = vld [vmem:[%s3794 + $0x24] sm:$0xf]
  %v3805 = vld [vmem:[%s3794 + $0x28] sm:$0xf]
  %v3806 = vld [vmem:[%s3794 + $0x2c] sm:$0xf]
  %v3807 = vld [vmem:[%s3794 + $0x30] sm:$0xf]
  %v3808 = vld [vmem:[%s3794 + $0x34] sm:$0xf]
  %v3809 = vld [vmem:[%s3794 + $0x38] sm:$0xf]
  %v3810 = vld [vmem:[%s3794 + $0x3c] sm:$0xf]
  %v3827 = vunpack.c.l.b16 %v3778
  %v3828 = vunpack.c.l.b16 %v3779
  %v3829 = vunpack.c.l.b16 %v3780
  %v3830 = vunpack.c.l.b16 %v3781
  %v3831 = vunpack.c.l.b16 %v3782
  %v3832 = vunpack.c.l.b16 %v3783
  %v3833 = vunpack.c.l.b16 %v3784
  %v3834 = vunpack.c.l.b16 %v3785
  %v3835 = vunpack.c.l.b16 %v3786
  %v3836 = vunpack.c.l.b16 %v3787
  %v3837 = vunpack.c.l.b16 %v3788
  %v3838 = vunpack.c.l.b16 %v3789
  %v3839 = vunpack.c.l.b16 %v3790
  %v3840 = vunpack.c.l.b16 %v3791
  %v3841 = vunpack.c.l.b16 %v3792
  %v3842 = vunpack.c.l.b16 %v3793
  %v3843 = vpack.c.b16 %v3828, %v3827
  %v3844 = vpack.c.b16 %v3830, %v3829
  %v3845 = vpack.c.b16 %v3832, %v3831
  %v3846 = vpack.c.b16 %v3834, %v3833
  %v3847 = vpack.c.b16 %v3836, %v3835
  %v3848 = vpack.c.b16 %v3838, %v3837
  %v3849 = vpack.c.b16 %v3840, %v3839
  %v3850 = vpack.c.b16 %v3842, %v3841
  %v3875 = vunpack.c.l.b16 %v3795
  %v3876 = vunpack.c.l.b16 %v3796
  %v3877 = vunpack.c.l.b16 %v3797
  %v3878 = vunpack.c.l.b16 %v3798
  %v3879 = vunpack.c.l.b16 %v3799
  %v3880 = vunpack.c.l.b16 %v3800
  %v3881 = vunpack.c.l.b16 %v3801
  %v3882 = vunpack.c.l.b16 %v3802
  %v3883 = vunpack.c.l.b16 %v3803
  %v3884 = vunpack.c.l.b16 %v3804
  %v3885 = vunpack.c.l.b16 %v3805
  %v3886 = vunpack.c.l.b16 %v3806
  %v3887 = vunpack.c.l.b16 %v3807
  %v3888 = vunpack.c.l.b16 %v3808
  %v3889 = vunpack.c.l.b16 %v3809
  %v3890 = vunpack.c.l.b16 %v3810
  %v3891 = vpack.c.b16 %v3876, %v3875
  %v3892 = vpack.c.b16 %v3878, %v3877
  %v3893 = vpack.c.b16 %v3880, %v3879
  %v3894 = vpack.c.b16 %v3882, %v3881
  %v3895 = vpack.c.b16 %v3884, %v3883
  %v3896 = vpack.c.b16 %v3886, %v3885
  %v3897 = vpack.c.b16 %v3888, %v3887
  %v3898 = vpack.c.b16 %v3890, %v3889
  %3907 = vmatprep.subr.bf16.mxu0 0
  %3908 = vmatpush1.bf16.msra.mxu0 %v3891
  %3909 = vmatprep.subr.bf16.mxu0 0
  %3910 = vmatpush1.bf16.msra.mxu0 %v3892
  %3911 = vmatprep.subr.bf16.mxu0 0
  %3912 = vmatpush1.bf16.msra.mxu0 %v3893
  %3913 = vmatprep.subr.bf16.mxu0 0
  %3914 = vmatpush1.bf16.msra.mxu0 %v3894
  %3915 = vmatprep.subr.bf16.mxu0 0
  %3916 = vmatpush1.bf16.msra.mxu0 %v3895
  %3917 = vmatprep.subr.bf16.mxu0 0
  %3918 = vmatpush1.bf16.msra.mxu0 %v3896
  %3919 = vmatprep.subr.bf16.mxu0 0
  %3920 = vmatpush1.bf16.msra.mxu0 %v3897
  %3921 = vmatprep.subr.bf16.mxu0 0
  %3922 = vmatpush1.bf16.msra.mxu0 %v3898
  %3923 = vmatprep.subr.bf16.mxu0 0
  %3924 = vmatpush1.bf16.msra.mxu0 0
  %3925 = vmatprep.subr.bf16.mxu0 0
  %3926 = vmatpush1.bf16.msra.mxu0 0
  %3927 = vmatprep.subr.bf16.mxu0 0
  %3928 = vmatpush1.bf16.msra.mxu0 0
  %3929 = vmatprep.subr.bf16.mxu0 0
  %3930 = vmatpush1.bf16.msra.mxu0 0
  %3931 = vmatprep.subr.bf16.mxu0 0
  %3932 = vmatpush1.bf16.msra.mxu0 0
  %3933 = vmatprep.subr.bf16.mxu0 0
  %3934 = vmatpush1.bf16.msra.mxu0 0
  %3935 = vmatprep.subr.bf16.mxu0 0
  %3936 = vmatpush1.bf16.msra.mxu0 0
  %3937 = vmatprep.subr.bf16.mxu0 0
  %3938 = vmatpush1.bf16.msra.mxu0 0
  %3939 = vmatprep.mubr.bf16.mxu0 0
  %3940 = vmatmul.mubr.bf16.gmra.mrb[0].mxu0 %v3843
  %v3941 = vpop.f32.mrb[0].mxu0
  %v3942 = vadd.f32 0.0, %v3941
  %v3943 = vpop.f32.mrb[0].mxu0
  %v3944 = vpop.f32.mrb[0].mxu0
  %v3945 = vadd.f32 0.0, %v3944
  %v3946 = vpop.f32.mrb[0].mxu0
  %3947 = vmatprep.mubr.bf16.mxu0 0
  %3948 = vmatmul.mubr.bf16.gmra.mrb[0].mxu0 %v3844
  %v3949 = vpop.f32.mrb[0].mxu0
  %v3950 = vadd.f32 0.0, %v3949
  %v3951 = vpop.f32.mrb[0].mxu0
  %v3952 = vpop.f32.mrb[0].mxu0
  %v3953 = vadd.f32 0.0, %v3952
  %v3954 = vpop.f32.mrb[0].mxu0
  %3955 = vmatprep.mubr.bf16.mxu0 0
  %3956 = vmatmul.mubr.bf16.gmra.mrb[0].mxu0 %v3845
  %v3957 = vpop.f32.mrb[0].mxu0
  %v3958 = vadd.f32 0.0, %v3957
  %v3959 = vpop.f32.mrb[0].mxu0
  %v3960 = vpop.f32.mrb[0].mxu0
  %v3961 = vadd.f32 0.0, %v3960
  %v3962 = vpop.f32.mrb[0].mxu0
  %3963 = vmatprep.mubr.bf16.mxu0 0
  %3964 = vmatmul.mubr.bf16.gmra.mrb[0].mxu0 %v3846
  %v3965 = vpop.f32.mrb[0].mxu0
  %v3966 = vadd.f32 0.0, %v3965
  %v3967 = vpop.f32.mrb[0].mxu0
  %v3968 = vpop.f32.mrb[0].mxu0
  %v3969 = vadd.f32 0.0, %v3968
  %v3970 = vpop.f32.mrb[0].mxu0
  %3971 = vmatprep.mubr.bf16.mxu0 0
  %3972 = vmatmul.mubr.bf16.gmra.mrb[0].mxu0 %v3847
  %v3973 = vpop.f32.mrb[0].mxu0
  %v3974 = vadd.f32 0.0, %v3973
  %v3975 = vpop.f32.mrb[0].mxu0
  %v3976 = vpop.f32.mrb[0].mxu0
  %v3977 = vadd.f32 0.0, %v3976
  %v3978 = vpop.f32.mrb[0].mxu0
  %3979 = vmatprep.mubr.bf16.mxu0 0
  %3980 = vmatmul.mubr.bf16.gmra.mrb[0].mxu0 %v3848
  %v3981 = vpop.f32.mrb[0].mxu0
  %v3982 = vadd.f32 0.0, %v3981
  %v3983 = vpop.f32.mrb[0].mxu0
  %v3984 = vpop.f32.mrb[0].mxu0
  %v3985 = vadd.f32 0.0, %v3984
  %v3986 = vpop.f32.mrb[0].mxu0
  %3987 = vmatprep.mubr.bf16.mxu0 0
  %3988 = vmatmul.mubr.bf16.gmra.mrb[0].mxu0 %v3849
  %v3989 = vpop.f32.mrb[0].mxu0
  %v3990 = vadd.f32 0.0, %v3989
  %v3991 = vpop.f32.mrb[0].mxu0
  %v3992 = vpop.f32.mrb[0].mxu0
  %v3993 = vadd.f32 0.0, %v3992
  %v3994 = vpop.f32.mrb[0].mxu0
  %3995 = vmatprep.mubr.bf16.mxu0 0
  %3996 = vmatmul.mubr.bf16.gmra.mrb[0].mxu0 %v3850
  %v3997 = vpop.f32.mrb[0].mxu0
  %v3998 = vadd.f32 0.0, %v3997
  %v3999 = vpop.f32.mrb[0].mxu0
  %v4000 = vpop.f32.mrb[0].mxu0
  %v4001 = vadd.f32 0.0, %v4000
  %v4002 = vpop.f32.mrb[0].mxu0
  %4003 = vdwg.mxu0
  %v4004 = vadd.f32 %v3762, %v3942
  %v4005 = vadd.f32 %v3763, %v3945
  %v4006 = vadd.f32 %v3764, %v3950
  %v4007 = vadd.f32 %v3765, %v3953
  %v4008 = vadd.f32 %v3766, %v3958
  %v4009 = vadd.f32 %v3767, %v3961
  %v4010 = vadd.f32 %v3768, %v3966
  %v4011 = vadd.f32 %v3769, %v3969
  %v4012 = vadd.f32 %v3770, %v3974
  %v4013 = vadd.f32 %v3771, %v3977
  %v4014 = vadd.f32 %v3772, %v3982
  %v4015 = vadd.f32 %v3773, %v3985
  %v4016 = vadd.f32 %v3774, %v3990
  %v4017 = vadd.f32 %v3775, %v3993
  %v4018 = vadd.f32 %v3776, %v3998
  %v4019 = vadd.f32 %v3777, %v4001
  %v4020 = vld [vmem:[%s2844] sm:$0xf]
  %v4021 = vld [vmem:[%s2844 + $0x4] sm:$0xf]
  %v4022 = vld [vmem:[%s2844 + $0x8] sm:$0x1]
  %v4023 = vld [vmem:[%s2844 + $0xc] sm:$0xf]
  %v4024 = vld [vmem:[%s2844 + $0x10] sm:$0xf]
  %v4025 = vld [vmem:[%s2844 + $0x14] sm:$0x1]
  %v4026 = vld [vmem:[%s2844 + $0x18] sm:$0xf]
  %v4027 = vld [vmem:[%s2844 + $0x1c] sm:$0xf]
  %v4028 = vld [vmem:[%s2844 + $0x20] sm:$0x1]
  %v4029 = vld [vmem:[%s2844 + $0x24] sm:$0xf]
  %v4030 = vld [vmem:[%s2844 + $0x28] sm:$0xf]
  %v4031 = vld [vmem:[%s2844 + $0x2c] sm:$0x1]
  %v4032 = vld [vmem:[%s2844 + $0x30] sm:$0xf]
  %v4033 = vld [vmem:[%s2844 + $0x34] sm:$0xf]
  %v4034 = vld [vmem:[%s2844 + $0x38] sm:$0x1]
  %v4035 = vld [vmem:[%s2844 + $0x3c] sm:$0xf]
  %v4036 = vld [vmem:[%s2844 + $0x40] sm:$0xf]
  %v4037 = vld [vmem:[%s2844 + $0x44] sm:$0x1]
  %v4038 = vld [vmem:[%s2844 + $0x48] sm:$0xf]
  %v4039 = vld [vmem:[%s2844 + $0x4c] sm:$0xf]
  %v4040 = vld [vmem:[%s2844 + $0x50] sm:$0x1]
  %v4041 = vld [vmem:[%s2844 + $0x54] sm:$0xf]
  %v4042 = vld [vmem:[%s2844 + $0x58] sm:$0xf]
  %v4043 = vld [vmem:[%s2844 + $0x5c] sm:$0x1]
  %v4045 = vshrl.u32 %v4020, 16
  %v4047 = vrot.slane %v4045, 4
  %v4048 = vshll.u32 %v4020, 16
  %v4050 = vrot.slane %v4048, 5
  %v4051 = vor.u32 %v4047, %v4050
  %v4052 = vrot.slane %v4051, 4
  %v4054 = vshll.u32 %v4021, 16
  %v4056 = vrot.slane %v4054, 5
  %v4057 = vsel %vm926, %v4052, %v4056
  %v4058 = vshrl.u32 %v4021, 16
  %v4060 = vrot.slane %v4058, 4
  %v4061 = vor.u32 %v4060, %v4056
  %v4062 = vrot.slane %v4061, 4
  %v4064 = vshll.u32 %v4022, 16
  %v4066 = vrot.slane %v4064, 5
  %v4067 = vsel %vm926, %v4062, %v4066
  %v4069 = vshrl.u32 %v4023, 16
  %v4071 = vrot.slane %v4069, 4
  %v4072 = vshll.u32 %v4023, 16
  %v4074 = vrot.slane %v4072, 5
  %v4075 = vor.u32 %v4071, %v4074
  %v4076 = vrot.slane %v4075, 4
  %v4078 = vshll.u32 %v4024, 16
  %v4080 = vrot.slane %v4078, 5
  %v4081 = vsel %vm926, %v4076, %v4080
  %v4082 = vshrl.u32 %v4024, 16
  %v4084 = vrot.slane %v4082, 4
  %v4085 = vor.u32 %v4084, %v4080
  %v4086 = vrot.slane %v4085, 4
  %v4088 = vshll.u32 %v4025, 16
  %v4090 = vrot.slane %v4088, 5
  %v4091 = vsel %vm926, %v4086, %v4090
  %v4093 = vshrl.u32 %v4026, 16
  %v4095 = vrot.slane %v4093, 4
  %v4096 = vshll.u32 %v4026, 16
  %v4098 = vrot.slane %v4096, 5
  %v4099 = vor.u32 %v4095, %v4098
  %v4100 = vrot.slane %v4099, 4
  %v4102 = vshll.u32 %v4027, 16
  %v4104 = vrot.slane %v4102, 5
  %v4105 = vsel %vm926, %v4100, %v4104
  %v4106 = vshrl.u32 %v4027, 16
  %v4108 = vrot.slane %v4106, 4
  %v4109 = vor.u32 %v4108, %v4104
  %v4110 = vrot.slane %v4109, 4
  %v4112 = vshll.u32 %v4028, 16
  %v4114 = vrot.slane %v4112, 5
  %v4115 = vsel %vm926, %v4110, %v4114
  %v4117 = vshrl.u32 %v4029, 16
  %v4119 = vrot.slane %v4117, 4
  %v4120 = vshll.u32 %v4029, 16
  %v4122 = vrot.slane %v4120, 5
  %v4123 = vor.u32 %v4119, %v4122
  %v4124 = vrot.slane %v4123, 4
  %v4126 = vshll.u32 %v4030, 16
  %v4128 = vrot.slane %v4126, 5
  %v4129 = vsel %vm926, %v4124, %v4128
  %v4130 = vshrl.u32 %v4030, 16
  %v4132 = vrot.slane %v4130, 4
  %v4133 = vor.u32 %v4132, %v4128
  %v4134 = vrot.slane %v4133, 4
  %v4136 = vshll.u32 %v4031, 16
  %v4138 = vrot.slane %v4136, 5
  %v4139 = vsel %vm926, %v4134, %v4138
  %v4141 = vshrl.u32 %v4032, 16
  %v4143 = vrot.slane %v4141, 4
  %v4144 = vshll.u32 %v4032, 16
  %v4146 = vrot.slane %v4144, 5
  %v4147 = vor.u32 %v4143, %v4146
  %v4148 = vrot.slane %v4147, 4
  %v4150 = vshll.u32 %v4033, 16
  %v4152 = vrot.slane %v4150, 5
  %v4153 = vsel %vm926, %v4148, %v4152
  %v4154 = vshrl.u32 %v4033, 16
  %v4156 = vrot.slane %v4154, 4
  %v4157 = vor.u32 %v4156, %v4152
  %v4158 = vrot.slane %v4157, 4
  %v4160 = vshll.u32 %v4034, 16
  %v4162 = vrot.slane %v4160, 5
  %v4163 = vsel %vm926, %v4158, %v4162
  %v4165 = vshrl.u32 %v4035, 16
  %v4167 = vrot.slane %v4165, 4
  %v4168 = vshll.u32 %v4035, 16
  %v4170 = vrot.slane %v4168, 5
  %v4171 = vor.u32 %v4167, %v4170
  %v4172 = vrot.slane %v4171, 4
  %v4174 = vshll.u32 %v4036, 16
  %v4176 = vrot.slane %v4174, 5
  %v4177 = vsel %vm926, %v4172, %v4176
  %v4178 = vshrl.u32 %v4036, 16
  %v4180 = vrot.slane %v4178, 4
  %v4181 = vor.u32 %v4180, %v4176
  %v4182 = vrot.slane %v4181, 4
  %v4184 = vshll.u32 %v4037, 16
  %v4186 = vrot.slane %v4184, 5
  %v4187 = vsel %vm926, %v4182, %v4186
  %v4189 = vshrl.u32 %v4038, 16
  %v4191 = vrot.slane %v4189, 4
  %v4192 = vshll.u32 %v4038, 16
  %v4194 = vrot.slane %v4192, 5
  %v4195 = vor.u32 %v4191, %v4194
  %v4196 = vrot.slane %v4195, 4
  %v4198 = vshll.u32 %v4039, 16
  %v4200 = vrot.slane %v4198, 5
  %v4201 = vsel %vm926, %v4196, %v4200
  %v4202 = vshrl.u32 %v4039, 16
  %v4204 = vrot.slane %v4202, 4
  %v4205 = vor.u32 %v4204, %v4200
  %v4206 = vrot.slane %v4205, 4
  %v4208 = vshll.u32 %v4040, 16
  %v4210 = vrot.slane %v4208, 5
  %v4211 = vsel %vm926, %v4206, %v4210
  %v4213 = vshrl.u32 %v4041, 16
  %v4215 = vrot.slane %v4213, 4
  %v4216 = vshll.u32 %v4041, 16
  %v4218 = vrot.slane %v4216, 5
  %v4219 = vor.u32 %v4215, %v4218
  %v4220 = vrot.slane %v4219, 4
  %v4222 = vshll.u32 %v4042, 16
  %v4224 = vrot.slane %v4222, 5
  %v4225 = vsel %vm926, %v4220, %v4224
  %v4226 = vshrl.u32 %v4042, 16
  %v4228 = vrot.slane %v4226, 4
  %v4229 = vor.u32 %v4228, %v4224
  %v4230 = vrot.slane %v4229, 4
  %v4232 = vshll.u32 %v4043, 16
  %v4234 = vrot.slane %v4232, 5
  %v4235 = vsel %vm926, %v4230, %v4234
  %s4236 = scalar_lea.vmem %s9, 256
  %v4237 = vld [vmem:[%s4236] sm:$0xf]
  %v4238 = vld [vmem:[%s4236 + $0x4] sm:$0xf]
  %v4239 = vld [vmem:[%s4236 + $0x8] sm:$0xf]
  %v4240 = vld [vmem:[%s4236 + $0xc] sm:$0xf]
  %v4241 = vld [vmem:[%s4236 + $0x10] sm:$0xf]
  %v4242 = vld [vmem:[%s4236 + $0x14] sm:$0xf]
  %v4243 = vld [vmem:[%s4236 + $0x18] sm:$0xf]
  %v4244 = vld [vmem:[%s4236 + $0x1c] sm:$0xf]
  %v4245 = vld [vmem:[%s4236 + $0x20] sm:$0xf]
  %v4246 = vld [vmem:[%s4236 + $0x24] sm:$0xf]
  %v4247 = vld [vmem:[%s4236 + $0x28] sm:$0xf]
  %v4248 = vld [vmem:[%s4236 + $0x2c] sm:$0xf]
  %v4249 = vld [vmem:[%s4236 + $0x30] sm:$0xf]
  %v4250 = vld [vmem:[%s4236 + $0x34] sm:$0xf]
  %v4251 = vld [vmem:[%s4236 + $0x38] sm:$0xf]
  %v4252 = vld [vmem:[%s4236 + $0x3c] sm:$0xf]
  %v4253 = vunpack.c.l.b16 %v4057
  %v4254 = vunpack.c.l.b16 %v4067
  %v4255 = vunpack.c.l.b16 %v4081
  %v4256 = vunpack.c.l.b16 %v4091
  %v4257 = vunpack.c.l.b16 %v4105
  %v4258 = vunpack.c.l.b16 %v4115
  %v4259 = vunpack.c.l.b16 %v4129
  %v4260 = vunpack.c.l.b16 %v4139
  %v4261 = vunpack.c.l.b16 %v4153
  %v4262 = vunpack.c.l.b16 %v4163
  %v4263 = vunpack.c.l.b16 %v4177
  %v4264 = vunpack.c.l.b16 %v4187
  %v4265 = vunpack.c.l.b16 %v4201
  %v4266 = vunpack.c.l.b16 %v4211
  %v4267 = vunpack.c.l.b16 %v4225
  %v4268 = vunpack.c.l.b16 %v4235
  %v4269 = vpack.c.b16 %v4254, %v4253
  %v4270 = vpack.c.b16 %v4256, %v4255
  %v4271 = vpack.c.b16 %v4258, %v4257
  %v4272 = vpack.c.b16 %v4260, %v4259
  %v4273 = vpack.c.b16 %v4262, %v4261
  %v4274 = vpack.c.b16 %v4264, %v4263
  %v4275 = vpack.c.b16 %v4266, %v4265
  %v4276 = vpack.c.b16 %v4268, %v4267
  %v4301 = vunpack.c.l.b16 %v4237
  %v4302 = vunpack.c.l.b16 %v4238
  %v4303 = vunpack.c.l.b16 %v4239
  %v4304 = vunpack.c.l.b16 %v4240
  %v4305 = vunpack.c.l.b16 %v4241
  %v4306 = vunpack.c.l.b16 %v4242
  %v4307 = vunpack.c.l.b16 %v4243
  %v4308 = vunpack.c.l.b16 %v4244
  %v4309 = vunpack.c.l.b16 %v4245
  %v4310 = vunpack.c.l.b16 %v4246
  %v4311 = vunpack.c.l.b16 %v4247
  %v4312 = vunpack.c.l.b16 %v4248
  %v4313 = vunpack.c.l.b16 %v4249
  %v4314 = vunpack.c.l.b16 %v4250
  %v4315 = vunpack.c.l.b16 %v4251
  %v4316 = vunpack.c.l.b16 %v4252
  %v4317 = vpack.c.b16 %v4302, %v4301
  %v4318 = vpack.c.b16 %v4304, %v4303
  %v4319 = vpack.c.b16 %v4306, %v4305
  %v4320 = vpack.c.b16 %v4308, %v4307
  %v4321 = vpack.c.b16 %v4310, %v4309
  %v4322 = vpack.c.b16 %v4312, %v4311
  %v4323 = vpack.c.b16 %v4314, %v4313
  %v4324 = vpack.c.b16 %v4316, %v4315
  %4333 = vmatprep.subr.bf16.mxu0 0
  %4334 = vmatpush1.bf16.msra.mxu0 %v4317
  %4335 = vmatprep.subr.bf16.mxu0 0
  %4336 = vmatpush1.bf16.msra.mxu0 %v4318
  %4337 = vmatprep.subr.bf16.mxu0 0
  %4338 = vmatpush1.bf16.msra.mxu0 %v4319
  %4339 = vmatprep.subr.bf16.mxu0 0
  %4340 = vmatpush1.bf16.msra.mxu0 %v4320
  %4341 = vmatprep.subr.bf16.mxu0 0
  %4342 = vmatpush1.bf16.msra.mxu0 %v4321
  %4343 = vmatprep.subr.bf16.mxu0 0
  %4344 = vmatpush1.bf16.msra.mxu0 %v4322
  %4345 = vmatprep.subr.bf16.mxu0 0
  %4346 = vmatpush1.bf16.msra.mxu0 %v4323
  %4347 = vmatprep.subr.bf16.mxu0 0
  %4348 = vmatpush1.bf16.msra.mxu0 %v4324
  %4349 = vmatprep.subr.bf16.mxu0 0
  %4350 = vmatpush1.bf16.msra.mxu0 0
  %4351 = vmatprep.subr.bf16.mxu0 0
  %4352 = vmatpush1.bf16.msra.mxu0 0
  %4353 = vmatprep.subr.bf16.mxu0 0
  %4354 = vmatpush1.bf16.msra.mxu0 0
  %4355 = vmatprep.subr.bf16.mxu0 0
  %4356 = vmatpush1.bf16.msra.mxu0 0
  %4357 = vmatprep.subr.bf16.mxu0 0
  %4358 = vmatpush1.bf16.msra.mxu0 0
  %4359 = vmatprep.subr.bf16.mxu0 0
  %4360 = vmatpush1.bf16.msra.mxu0 0
  %4361 = vmatprep.subr.bf16.mxu0 0
  %4362 = vmatpush1.bf16.msra.mxu0 0
  %4363 = vmatprep.subr.bf16.mxu0 0
  %4364 = vmatpush1.bf16.msra.mxu0 0
  %4365 = vmatprep.mubr.bf16.mxu0 0
  %4366 = vmatmul.mubr.bf16.gmra.mrb[0].mxu0 %v4269
  %v4367 = vpop.f32.mrb[0].mxu0
  %v4368 = vadd.f32 0.0, %v4367
  %v4369 = vpop.f32.mrb[0].mxu0
  %v4370 = vpop.f32.mrb[0].mxu0
  %v4371 = vadd.f32 0.0, %v4370
  %v4372 = vpop.f32.mrb[0].mxu0
  %4373 = vmatprep.mubr.bf16.mxu0 0
  %4374 = vmatmul.mubr.bf16.gmra.mrb[0].mxu0 %v4270
  %v4375 = vpop.f32.mrb[0].mxu0
  %v4376 = vadd.f32 0.0, %v4375
  %v4377 = vpop.f32.mrb[0].mxu0
  %v4378 = vpop.f32.mrb[0].mxu0
  %v4379 = vadd.f32 0.0, %v4378
  %v4380 = vpop.f32.mrb[0].mxu0
  %4381 = vmatprep.mubr.bf16.mxu0 0
  %4382 = vmatmul.mubr.bf16.gmra.mrb[0].mxu0 %v4271
  %v4383 = vpop.f32.mrb[0].mxu0
  %v4384 = vadd.f32 0.0, %v4383
  %v4385 = vpop.f32.mrb[0].mxu0
  %v4386 = vpop.f32.mrb[0].mxu0
  %v4387 = vadd.f32 0.0, %v4386
  %v4388 = vpop.f32.mrb[0].mxu0
  %4389 = vmatprep.mubr.bf16.mxu0 0
  %4390 = vmatmul.mubr.bf16.gmra.mrb[0].mxu0 %v4272
  %v4391 = vpop.f32.mrb[0].mxu0
  %v4392 = vadd.f32 0.0, %v4391
  %v4393 = vpop.f32.mrb[0].mxu0
  %v4394 = vpop.f32.mrb[0].mxu0
  %v4395 = vadd.f32 0.0, %v4394
  %v4396 = vpop.f32.mrb[0].mxu0
  %4397 = vmatprep.mubr.bf16.mxu0 0
  %4398 = vmatmul.mubr.bf16.gmra.mrb[0].mxu0 %v4273
  %v4399 = vpop.f32.mrb[0].mxu0
  %v4400 = vadd.f32 0.0, %v4399
  %v4401 = vpop.f32.mrb[0].mxu0
  %v4402 = vpop.f32.mrb[0].mxu0
  %v4403 = vadd.f32 0.0, %v4402
  %v4404 = vpop.f32.mrb[0].mxu0
  %4405 = vmatprep.mubr.bf16.mxu0 0
  %4406 = vmatmul.mubr.bf16.gmra.mrb[0].mxu0 %v4274
  %v4407 = vpop.f32.mrb[0].mxu0
  %v4408 = vadd.f32 0.0, %v4407
  %v4409 = vpop.f32.mrb[0].mxu0
  %v4410 = vpop.f32.mrb[0].mxu0
  %v4411 = vadd.f32 0.0, %v4410
  %v4412 = vpop.f32.mrb[0].mxu0
  %4413 = vmatprep.mubr.bf16.mxu0 0
  %4414 = vmatmul.mubr.bf16.gmra.mrb[0].mxu0 %v4275
  %v4415 = vpop.f32.mrb[0].mxu0
  %v4416 = vadd.f32 0.0, %v4415
  %v4417 = vpop.f32.mrb[0].mxu0
  %v4418 = vpop.f32.mrb[0].mxu0
  %v4419 = vadd.f32 0.0, %v4418
  %v4420 = vpop.f32.mrb[0].mxu0
  %4421 = vmatprep.mubr.bf16.mxu0 0
  %4422 = vmatmul.mubr.bf16.gmra.mrb[0].mxu0 %v4276
  %v4423 = vpop.f32.mrb[0].mxu0
  %v4424 = vadd.f32 0.0, %v4423
  %v4425 = vpop.f32.mrb[0].mxu0
  %v4426 = vpop.f32.mrb[0].mxu0
  %v4427 = vadd.f32 0.0, %v4426
  %v4428 = vpop.f32.mrb[0].mxu0
  %4429 = vdwg.mxu0
  %v4430 = vadd.f32 %v4004, %v4368
  %v4431 = vadd.f32 %v4005, %v4371
  %v4432 = vadd.f32 %v4006, %v4376
  %v4433 = vadd.f32 %v4007, %v4379
  %v4434 = vadd.f32 %v4008, %v4384
  %v4435 = vadd.f32 %v4009, %v4387
  %v4436 = vadd.f32 %v4010, %v4392
  %v4437 = vadd.f32 %v4011, %v4395
  %v4438 = vadd.f32 %v4012, %v4400
  %v4439 = vadd.f32 %v4013, %v4403
  %v4440 = vadd.f32 %v4014, %v4408
  %v4441 = vadd.f32 %v4015, %v4411
  %v4442 = vadd.f32 %v4016, %v4416
  %v4443 = vadd.f32 %v4017, %v4419
  %v4444 = vadd.f32 %v4018, %v4424
  %v4445 = vadd.f32 %v4019, %v4427
  %v4446 = vld [vmem:[%s2844] sm:$0xe]
  %v4447 = vld [vmem:[%s2844 + $0xc] sm:$0xe]
  %v4448 = vld [vmem:[%s2844 + $0x18] sm:$0xe]
  %v4449 = vld [vmem:[%s2844 + $0x24] sm:$0xe]
  %v4450 = vld [vmem:[%s2844 + $0x30] sm:$0xe]
  %v4451 = vld [vmem:[%s2844 + $0x3c] sm:$0xe]
  %v4452 = vld [vmem:[%s2844 + $0x48] sm:$0xe]
  %v4453 = vld [vmem:[%s2844 + $0x54] sm:$0xe]
  %v4478 = vrot.slane %v4446, 5
  %v4479 = vrot.slane %v4478, 4
  %v4480 = vrot.slane %v4021, 5
  %v4481 = vsel %vm1908, %v4479, %v4480
  %v4482 = vrot.slane %v4480, 4
  %v4483 = vrot.slane %v4022, 5
  %v4484 = vsel %vm1908, %v4482, %v4483
  %v4485 = vrot.slane %v4447, 5
  %v4486 = vrot.slane %v4485, 4
  %v4487 = vrot.slane %v4024, 5
  %v4488 = vsel %vm1908, %v4486, %v4487
  %v4489 = vrot.slane %v4487, 4
  %v4490 = vrot.slane %v4025, 5
  %v4491 = vsel %vm1908, %v4489, %v4490
  %v4492 = vrot.slane %v4448, 5
  %v4493 = vrot.slane %v4492, 4
  %v4494 = vrot.slane %v4027, 5
  %v4495 = vsel %vm1908, %v4493, %v4494
  %v4496 = vrot.slane %v4494, 4
  %v4497 = vrot.slane %v4028, 5
  %v4498 = vsel %vm1908, %v4496, %v4497
  %v4499 = vrot.slane %v4449, 5
  %v4500 = vrot.slane %v4499, 4
  %v4501 = vrot.slane %v4030, 5
  %v4502 = vsel %vm1908, %v4500, %v4501
  %v4503 = vrot.slane %v4501, 4
  %v4504 = vrot.slane %v4031, 5
  %v4505 = vsel %vm1908, %v4503, %v4504
  %v4506 = vrot.slane %v4450, 5
  %v4507 = vrot.slane %v4506, 4
  %v4508 = vrot.slane %v4033, 5
  %v4509 = vsel %vm1908, %v4507, %v4508
  %v4510 = vrot.slane %v4508, 4
  %v4511 = vrot.slane %v4034, 5
  %v4512 = vsel %vm1908, %v4510, %v4511
  %v4513 = vrot.slane %v4451, 5
  %v4514 = vrot.slane %v4513, 4
  %v4515 = vrot.slane %v4036, 5
  %v4516 = vsel %vm1908, %v4514, %v4515
  %v4517 = vrot.slane %v4515, 4
  %v4518 = vrot.slane %v4037, 5
  %v4519 = vsel %vm1908, %v4517, %v4518
  %v4520 = vrot.slane %v4452, 5
  %v4521 = vrot.slane %v4520, 4
  %v4522 = vrot.slane %v4039, 5
  %v4523 = vsel %vm1908, %v4521, %v4522
  %v4524 = vrot.slane %v4522, 4
  %v4525 = vrot.slane %v4040, 5
  %v4526 = vsel %vm1908, %v4524, %v4525
  %v4527 = vrot.slane %v4453, 5
  %v4528 = vrot.slane %v4527, 4
  %v4529 = vrot.slane %v4042, 5
  %v4530 = vsel %vm1908, %v4528, %v4529
  %v4531 = vrot.slane %v4529, 4
  %v4532 = vrot.slane %v4043, 5
  %v4533 = vsel %vm1908, %v4531, %v4532
  %s4534 = scalar_lea.vmem %s9, 320
  %v4535 = vld [vmem:[%s4534] sm:$0xf]
  %v4536 = vld [vmem:[%s4534 + $0x4] sm:$0xf]
  %v4537 = vld [vmem:[%s4534 + $0x8] sm:$0xf]
  %v4538 = vld [vmem:[%s4534 + $0xc] sm:$0xf]
  %v4539 = vld [vmem:[%s4534 + $0x10] sm:$0xf]
  %v4540 = vld [vmem:[%s4534 + $0x14] sm:$0xf]
  %v4541 = vld [vmem:[%s4534 + $0x18] sm:$0xf]
  %v4542 = vld [vmem:[%s4534 + $0x1c] sm:$0xf]
  %v4543 = vld [vmem:[%s4534 + $0x20] sm:$0xf]
  %v4544 = vld [vmem:[%s4534 + $0x24] sm:$0xf]
  %v4545 = vld [vmem:[%s4534 + $0x28] sm:$0xf]
  %v4546 = vld [vmem:[%s4534 + $0x2c] sm:$0xf]
  %v4547 = vld [vmem:[%s4534 + $0x30] sm:$0xf]
  %v4548 = vld [vmem:[%s4534 + $0x34] sm:$0xf]
  %v4549 = vld [vmem:[%s4534 + $0x38] sm:$0xf]
  %v4550 = vld [vmem:[%s4534 + $0x3c] sm:$0xf]
  %v4551 = vunpack.c.l.b16 %v4481
  %v4552 = vunpack.c.l.b16 %v4484
  %v4553 = vunpack.c.l.b16 %v4488
  %v4554 = vunpack.c.l.b16 %v4491
  %v4555 = vunpack.c.l.b16 %v4495
  %v4556 = vunpack.c.l.b16 %v4498
  %v4557 = vunpack.c.l.b16 %v4502
  %v4558 = vunpack.c.l.b16 %v4505
  %v4559 = vunpack.c.l.b16 %v4509
  %v4560 = vunpack.c.l.b16 %v4512
  %v4561 = vunpack.c.l.b16 %v4516
  %v4562 = vunpack.c.l.b16 %v4519
  %v4563 = vunpack.c.l.b16 %v4523
  %v4564 = vunpack.c.l.b16 %v4526
  %v4565 = vunpack.c.l.b16 %v4530
  %v4566 = vunpack.c.l.b16 %v4533
  %v4567 = vpack.c.b16 %v4552, %v4551
  %v4568 = vpack.c.b16 %v4554, %v4553
  %v4569 = vpack.c.b16 %v4556, %v4555
  %v4570 = vpack.c.b16 %v4558, %v4557
  %v4571 = vpack.c.b16 %v4560, %v4559
  %v4572 = vpack.c.b16 %v4562, %v4561
  %v4573 = vpack.c.b16 %v4564, %v4563
  %v4574 = vpack.c.b16 %v4566, %v4565
  %v4599 = vunpack.c.l.b16 %v4535
  %v4600 = vunpack.c.l.b16 %v4536
  %v4601 = vunpack.c.l.b16 %v4537
  %v4602 = vunpack.c.l.b16 %v4538
  %v4603 = vunpack.c.l.b16 %v4539
  %v4604 = vunpack.c.l.b16 %v4540
  %v4605 = vunpack.c.l.b16 %v4541
  %v4606 = vunpack.c.l.b16 %v4542
  %v4607 = vunpack.c.l.b16 %v4543
  %v4608 = vunpack.c.l.b16 %v4544
  %v4609 = vunpack.c.l.b16 %v4545
  %v4610 = vunpack.c.l.b16 %v4546
  %v4611 = vunpack.c.l.b16 %v4547
  %v4612 = vunpack.c.l.b16 %v4548
  %v4613 = vunpack.c.l.b16 %v4549
  %v4614 = vunpack.c.l.b16 %v4550
  %v4615 = vpack.c.b16 %v4600, %v4599
  %v4616 = vpack.c.b16 %v4602, %v4601
  %v4617 = vpack.c.b16 %v4604, %v4603
  %v4618 = vpack.c.b16 %v4606, %v4605
  %v4619 = vpack.c.b16 %v4608, %v4607
  %v4620 = vpack.c.b16 %v4610, %v4609
  %v4621 = vpack.c.b16 %v4612, %v4611
  %v4622 = vpack.c.b16 %v4614, %v4613
  %4631 = vmatprep.subr.bf16.mxu0 0
  %4632 = vmatpush1.bf16.msra.mxu0 %v4615
  %4633 = vmatprep.subr.bf16.mxu0 0
  %4634 = vmatpush1.bf16.msra.mxu0 %v4616
  %4635 = vmatprep.subr.bf16.mxu0 0
  %4636 = vmatpush1.bf16.msra.mxu0 %v4617
  %4637 = vmatprep.subr.bf16.mxu0 0
  %4638 = vmatpush1.bf16.msra.mxu0 %v4618
  %4639 = vmatprep.subr.bf16.mxu0 0
  %4640 = vmatpush1.bf16.msra.mxu0 %v4619
  %4641 = vmatprep.subr.bf16.mxu0 0
  %4642 = vmatpush1.bf16.msra.mxu0 %v4620
  %4643 = vmatprep.subr.bf16.mxu0 0
  %4644 = vmatpush1.bf16.msra.mxu0 %v4621
  %4645 = vmatprep.subr.bf16.mxu0 0
  %4646 = vmatpush1.bf16.msra.mxu0 %v4622
  %4647 = vmatprep.subr.bf16.mxu0 0
  %4648 = vmatpush1.bf16.msra.mxu0 0
  %4649 = vmatprep.subr.bf16.mxu0 0
  %4650 = vmatpush1.bf16.msra.mxu0 0
  %4651 = vmatprep.subr.bf16.mxu0 0
  %4652 = vmatpush1.bf16.msra.mxu0 0
  %4653 = vmatprep.subr.bf16.mxu0 0
  %4654 = vmatpush1.bf16.msra.mxu0 0
  %4655 = vmatprep.subr.bf16.mxu0 0
  %4656 = vmatpush1.bf16.msra.mxu0 0
  %4657 = vmatprep.subr.bf16.mxu0 0
  %4658 = vmatpush1.bf16.msra.mxu0 0
  %4659 = vmatprep.subr.bf16.mxu0 0
  %4660 = vmatpush1.bf16.msra.mxu0 0
  %4661 = vmatprep.subr.bf16.mxu0 0
  %4662 = vmatpush1.bf16.msra.mxu0 0
  %4663 = vmatprep.mubr.bf16.mxu0 0
  %4664 = vmatmul.mubr.bf16.gmra.mrb[0].mxu0 %v4567
  %v4665 = vpop.f32.mrb[0].mxu0
  %v4666 = vadd.f32 0.0, %v4665
  %v4667 = vpop.f32.mrb[0].mxu0
  %v4668 = vpop.f32.mrb[0].mxu0
  %v4669 = vadd.f32 0.0, %v4668
  %v4670 = vpop.f32.mrb[0].mxu0
  %4671 = vmatprep.mubr.bf16.mxu0 0
  %4672 = vmatmul.mubr.bf16.gmra.mrb[0].mxu0 %v4568
  %v4673 = vpop.f32.mrb[0].mxu0
  %v4674 = vadd.f32 0.0, %v4673
  %v4675 = vpop.f32.mrb[0].mxu0
  %v4676 = vpop.f32.mrb[0].mxu0
  %v4677 = vadd.f32 0.0, %v4676
  %v4678 = vpop.f32.mrb[0].mxu0
  %4679 = vmatprep.mubr.bf16.mxu0 0
  %4680 = vmatmul.mubr.bf16.gmra.mrb[0].mxu0 %v4569
  %v4681 = vpop.f32.mrb[0].mxu0
  %v4682 = vadd.f32 0.0, %v4681
  %v4683 = vpop.f32.mrb[0].mxu0
  %v4684 = vpop.f32.mrb[0].mxu0
  %v4685 = vadd.f32 0.0, %v4684
  %v4686 = vpop.f32.mrb[0].mxu0
  %4687 = vmatprep.mubr.bf16.mxu0 0
  %4688 = vmatmul.mubr.bf16.gmra.mrb[0].mxu0 %v4570
  %v4689 = vpop.f32.mrb[0].mxu0
  %v4690 = vadd.f32 0.0, %v4689
  %v4691 = vpop.f32.mrb[0].mxu0
  %v4692 = vpop.f32.mrb[0].mxu0
  %v4693 = vadd.f32 0.0, %v4692
  %v4694 = vpop.f32.mrb[0].mxu0
  %4695 = vmatprep.mubr.bf16.mxu0 0
  %4696 = vmatmul.mubr.bf16.gmra.mrb[0].mxu0 %v4571
  %v4697 = vpop.f32.mrb[0].mxu0
  %v4698 = vadd.f32 0.0, %v4697
  %v4699 = vpop.f32.mrb[0].mxu0
  %v4700 = vpop.f32.mrb[0].mxu0
  %v4701 = vadd.f32 0.0, %v4700
  %v4702 = vpop.f32.mrb[0].mxu0
  %4703 = vmatprep.mubr.bf16.mxu0 0
  %4704 = vmatmul.mubr.bf16.gmra.mrb[0].mxu0 %v4572
  %v4705 = vpop.f32.mrb[0].mxu0
  %v4706 = vadd.f32 0.0, %v4705
  %v4707 = vpop.f32.mrb[0].mxu0
  %v4708 = vpop.f32.mrb[0].mxu0
  %v4709 = vadd.f32 0.0, %v4708
  %v4710 = vpop.f32.mrb[0].mxu0
  %4711 = vmatprep.mubr.bf16.mxu0 0
  %4712 = vmatmul.mubr.bf16.gmra.mrb[0].mxu0 %v4573
  %v4713 = vpop.f32.mrb[0].mxu0
  %v4714 = vadd.f32 0.0, %v4713
  %v4715 = vpop.f32.mrb[0].mxu0
  %v4716 = vpop.f32.mrb[0].mxu0
  %v4717 = vadd.f32 0.0, %v4716
  %v4718 = vpop.f32.mrb[0].mxu0
  %4719 = vmatprep.mubr.bf16.mxu0 0
  %4720 = vmatmul.mubr.bf16.gmra.mrb[0].mxu0 %v4574
  %v4721 = vpop.f32.mrb[0].mxu0
  %v4722 = vadd.f32 0.0, %v4721
  %v4723 = vpop.f32.mrb[0].mxu0
  %v4724 = vpop.f32.mrb[0].mxu0
  %v4725 = vadd.f32 0.0, %v4724
  %v4726 = vpop.f32.mrb[0].mxu0
  %4727 = vdwg.mxu0
  %v4728 = vadd.f32 %v4430, %v4666
  %v4729 = vadd.f32 %v4431, %v4669
  %v4730 = vadd.f32 %v4432, %v4674
  %v4731 = vadd.f32 %v4433, %v4677
  %v4732 = vadd.f32 %v4434, %v4682
  %v4733 = vadd.f32 %v4435, %v4685
  %v4734 = vadd.f32 %v4436, %v4690
  %v4735 = vadd.f32 %v4437, %v4693
  %v4736 = vadd.f32 %v4438, %v4698
  %v4737 = vadd.f32 %v4439, %v4701
  %v4738 = vadd.f32 %v4440, %v4706
  %v4739 = vadd.f32 %v4441, %v4709
  %v4740 = vadd.f32 %v4442, %v4714
  %v4741 = vadd.f32 %v4443, %v4717
  %v4742 = vadd.f32 %v4444, %v4722
  %v4743 = vadd.f32 %v4445, %v4725
  %s4744 = scalar_lea.vmem [#allocation3], 24
  %v4745 = vld [vmem:[%s4744] sm:$0xf]
  %v4746 = vld [vmem:[%s4744 + $0x4] sm:$0xf]
  %v4747 = vld [vmem:[%s4744 + $0xc] sm:$0xf]
  %v4748 = vld [vmem:[%s4744 + $0x10] sm:$0xf]
  %v4749 = vld [vmem:[%s4744 + $0x18] sm:$0xf]
  %v4750 = vld [vmem:[%s4744 + $0x1c] sm:$0xf]
  %v4751 = vld [vmem:[%s4744 + $0x24] sm:$0xf]
  %v4752 = vld [vmem:[%s4744 + $0x28] sm:$0xf]
  %v4753 = vld [vmem:[%s4744 + $0x30] sm:$0xf]
  %v4754 = vld [vmem:[%s4744 + $0x34] sm:$0xf]
  %v4755 = vld [vmem:[%s4744 + $0x3c] sm:$0xf]
  %v4756 = vld [vmem:[%s4744 + $0x40] sm:$0xf]
  %v4757 = vld [vmem:[%s4744 + $0x48] sm:$0xf]
  %v4758 = vld [vmem:[%s4744 + $0x4c] sm:$0xf]
  %v4759 = vld [vmem:[%s4744 + $0x54] sm:$0xf]
  %v4760 = vld [vmem:[%s4744 + $0x58] sm:$0xf]
  %s4761 = scalar_lea.vmem %s9, 384
  %v4762 = vld [vmem:[%s4761] sm:$0xf]
  %v4763 = vld [vmem:[%s4761 + $0x4] sm:$0xf]
  %v4764 = vld [vmem:[%s4761 + $0x8] sm:$0xf]
  %v4765 = vld [vmem:[%s4761 + $0xc] sm:$0xf]
  %v4766 = vld [vmem:[%s4761 + $0x10] sm:$0xf]
  %v4767 = vld [vmem:[%s4761 + $0x14] sm:$0xf]
  %v4768 = vld [vmem:[%s4761 + $0x18] sm:$0xf]
  %v4769 = vld [vmem:[%s4761 + $0x1c] sm:$0xf]
  %v4770 = vld [vmem:[%s4761 + $0x20] sm:$0xf]
  %v4771 = vld [vmem:[%s4761 + $0x24] sm:$0xf]
  %v4772 = vld [vmem:[%s4761 + $0x28] sm:$0xf]
  %v4773 = vld [vmem:[%s4761 + $0x2c] sm:$0xf]
  %v4774 = vld [vmem:[%s4761 + $0x30] sm:$0xf]
  %v4775 = vld [vmem:[%s4761 + $0x34] sm:$0xf]
  %v4776 = vld [vmem:[%s4761 + $0x38] sm:$0xf]
  %v4777 = vld [vmem:[%s4761 + $0x3c] sm:$0xf]
  %v4794 = vunpack.c.l.b16 %v4745
  %v4795 = vunpack.c.l.b16 %v4746
  %v4796 = vunpack.c.l.b16 %v4747
  %v4797 = vunpack.c.l.b16 %v4748
  %v4798 = vunpack.c.l.b16 %v4749
  %v4799 = vunpack.c.l.b16 %v4750
  %v4800 = vunpack.c.l.b16 %v4751
  %v4801 = vunpack.c.l.b16 %v4752
  %v4802 = vunpack.c.l.b16 %v4753
  %v4803 = vunpack.c.l.b16 %v4754
  %v4804 = vunpack.c.l.b16 %v4755
  %v4805 = vunpack.c.l.b16 %v4756
  %v4806 = vunpack.c.l.b16 %v4757
  %v4807 = vunpack.c.l.b16 %v4758
  %v4808 = vunpack.c.l.b16 %v4759
  %v4809 = vunpack.c.l.b16 %v4760
  %v4810 = vpack.c.b16 %v4795, %v4794
  %v4811 = vpack.c.b16 %v4797, %v4796
  %v4812 = vpack.c.b16 %v4799, %v4798
  %v4813 = vpack.c.b16 %v4801, %v4800
  %v4814 = vpack.c.b16 %v4803, %v4802
  %v4815 = vpack.c.b16 %v4805, %v4804
  %v4816 = vpack.c.b16 %v4807, %v4806
  %v4817 = vpack.c.b16 %v4809, %v4808
  %v4842 = vunpack.c.l.b16 %v4762
  %v4843 = vunpack.c.l.b16 %v4763
  %v4844 = vunpack.c.l.b16 %v4764
  %v4845 = vunpack.c.l.b16 %v4765
  %v4846 = vunpack.c.l.b16 %v4766
  %v4847 = vunpack.c.l.b16 %v4767
  %v4848 = vunpack.c.l.b16 %v4768
  %v4849 = vunpack.c.l.b16 %v4769
  %v4850 = vunpack.c.l.b16 %v4770
  %v4851 = vunpack.c.l.b16 %v4771
  %v4852 = vunpack.c.l.b16 %v4772
  %v4853 = vunpack.c.l.b16 %v4773
  %v4854 = vunpack.c.l.b16 %v4774
  %v4855 = vunpack.c.l.b16 %v4775
  %v4856 = vunpack.c.l.b16 %v4776
  %v4857 = vunpack.c.l.b16 %v4777
  %v4858 = vpack.c.b16 %v4843, %v4842
  %v4859 = vpack.c.b16 %v4845, %v4844
  %v4860 = vpack.c.b16 %v4847, %v4846
  %v4861 = vpack.c.b16 %v4849, %v4848
  %v4862 = vpack.c.b16 %v4851, %v4850
  %v4863 = vpack.c.b16 %v4853, %v4852
  %v4864 = vpack.c.b16 %v4855, %v4854
  %v4865 = vpack.c.b16 %v4857, %v4856
  %4874 = vmatprep.subr.bf16.mxu0 0
  %4875 = vmatpush1.bf16.msra.mxu0 %v4858
  %4876 = vmatprep.subr.bf16.mxu0 0
  %4877 = vmatpush1.bf16.msra.mxu0 %v4859
  %4878 = vmatprep.subr.bf16.mxu0 0
  %4879 = vmatpush1.bf16.msra.mxu0 %v4860
  %4880 = vmatprep.subr.bf16.mxu0 0
  %4881 = vmatpush1.bf16.msra.mxu0 %v4861
  %4882 = vmatprep.subr.bf16.mxu0 0
  %4883 = vmatpush1.bf16.msra.mxu0 %v4862
  %4884 = vmatprep.subr.bf16.mxu0 0
  %4885 = vmatpush1.bf16.msra.mxu0 %v4863
  %4886 = vmatprep.subr.bf16.mxu0 0
  %4887 = vmatpush1.bf16.msra.mxu0 %v4864
  %4888 = vmatprep.subr.bf16.mxu0 0
  %4889 = vmatpush1.bf16.msra.mxu0 %v4865
  %4890 = vmatprep.subr.bf16.mxu0 0
  %4891 = vmatpush1.bf16.msra.mxu0 0
  %4892 = vmatprep.subr.bf16.mxu0 0
  %4893 = vmatpush1.bf16.msra.mxu0 0
  %4894 = vmatprep.subr.bf16.mxu0 0
  %4895 = vmatpush1.bf16.msra.mxu0 0
  %4896 = vmatprep.subr.bf16.mxu0 0
  %4897 = vmatpush1.bf16.msra.mxu0 0
  %4898 = vmatprep.subr.bf16.mxu0 0
  %4899 = vmatpush1.bf16.msra.mxu0 0
  %4900 = vmatprep.subr.bf16.mxu0 0
  %4901 = vmatpush1.bf16.msra.mxu0 0
  %4902 = vmatprep.subr.bf16.mxu0 0
  %4903 = vmatpush1.bf16.msra.mxu0 0
  %4904 = vmatprep.subr.bf16.mxu0 0
  %4905 = vmatpush1.bf16.msra.mxu0 0
  %4906 = vmatprep.mubr.bf16.mxu0 0
  %4907 = vmatmul.mubr.bf16.gmra.mrb[0].mxu0 %v4810
  %v4908 = vpop.f32.mrb[0].mxu0
  %v4909 = vadd.f32 0.0, %v4908
  %v4910 = vpop.f32.mrb[0].mxu0
  %v4911 = vpop.f32.mrb[0].mxu0
  %v4912 = vadd.f32 0.0, %v4911
  %v4913 = vpop.f32.mrb[0].mxu0
  %4914 = vmatprep.mubr.bf16.mxu0 0
  %4915 = vmatmul.mubr.bf16.gmra.mrb[0].mxu0 %v4811
  %v4916 = vpop.f32.mrb[0].mxu0
  %v4917 = vadd.f32 0.0, %v4916
  %v4918 = vpop.f32.mrb[0].mxu0
  %v4919 = vpop.f32.mrb[0].mxu0
  %v4920 = vadd.f32 0.0, %v4919
  %v4921 = vpop.f32.mrb[0].mxu0
  %4922 = vmatprep.mubr.bf16.mxu0 0
  %4923 = vmatmul.mubr.bf16.gmra.mrb[0].mxu0 %v4812
  %v4924 = vpop.f32.mrb[0].mxu0
  %v4925 = vadd.f32 0.0, %v4924
  %v4926 = vpop.f32.mrb[0].mxu0
  %v4927 = vpop.f32.mrb[0].mxu0
  %v4928 = vadd.f32 0.0, %v4927
  %v4929 = vpop.f32.mrb[0].mxu0
  %4930 = vmatprep.mubr.bf16.mxu0 0
  %4931 = vmatmul.mubr.bf16.gmra.mrb[0].mxu0 %v4813
  %v4932 = vpop.f32.mrb[0].mxu0
  %v4933 = vadd.f32 0.0, %v4932
  %v4934 = vpop.f32.mrb[0].mxu0
  %v4935 = vpop.f32.mrb[0].mxu0
  %v4936 = vadd.f32 0.0, %v4935
  %v4937 = vpop.f32.mrb[0].mxu0
  %4938 = vmatprep.mubr.bf16.mxu0 0
  %4939 = vmatmul.mubr.bf16.gmra.mrb[0].mxu0 %v4814
  %v4940 = vpop.f32.mrb[0].mxu0
  %v4941 = vadd.f32 0.0, %v4940
  %v4942 = vpop.f32.mrb[0].mxu0
  %v4943 = vpop.f32.mrb[0].mxu0
  %v4944 = vadd.f32 0.0, %v4943
  %v4945 = vpop.f32.mrb[0].mxu0
  %4946 = vmatprep.mubr.bf16.mxu0 0
  %4947 = vmatmul.mubr.bf16.gmra.mrb[0].mxu0 %v4815
  %v4948 = vpop.f32.mrb[0].mxu0
  %v4949 = vadd.f32 0.0, %v4948
  %v4950 = vpop.f32.mrb[0].mxu0
  %v4951 = vpop.f32.mrb[0].mxu0
  %v4952 = vadd.f32 0.0, %v4951
  %v4953 = vpop.f32.mrb[0].mxu0
  %4954 = vmatprep.mubr.bf16.mxu0 0
  %4955 = vmatmul.mubr.bf16.gmra.mrb[0].mxu0 %v4816
  %v4956 = vpop.f32.mrb[0].mxu0
  %v4957 = vadd.f32 0.0, %v4956
  %v4958 = vpop.f32.mrb[0].mxu0
  %v4959 = vpop.f32.mrb[0].mxu0
  %v4960 = vadd.f32 0.0, %v4959
  %v4961 = vpop.f32.mrb[0].mxu0
  %4962 = vmatprep.mubr.bf16.mxu0 0
  %4963 = vmatmul.mubr.bf16.gmra.mrb[0].mxu0 %v4817
  %v4964 = vpop.f32.mrb[0].mxu0
  %v4965 = vadd.f32 0.0, %v4964
  %v4966 = vpop.f32.mrb[0].mxu0
  %v4967 = vpop.f32.mrb[0].mxu0
  %v4968 = vadd.f32 0.0, %v4967
  %v4969 = vpop.f32.mrb[0].mxu0
  %4970 = vdwg.mxu0
  %v4971 = vadd.f32 %v4728, %v4909
  %v4972 = vadd.f32 %v4729, %v4912
  %v4973 = vadd.f32 %v4730, %v4917
  %v4974 = vadd.f32 %v4731, %v4920
  %v4975 = vadd.f32 %v4732, %v4925
  %v4976 = vadd.f32 %v4733, %v4928
  %v4977 = vadd.f32 %v4734, %v4933
  %v4978 = vadd.f32 %v4735, %v4936
  %v4979 = vadd.f32 %v4736, %v4941
  %v4980 = vadd.f32 %v4737, %v4944
  %v4981 = vadd.f32 %v4738, %v4949
  %v4982 = vadd.f32 %v4739, %v4952
  %v4983 = vadd.f32 %v4740, %v4957
  %v4984 = vadd.f32 %v4741, %v4960
  %v4985 = vadd.f32 %v4742, %v4965
  %v4986 = vadd.f32 %v4743, %v4968
  %v4987 = vld [vmem:[%s4744] sm:$0xf]
  %v4988 = vld [vmem:[%s4744 + $0x4] sm:$0xf]
  %v4989 = vld [vmem:[%s4744 + $0x8] sm:$0x1]
  %v4990 = vld [vmem:[%s4744 + $0xc] sm:$0xf]
  %v4991 = vld [vmem:[%s4744 + $0x10] sm:$0xf]
  %v4992 = vld [vmem:[%s4744 + $0x14] sm:$0x1]
  %v4993 = vld [vmem:[%s4744 + $0x18] sm:$0xf]
  %v4994 = vld [vmem:[%s4744 + $0x1c] sm:$0xf]
  %v4995 = vld [vmem:[%s4744 + $0x20] sm:$0x1]
  %v4996 = vld [vmem:[%s4744 + $0x24] sm:$0xf]
  %v4997 = vld [vmem:[%s4744 + $0x28] sm:$0xf]
  %v4998 = vld [vmem:[%s4744 + $0x2c] sm:$0x1]
  %v4999 = vld [vmem:[%s4744 + $0x30] sm:$0xf]
  %v5000 = vld [vmem:[%s4744 + $0x34] sm:$0xf]
  %v5001 = vld [vmem:[%s4744 + $0x38] sm:$0x1]
  %v5002 = vld [vmem:[%s4744 + $0x3c] sm:$0xf]
  %v5003 = vld [vmem:[%s4744 + $0x40] sm:$0xf]
  %v5004 = vld [vmem:[%s4744 + $0x44] sm:$0x1]
  %v5005 = vld [vmem:[%s4744 + $0x48] sm:$0xf]
  %v5006 = vld [vmem:[%s4744 + $0x4c] sm:$0xf]
  %v5007 = vld [vmem:[%s4744 + $0x50] sm:$0x1]
  %v5008 = vld [vmem:[%s4744 + $0x54] sm:$0xf]
  %v5009 = vld [vmem:[%s4744 + $0x58] sm:$0xf]
  %v5010 = vld [vmem:[%s4744 + $0x5c] sm:$0x1]
  %v5012 = vshrl.u32 %v4987, 16
  %v5014 = vrot.slane %v5012, 4
  %v5015 = vshll.u32 %v4987, 16
  %v5017 = vrot.slane %v5015, 5
  %v5018 = vor.u32 %v5014, %v5017
  %v5019 = vrot.slane %v5018, 4
  %v5021 = vshll.u32 %v4988, 16
  %v5023 = vrot.slane %v5021, 5
  %v5024 = vsel %vm926, %v5019, %v5023
  %v5025 = vshrl.u32 %v4988, 16
  %v5027 = vrot.slane %v5025, 4
  %v5028 = vor.u32 %v5027, %v5023
  %v5029 = vrot.slane %v5028, 4
  %v5031 = vshll.u32 %v4989, 16
  %v5033 = vrot.slane %v5031, 5
  %v5034 = vsel %vm926, %v5029, %v5033
  %v5036 = vshrl.u32 %v4990, 16
  %v5038 = vrot.slane %v5036, 4
  %v5039 = vshll.u32 %v4990, 16
  %v5041 = vrot.slane %v5039, 5
  %v5042 = vor.u32 %v5038, %v5041
  %v5043 = vrot.slane %v5042, 4
  %v5045 = vshll.u32 %v4991, 16
  %v5047 = vrot.slane %v5045, 5
  %v5048 = vsel %vm926, %v5043, %v5047
  %v5049 = vshrl.u32 %v4991, 16
  %v5051 = vrot.slane %v5049, 4
  %v5052 = vor.u32 %v5051, %v5047
  %v5053 = vrot.slane %v5052, 4
  %v5055 = vshll.u32 %v4992, 16
  %v5057 = vrot.slane %v5055, 5
  %v5058 = vsel %vm926, %v5053, %v5057
  %v5060 = vshrl.u32 %v4993, 16
  %v5062 = vrot.slane %v5060, 4
  %v5063 = vshll.u32 %v4993, 16
  %v5065 = vrot.slane %v5063, 5
  %v5066 = vor.u32 %v5062, %v5065
  %v5067 = vrot.slane %v5066, 4
  %v5069 = vshll.u32 %v4994, 16
  %v5071 = vrot.slane %v5069, 5
  %v5072 = vsel %vm926, %v5067, %v5071
  %v5073 = vshrl.u32 %v4994, 16
  %v5075 = vrot.slane %v5073, 4
  %v5076 = vor.u32 %v5075, %v5071
  %v5077 = vrot.slane %v5076, 4
  %v5079 = vshll.u32 %v4995, 16
  %v5081 = vrot.slane %v5079, 5
  %v5082 = vsel %vm926, %v5077, %v5081
  %v5084 = vshrl.u32 %v4996, 16
  %v5086 = vrot.slane %v5084, 4
  %v5087 = vshll.u32 %v4996, 16
  %v5089 = vrot.slane %v5087, 5
  %v5090 = vor.u32 %v5086, %v5089
  %v5091 = vrot.slane %v5090, 4
  %v5093 = vshll.u32 %v4997, 16
  %v5095 = vrot.slane %v5093, 5
  %v5096 = vsel %vm926, %v5091, %v5095
  %v5097 = vshrl.u32 %v4997, 16
  %v5099 = vrot.slane %v5097, 4
  %v5100 = vor.u32 %v5099, %v5095
  %v5101 = vrot.slane %v5100, 4
  %v5103 = vshll.u32 %v4998, 16
  %v5105 = vrot.slane %v5103, 5
  %v5106 = vsel %vm926, %v5101, %v5105
  %v5108 = vshrl.u32 %v4999, 16
  %v5110 = vrot.slane %v5108, 4
  %v5111 = vshll.u32 %v4999, 16
  %v5113 = vrot.slane %v5111, 5
  %v5114 = vor.u32 %v5110, %v5113
  %v5115 = vrot.slane %v5114, 4
  %v5117 = vshll.u32 %v5000, 16
  %v5119 = vrot.slane %v5117, 5
  %v5120 = vsel %vm926, %v5115, %v5119
  %v5121 = vshrl.u32 %v5000, 16
  %v5123 = vrot.slane %v5121, 4
  %v5124 = vor.u32 %v5123, %v5119
  %v5125 = vrot.slane %v5124, 4
  %v5127 = vshll.u32 %v5001, 16
  %v5129 = vrot.slane %v5127, 5
  %v5130 = vsel %vm926, %v5125, %v5129
  %v5132 = vshrl.u32 %v5002, 16
  %v5134 = vrot.slane %v5132, 4
  %v5135 = vshll.u32 %v5002, 16
  %v5137 = vrot.slane %v5135, 5
  %v5138 = vor.u32 %v5134, %v5137
  %v5139 = vrot.slane %v5138, 4
  %v5141 = vshll.u32 %v5003, 16
  %v5143 = vrot.slane %v5141, 5
  %v5144 = vsel %vm926, %v5139, %v5143
  %v5145 = vshrl.u32 %v5003, 16
  %v5147 = vrot.slane %v5145, 4
  %v5148 = vor.u32 %v5147, %v5143
  %v5149 = vrot.slane %v5148, 4
  %v5151 = vshll.u32 %v5004, 16
  %v5153 = vrot.slane %v5151, 5
  %v5154 = vsel %vm926, %v5149, %v5153
  %v5156 = vshrl.u32 %v5005, 16
  %v5158 = vrot.slane %v5156, 4
  %v5159 = vshll.u32 %v5005, 16
  %v5161 = vrot.slane %v5159, 5
  %v5162 = vor.u32 %v5158, %v5161
  %v5163 = vrot.slane %v5162, 4
  %v5165 = vshll.u32 %v5006, 16
  %v5167 = vrot.slane %v5165, 5
  %v5168 = vsel %vm926, %v5163, %v5167
  %v5169 = vshrl.u32 %v5006, 16
  %v5171 = vrot.slane %v5169, 4
  %v5172 = vor.u32 %v5171, %v5167
  %v5173 = vrot.slane %v5172, 4
  %v5175 = vshll.u32 %v5007, 16
  %v5177 = vrot.slane %v5175, 5
  %v5178 = vsel %vm926, %v5173, %v5177
  %v5180 = vshrl.u32 %v5008, 16
  %v5182 = vrot.slane %v5180, 4
  %v5183 = vshll.u32 %v5008, 16
  %v5185 = vrot.slane %v5183, 5
  %v5186 = vor.u32 %v5182, %v5185
  %v5187 = vrot.slane %v5186, 4
  %v5189 = vshll.u32 %v5009, 16
  %v5191 = vrot.slane %v5189, 5
  %v5192 = vsel %vm926, %v5187, %v5191
  %v5193 = vshrl.u32 %v5009, 16
  %v5195 = vrot.slane %v5193, 4
  %v5196 = vor.u32 %v5195, %v5191
  %v5197 = vrot.slane %v5196, 4
  %v5199 = vshll.u32 %v5010, 16
  %v5201 = vrot.slane %v5199, 5
  %v5202 = vsel %vm926, %v5197, %v5201
  %s5203 = scalar_lea.vmem %s9, 448
  %v5204 = vld [vmem:[%s5203] sm:$0xf]
  %v5205 = vld [vmem:[%s5203 + $0x4] sm:$0xf]
  %v5206 = vld [vmem:[%s5203 + $0x8] sm:$0xf]
  %v5207 = vld [vmem:[%s5203 + $0xc] sm:$0xf]
  %v5208 = vld [vmem:[%s5203 + $0x10] sm:$0xf]
  %v5209 = vld [vmem:[%s5203 + $0x14] sm:$0xf]
  %v5210 = vld [vmem:[%s5203 + $0x18] sm:$0xf]
  %v5211 = vld [vmem:[%s5203 + $0x1c] sm:$0xf]
  %v5212 = vld [vmem:[%s5203 + $0x20] sm:$0xf]
  %v5213 = vld [vmem:[%s5203 + $0x24] sm:$0xf]
  %v5214 = vld [vmem:[%s5203 + $0x28] sm:$0xf]
  %v5215 = vld [vmem:[%s5203 + $0x2c] sm:$0xf]
  %v5216 = vld [vmem:[%s5203 + $0x30] sm:$0xf]
  %v5217 = vld [vmem:[%s5203 + $0x34] sm:$0xf]
  %v5218 = vld [vmem:[%s5203 + $0x38] sm:$0xf]
  %v5219 = vld [vmem:[%s5203 + $0x3c] sm:$0xf]
  %v5220 = vunpack.c.l.b16 %v5024
  %v5221 = vunpack.c.l.b16 %v5034
  %v5222 = vunpack.c.l.b16 %v5048
  %v5223 = vunpack.c.l.b16 %v5058
  %v5224 = vunpack.c.l.b16 %v5072
  %v5225 = vunpack.c.l.b16 %v5082
  %v5226 = vunpack.c.l.b16 %v5096
  %v5227 = vunpack.c.l.b16 %v5106
  %v5228 = vunpack.c.l.b16 %v5120
  %v5229 = vunpack.c.l.b16 %v5130
  %v5230 = vunpack.c.l.b16 %v5144
  %v5231 = vunpack.c.l.b16 %v5154
  %v5232 = vunpack.c.l.b16 %v5168
  %v5233 = vunpack.c.l.b16 %v5178
  %v5234 = vunpack.c.l.b16 %v5192
  %v5235 = vunpack.c.l.b16 %v5202
  %v5236 = vpack.c.b16 %v5221, %v5220
  %v5237 = vpack.c.b16 %v5223, %v5222
  %v5238 = vpack.c.b16 %v5225, %v5224
  %v5239 = vpack.c.b16 %v5227, %v5226
  %v5240 = vpack.c.b16 %v5229, %v5228
  %v5241 = vpack.c.b16 %v5231, %v5230
  %v5242 = vpack.c.b16 %v5233, %v5232
  %v5243 = vpack.c.b16 %v5235, %v5234
  %v5268 = vunpack.c.l.b16 %v5204
  %v5269 = vunpack.c.l.b16 %v5205
  %v5270 = vunpack.c.l.b16 %v5206
  %v5271 = vunpack.c.l.b16 %v5207
  %v5272 = vunpack.c.l.b16 %v5208
  %v5273 = vunpack.c.l.b16 %v5209
  %v5274 = vunpack.c.l.b16 %v5210
  %v5275 = vunpack.c.l.b16 %v5211
  %v5276 = vunpack.c.l.b16 %v5212
  %v5277 = vunpack.c.l.b16 %v5213
  %v5278 = vunpack.c.l.b16 %v5214
  %v5279 = vunpack.c.l.b16 %v5215
  %v5280 = vunpack.c.l.b16 %v5216
  %v5281 = vunpack.c.l.b16 %v5217
  %v5282 = vunpack.c.l.b16 %v5218
  %v5283 = vunpack.c.l.b16 %v5219
  %v5284 = vpack.c.b16 %v5269, %v5268
  %v5285 = vpack.c.b16 %v5271, %v5270
  %v5286 = vpack.c.b16 %v5273, %v5272
  %v5287 = vpack.c.b16 %v5275, %v5274
  %v5288 = vpack.c.b16 %v5277, %v5276
  %v5289 = vpack.c.b16 %v5279, %v5278
  %v5290 = vpack.c.b16 %v5281, %v5280
  %v5291 = vpack.c.b16 %v5283, %v5282
  %5300 = vmatprep.subr.bf16.mxu0 0
  %5301 = vmatpush1.bf16.msra.mxu0 %v5284
  %5302 = vmatprep.subr.bf16.mxu0 0
  %5303 = vmatpush1.bf16.msra.mxu0 %v5285
  %5304 = vmatprep.subr.bf16.mxu0 0
  %5305 = vmatpush1.bf16.msra.mxu0 %v5286
  %5306 = vmatprep.subr.bf16.mxu0 0
  %5307 = vmatpush1.bf16.msra.mxu0 %v5287
  %5308 = vmatprep.subr.bf16.mxu0 0
  %5309 = vmatpush1.bf16.msra.mxu0 %v5288
  %5310 = vmatprep.subr.bf16.mxu0 0
  %5311 = vmatpush1.bf16.msra.mxu0 %v5289
  %5312 = vmatprep.subr.bf16.mxu0 0
  %5313 = vmatpush1.bf16.msra.mxu0 %v5290
  %5314 = vmatprep.subr.bf16.mxu0 0
  %5315 = vmatpush1.bf16.msra.mxu0 %v5291
  %5316 = vmatprep.subr.bf16.mxu0 0
  %5317 = vmatpush1.bf16.msra.mxu0 0
  %5318 = vmatprep.subr.bf16.mxu0 0
  %5319 = vmatpush1.bf16.msra.mxu0 0
  %5320 = vmatprep.subr.bf16.mxu0 0
  %5321 = vmatpush1.bf16.msra.mxu0 0
  %5322 = vmatprep.subr.bf16.mxu0 0
  %5323 = vmatpush1.bf16.msra.mxu0 0
  %5324 = vmatprep.subr.bf16.mxu0 0
  %5325 = vmatpush1.bf16.msra.mxu0 0
  %5326 = vmatprep.subr.bf16.mxu0 0
  %5327 = vmatpush1.bf16.msra.mxu0 0
  %5328 = vmatprep.subr.bf16.mxu0 0
  %5329 = vmatpush1.bf16.msra.mxu0 0
  %5330 = vmatprep.subr.bf16.mxu0 0
  %5331 = vmatpush1.bf16.msra.mxu0 0
  %5332 = vmatprep.mubr.bf16.mxu0 0
  %5333 = vmatmul.mubr.bf16.gmra.mrb[0].mxu0 %v5236
  %v5334 = vpop.f32.mrb[0].mxu0
  %v5335 = vadd.f32 0.0, %v5334
  %v5336 = vpop.f32.mrb[0].mxu0
  %v5337 = vpop.f32.mrb[0].mxu0
  %v5338 = vadd.f32 0.0, %v5337
  %v5339 = vpop.f32.mrb[0].mxu0
  %5340 = vmatprep.mubr.bf16.mxu0 0
  %5341 = vmatmul.mubr.bf16.gmra.mrb[0].mxu0 %v5237
  %v5342 = vpop.f32.mrb[0].mxu0
  %v5343 = vadd.f32 0.0, %v5342
  %v5344 = vpop.f32.mrb[0].mxu0
  %v5345 = vpop.f32.mrb[0].mxu0
  %v5346 = vadd.f32 0.0, %v5345
  %v5347 = vpop.f32.mrb[0].mxu0
  %5348 = vmatprep.mubr.bf16.mxu0 0
  %5349 = vmatmul.mubr.bf16.gmra.mrb[0].mxu0 %v5238
  %v5350 = vpop.f32.mrb[0].mxu0
  %v5351 = vadd.f32 0.0, %v5350
  %v5352 = vpop.f32.mrb[0].mxu0
  %v5353 = vpop.f32.mrb[0].mxu0
  %v5354 = vadd.f32 0.0, %v5353
  %v5355 = vpop.f32.mrb[0].mxu0
  %5356 = vmatprep.mubr.bf16.mxu0 0
  %5357 = vmatmul.mubr.bf16.gmra.mrb[0].mxu0 %v5239
  %v5358 = vpop.f32.mrb[0].mxu0
  %v5359 = vadd.f32 0.0, %v5358
  %v5360 = vpop.f32.mrb[0].mxu0
  %v5361 = vpop.f32.mrb[0].mxu0
  %v5362 = vadd.f32 0.0, %v5361
  %v5363 = vpop.f32.mrb[0].mxu0
  %5364 = vmatprep.mubr.bf16.mxu0 0
  %5365 = vmatmul.mubr.bf16.gmra.mrb[0].mxu0 %v5240
  %v5366 = vpop.f32.mrb[0].mxu0
  %v5367 = vadd.f32 0.0, %v5366
  %v5368 = vpop.f32.mrb[0].mxu0
  %v5369 = vpop.f32.mrb[0].mxu0
  %v5370 = vadd.f32 0.0, %v5369
  %v5371 = vpop.f32.mrb[0].mxu0
  %5372 = vmatprep.mubr.bf16.mxu0 0
  %5373 = vmatmul.mubr.bf16.gmra.mrb[0].mxu0 %v5241
  %v5374 = vpop.f32.mrb[0].mxu0
  %v5375 = vadd.f32 0.0, %v5374
  %v5376 = vpop.f32.mrb[0].mxu0
  %v5377 = vpop.f32.mrb[0].mxu0
  %v5378 = vadd.f32 0.0, %v5377
  %v5379 = vpop.f32.mrb[0].mxu0
  %5380 = vmatprep.mubr.bf16.mxu0 0
  %5381 = vmatmul.mubr.bf16.gmra.mrb[0].mxu0 %v5242
  %v5382 = vpop.f32.mrb[0].mxu0
  %v5383 = vadd.f32 0.0, %v5382
  %v5384 = vpop.f32.mrb[0].mxu0
  %v5385 = vpop.f32.mrb[0].mxu0
  %v5386 = vadd.f32 0.0, %v5385
  %v5387 = vpop.f32.mrb[0].mxu0
  %5388 = vmatprep.mubr.bf16.mxu0 0
  %5389 = vmatmul.mubr.bf16.gmra.mrb[0].mxu0 %v5243
  %v5390 = vpop.f32.mrb[0].mxu0
  %v5391 = vadd.f32 0.0, %v5390
  %v5392 = vpop.f32.mrb[0].mxu0
  %v5393 = vpop.f32.mrb[0].mxu0
  %v5394 = vadd.f32 0.0, %v5393
  %v5395 = vpop.f32.mrb[0].mxu0
  %5396 = vdwg.mxu0
  %v5397 = vadd.f32 %v4971, %v5335
  %v5398 = vadd.f32 %v4972, %v5338
  %v5399 = vadd.f32 %v4973, %v5343
  %v5400 = vadd.f32 %v4974, %v5346
  %v5401 = vadd.f32 %v4975, %v5351
  %v5402 = vadd.f32 %v4976, %v5354
  %v5403 = vadd.f32 %v4977, %v5359
  %v5404 = vadd.f32 %v4978, %v5362
  %v5405 = vadd.f32 %v4979, %v5367
  %v5406 = vadd.f32 %v4980, %v5370
  %v5407 = vadd.f32 %v4981, %v5375
  %v5408 = vadd.f32 %v4982, %v5378
  %v5409 = vadd.f32 %v4983, %v5383
  %v5410 = vadd.f32 %v4984, %v5386
  %v5411 = vadd.f32 %v4985, %v5391
  %v5412 = vadd.f32 %v4986, %v5394
  %v5413 = vld [vmem:[%s4744] sm:$0xe]
  %v5414 = vld [vmem:[%s4744 + $0xc] sm:$0xe]
  %v5415 = vld [vmem:[%s4744 + $0x18] sm:$0xe]
  %v5416 = vld [vmem:[%s4744 + $0x24] sm:$0xe]
  %v5417 = vld [vmem:[%s4744 + $0x30] sm:$0xe]
  %v5418 = vld [vmem:[%s4744 + $0x3c] sm:$0xe]
  %v5419 = vld [vmem:[%s4744 + $0x48] sm:$0xe]
  %v5420 = vld [vmem:[%s4744 + $0x54] sm:$0xe]
  %v5445 = vrot.slane %v5413, 5
  %v5446 = vrot.slane %v5445, 4
  %v5447 = vrot.slane %v4988, 5
  %v5448 = vsel %vm1908, %v5446, %v5447
  %v5449 = vrot.slane %v5447, 4
  %v5450 = vrot.slane %v4989, 5
  %v5451 = vsel %vm1908, %v5449, %v5450
  %v5452 = vrot.slane %v5414, 5
  %v5453 = vrot.slane %v5452, 4
  %v5454 = vrot.slane %v4991, 5
  %v5455 = vsel %vm1908, %v5453, %v5454
  %v5456 = vrot.slane %v5454, 4
  %v5457 = vrot.slane %v4992, 5
  %v5458 = vsel %vm1908, %v5456, %v5457
  %v5459 = vrot.slane %v5415, 5
  %v5460 = vrot.slane %v5459, 4
  %v5461 = vrot.slane %v4994, 5
  %v5462 = vsel %vm1908, %v5460, %v5461
  %v5463 = vrot.slane %v5461, 4
  %v5464 = vrot.slane %v4995, 5
  %v5465 = vsel %vm1908, %v5463, %v5464
  %v5466 = vrot.slane %v5416, 5
  %v5467 = vrot.slane %v5466, 4
  %v5468 = vrot.slane %v4997, 5
  %v5469 = vsel %vm1908, %v5467, %v5468
  %v5470 = vrot.slane %v5468, 4
  %v5471 = vrot.slane %v4998, 5
  %v5472 = vsel %vm1908, %v5470, %v5471
  %v5473 = vrot.slane %v5417, 5
  %v5474 = vrot.slane %v5473, 4
  %v5475 = vrot.slane %v5000, 5
  %v5476 = vsel %vm1908, %v5474, %v5475
  %v5477 = vrot.slane %v5475, 4
  %v5478 = vrot.slane %v5001, 5
  %v5479 = vsel %vm1908, %v5477, %v5478
  %v5480 = vrot.slane %v5418, 5
  %v5481 = vrot.slane %v5480, 4
  %v5482 = vrot.slane %v5003, 5
  %v5483 = vsel %vm1908, %v5481, %v5482
  %v5484 = vrot.slane %v5482, 4
  %v5485 = vrot.slane %v5004, 5
  %v5486 = vsel %vm1908, %v5484, %v5485
  %v5487 = vrot.slane %v5419, 5
  %v5488 = vrot.slane %v5487, 4
  %v5489 = vrot.slane %v5006, 5
  %v5490 = vsel %vm1908, %v5488, %v5489
  %v5491 = vrot.slane %v5489, 4
  %v5492 = vrot.slane %v5007, 5
  %v5493 = vsel %vm1908, %v5491, %v5492
  %v5494 = vrot.slane %v5420, 5
  %v5495 = vrot.slane %v5494, 4
  %v5496 = vrot.slane %v5009, 5
  %v5497 = vsel %vm1908, %v5495, %v5496
  %v5498 = vrot.slane %v5496, 4
  %v5499 = vrot.slane %v5010, 5
  %v5500 = vsel %vm1908, %v5498, %v5499
  %s5501 = scalar_lea.vmem %s9, 512
  %v5502 = vld [vmem:[%s5501] sm:$0xf]
  %v5503 = vld [vmem:[%s5501 + $0x4] sm:$0xf]
  %v5504 = vld [vmem:[%s5501 + $0x8] sm:$0xf]
  %v5505 = vld [vmem:[%s5501 + $0xc] sm:$0xf]
  %v5506 = vld [vmem:[%s5501 + $0x10] sm:$0xf]
  %v5507 = vld [vmem:[%s5501 + $0x14] sm:$0xf]
  %v5508 = vld [vmem:[%s5501 + $0x18] sm:$0xf]
  %v5509 = vld [vmem:[%s5501 + $0x1c] sm:$0xf]
  %v5510 = vld [vmem:[%s5501 + $0x20] sm:$0xf]
  %v5511 = vld [vmem:[%s5501 + $0x24] sm:$0xf]
  %v5512 = vld [vmem:[%s5501 + $0x28] sm:$0xf]
  %v5513 = vld [vmem:[%s5501 + $0x2c] sm:$0xf]
  %v5514 = vld [vmem:[%s5501 + $0x30] sm:$0xf]
  %v5515 = vld [vmem:[%s5501 + $0x34] sm:$0xf]
  %v5516 = vld [vmem:[%s5501 + $0x38] sm:$0xf]
  %v5517 = vld [vmem:[%s5501 + $0x3c] sm:$0xf]
  %v5518 = vunpack.c.l.b16 %v5448
  %v5519 = vunpack.c.l.b16 %v5451
  %v5520 = vunpack.c.l.b16 %v5455
  %v5521 = vunpack.c.l.b16 %v5458
  %v5522 = vunpack.c.l.b16 %v5462
  %v5523 = vunpack.c.l.b16 %v5465
  %v5524 = vunpack.c.l.b16 %v5469
  %v5525 = vunpack.c.l.b16 %v5472
  %v5526 = vunpack.c.l.b16 %v5476
  %v5527 = vunpack.c.l.b16 %v5479
  %v5528 = vunpack.c.l.b16 %v5483
  %v5529 = vunpack.c.l.b16 %v5486
  %v5530 = vunpack.c.l.b16 %v5490
  %v5531 = vunpack.c.l.b16 %v5493
  %v5532 = vunpack.c.l.b16 %v5497
  %v5533 = vunpack.c.l.b16 %v5500
  %v5534 = vpack.c.b16 %v5519, %v5518
  %v5535 = vpack.c.b16 %v5521, %v5520
  %v5536 = vpack.c.b16 %v5523, %v5522
  %v5537 = vpack.c.b16 %v5525, %v5524
  %v5538 = vpack.c.b16 %v5527, %v5526
  %v5539 = vpack.c.b16 %v5529, %v5528
  %v5540 = vpack.c.b16 %v5531, %v5530
  %v5541 = vpack.c.b16 %v5533, %v5532
  %v5566 = vunpack.c.l.b16 %v5502
  %v5567 = vunpack.c.l.b16 %v5503
  %v5568 = vunpack.c.l.b16 %v5504
  %v5569 = vunpack.c.l.b16 %v5505
  %v5570 = vunpack.c.l.b16 %v5506
  %v5571 = vunpack.c.l.b16 %v5507
  %v5572 = vunpack.c.l.b16 %v5508
  %v5573 = vunpack.c.l.b16 %v5509
  %v5574 = vunpack.c.l.b16 %v5510
  %v5575 = vunpack.c.l.b16 %v5511
  %v5576 = vunpack.c.l.b16 %v5512
  %v5577 = vunpack.c.l.b16 %v5513
  %v5578 = vunpack.c.l.b16 %v5514
  %v5579 = vunpack.c.l.b16 %v5515
  %v5580 = vunpack.c.l.b16 %v5516
  %v5581 = vunpack.c.l.b16 %v5517
  %v5582 = vpack.c.b16 %v5567, %v5566
  %v5583 = vpack.c.b16 %v5569, %v5568
  %v5584 = vpack.c.b16 %v5571, %v5570
  %v5585 = vpack.c.b16 %v5573, %v5572
  %v5586 = vpack.c.b16 %v5575, %v5574
  %v5587 = vpack.c.b16 %v5577, %v5576
  %v5588 = vpack.c.b16 %v5579, %v5578
  %v5589 = vpack.c.b16 %v5581, %v5580
  %5598 = vmatprep.subr.bf16.mxu0 0
  %5599 = vmatpush1.bf16.msra.mxu0 %v5582
  %5600 = vmatprep.subr.bf16.mxu0 0
  %5601 = vmatpush1.bf16.msra.mxu0 %v5583
  %5602 = vmatprep.subr.bf16.mxu0 0
  %5603 = vmatpush1.bf16.msra.mxu0 %v5584
  %5604 = vmatprep.subr.bf16.mxu0 0
  %5605 = vmatpush1.bf16.msra.mxu0 %v5585
  %5606 = vmatprep.subr.bf16.mxu0 0
  %5607 = vmatpush1.bf16.msra.mxu0 %v5586
  %5608 = vmatprep.subr.bf16.mxu0 0
  %5609 = vmatpush1.bf16.msra.mxu0 %v5587
  %5610 = vmatprep.subr.bf16.mxu0 0
  %5611 = vmatpush1.bf16.msra.mxu0 %v5588
  %5612 = vmatprep.subr.bf16.mxu0 0
  %5613 = vmatpush1.bf16.msra.mxu0 %v5589
  %5614 = vmatprep.subr.bf16.mxu0 0
  %5615 = vmatpush1.bf16.msra.mxu0 0
  %5616 = vmatprep.subr.bf16.mxu0 0
  %5617 = vmatpush1.bf16.msra.mxu0 0
  %5618 = vmatprep.subr.bf16.mxu0 0
  %5619 = vmatpush1.bf16.msra.mxu0 0
  %5620 = vmatprep.subr.bf16.mxu0 0
  %5621 = vmatpush1.bf16.msra.mxu0 0
  %5622 = vmatprep.subr.bf16.mxu0 0
  %5623 = vmatpush1.bf16.msra.mxu0 0
  %5624 = vmatprep.subr.bf16.mxu0 0
  %5625 = vmatpush1.bf16.msra.mxu0 0
  %5626 = vmatprep.subr.bf16.mxu0 0
  %5627 = vmatpush1.bf16.msra.mxu0 0
  %5628 = vmatprep.subr.bf16.mxu0 0
  %5629 = vmatpush1.bf16.msra.mxu0 0
  %5630 = vmatprep.mubr.bf16.mxu0 0
  %5631 = vmatmul.mubr.bf16.gmra.mrb[0].mxu0 %v5534
  %v5632 = vpop.f32.mrb[0].mxu0
  %v5633 = vadd.f32 0.0, %v5632
  %v5634 = vpop.f32.mrb[0].mxu0
  %v5635 = vpop.f32.mrb[0].mxu0
  %v5636 = vadd.f32 0.0, %v5635
  %v5637 = vpop.f32.mrb[0].mxu0
  %5638 = vmatprep.mubr.bf16.mxu0 0
  %5639 = vmatmul.mubr.bf16.gmra.mrb[0].mxu0 %v5535
  %v5640 = vpop.f32.mrb[0].mxu0
  %v5641 = vadd.f32 0.0, %v5640
  %v5642 = vpop.f32.mrb[0].mxu0
  %v5643 = vpop.f32.mrb[0].mxu0
  %v5644 = vadd.f32 0.0, %v5643
  %v5645 = vpop.f32.mrb[0].mxu0
  %5646 = vmatprep.mubr.bf16.mxu0 0
  %5647 = vmatmul.mubr.bf16.gmra.mrb[0].mxu0 %v5536
  %v5648 = vpop.f32.mrb[0].mxu0
  %v5649 = vadd.f32 0.0, %v5648
  %v5650 = vpop.f32.mrb[0].mxu0
  %v5651 = vpop.f32.mrb[0].mxu0
  %v5652 = vadd.f32 0.0, %v5651
  %v5653 = vpop.f32.mrb[0].mxu0
  %5654 = vmatprep.mubr.bf16.mxu0 0
  %5655 = vmatmul.mubr.bf16.gmra.mrb[0].mxu0 %v5537
  %v5656 = vpop.f32.mrb[0].mxu0
  %v5657 = vadd.f32 0.0, %v5656
  %v5658 = vpop.f32.mrb[0].mxu0
  %v5659 = vpop.f32.mrb[0].mxu0
  %v5660 = vadd.f32 0.0, %v5659
  %v5661 = vpop.f32.mrb[0].mxu0
  %5662 = vmatprep.mubr.bf16.mxu0 0
  %5663 = vmatmul.mubr.bf16.gmra.mrb[0].mxu0 %v5538
  %v5664 = vpop.f32.mrb[0].mxu0
  %v5665 = vadd.f32 0.0, %v5664
  %v5666 = vpop.f32.mrb[0].mxu0
  %v5667 = vpop.f32.mrb[0].mxu0
  %v5668 = vadd.f32 0.0, %v5667
  %v5669 = vpop.f32.mrb[0].mxu0
  %5670 = vmatprep.mubr.bf16.mxu0 0
  %5671 = vmatmul.mubr.bf16.gmra.mrb[0].mxu0 %v5539
  %v5672 = vpop.f32.mrb[0].mxu0
  %v5673 = vadd.f32 0.0, %v5672
  %v5674 = vpop.f32.mrb[0].mxu0
  %v5675 = vpop.f32.mrb[0].mxu0
  %v5676 = vadd.f32 0.0, %v5675
  %v5677 = vpop.f32.mrb[0].mxu0
  %5678 = vmatprep.mubr.bf16.mxu0 0
  %5679 = vmatmul.mubr.bf16.gmra.mrb[0].mxu0 %v5540
  %v5680 = vpop.f32.mrb[0].mxu0
  %v5681 = vadd.f32 0.0, %v5680
  %v5682 = vpop.f32.mrb[0].mxu0
  %v5683 = vpop.f32.mrb[0].mxu0
  %v5684 = vadd.f32 0.0, %v5683
  %v5685 = vpop.f32.mrb[0].mxu0
  %5686 = vmatprep.mubr.bf16.mxu0 0
  %5687 = vmatmul.mubr.bf16.gmra.mrb[0].mxu0 %v5541
  %v5688 = vpop.f32.mrb[0].mxu0
  %v5689 = vadd.f32 0.0, %v5688
  %v5690 = vpop.f32.mrb[0].mxu0
  %v5691 = vpop.f32.mrb[0].mxu0
  %v5692 = vadd.f32 0.0, %v5691
  %v5693 = vpop.f32.mrb[0].mxu0
  %5694 = vdwg.mxu0
  %v5695 = vadd.f32 %v5397, %v5633
  %v5696 = vadd.f32 %v5398, %v5636
  %v5697 = vadd.f32 %v5399, %v5641
  %v5698 = vadd.f32 %v5400, %v5644
  %v5699 = vadd.f32 %v5401, %v5649
  %v5700 = vadd.f32 %v5402, %v5652
  %v5701 = vadd.f32 %v5403, %v5657
  %v5702 = vadd.f32 %v5404, %v5660
  %v5703 = vadd.f32 %v5405, %v5665
  %v5704 = vadd.f32 %v5406, %v5668
  %v5705 = vadd.f32 %v5407, %v5673
  %v5706 = vadd.f32 %v5408, %v5676
  %v5707 = vadd.f32 %v5409, %v5681
  %v5708 = vadd.f32 %v5410, %v5684
  %v5709 = vadd.f32 %v5411, %v5689
  %v5710 = vadd.f32 %v5412, %v5692
  %v5711 = vadd.f32 %v5695, %v5696
  %v5712 = vadd.f32 %v5711, %v5697
  %v5713 = vadd.f32 %v5712, %v5698
  %v5714 = vadd.f32 %v5713, %v5699
  %v5715 = vadd.f32 %v5714, %v5700
  %v5716 = vadd.f32 %v5715, %v5701
  %v5717 = vadd.f32 %v5716, %v5702
  %v5718 = vadd.f32 %v5717, %v5703
  %v5719 = vadd.f32 %v5718, %v5704
  %v5720 = vadd.f32 %v5719, %v5705
  %v5721 = vadd.f32 %v5720, %v5706
  %v5722 = vadd.f32 %v5721, %v5707
  %v5723 = vadd.f32 %v5722, %v5708
  %v5724 = vadd.f32 %v5723, %v5709
  %v5725 = vadd.f32 %v5724, %v5710
  %v5726 = vrot.slane %v5725, 4
  %v5727 = vadd.f32 %v5725, %v5726
  %v5728 = vrot.slane %v5727, 2
  %v5729 = vadd.f32 %v5727, %v5728
  %v5730 = vrot.slane %v5729, 1
  %v5731 = vadd.f32 %v5729, %v5730
  %v5732 = vmul.f32 %v5695, %v5695
  %v5733 = vmul.f32 %v5696, %v5696
  %v5734 = vmul.f32 %v5697, %v5697
  %v5735 = vmul.f32 %v5698, %v5698
  %v5736 = vmul.f32 %v5699, %v5699
  %v5737 = vmul.f32 %v5700, %v5700
  %v5738 = vmul.f32 %v5701, %v5701
  %v5739 = vmul.f32 %v5702, %v5702
  %v5740 = vmul.f32 %v5703, %v5703
  %v5741 = vmul.f32 %v5704, %v5704
  %v5742 = vmul.f32 %v5705, %v5705
  %v5743 = vmul.f32 %v5706, %v5706
  %v5744 = vmul.f32 %v5707, %v5707
  %v5745 = vmul.f32 %v5708, %v5708
  %v5746 = vmul.f32 %v5709, %v5709
  %v5747 = vmul.f32 %v5710, %v5710
  %v5748 = vadd.f32 %v5732, %v5733
  %v5749 = vadd.f32 %v5748, %v5734
  %v5750 = vadd.f32 %v5749, %v5735
  %v5751 = vadd.f32 %v5750, %v5736
  %v5752 = vadd.f32 %v5751, %v5737
  %v5753 = vadd.f32 %v5752, %v5738
  %v5754 = vadd.f32 %v5753, %v5739
  %v5755 = vadd.f32 %v5754, %v5740
  %v5756 = vadd.f32 %v5755, %v5741
  %v5757 = vadd.f32 %v5756, %v5742
  %v5758 = vadd.f32 %v5757, %v5743
  %v5759 = vadd.f32 %v5758, %v5744
  %v5760 = vadd.f32 %v5759, %v5745
  %v5761 = vadd.f32 %v5760, %v5746
  %v5762 = vadd.f32 %v5761, %v5747
  %v5763 = vrot.slane %v5762, 4
  %v5764 = vadd.f32 %v5762, %v5763
  %v5765 = vrot.slane %v5764, 2
  %v5766 = vadd.f32 %v5764, %v5765
  %v5767 = vrot.slane %v5766, 1
  %v5768 = vadd.f32 %v5766, %v5767
  %v5769 = vsel %vm2449, %v5731, %v5768
  %v5770 = vld [vmem:[%s12] sm:$0xff]
  %v5771 = vld [vmem:[%s12 + $0x8] sm:$0xff]
  %v5772 = vld [vmem:[%s12 + $0x10] sm:$0xff]
  %v5773 = vld [vmem:[%s12 + $0x18] sm:$0xff]
  %v5774 = vld [vmem:[%s12 + $0x20] sm:$0xff]
  %v5775 = vld [vmem:[%s12 + $0x28] sm:$0xff]
  %v5776 = vld [vmem:[%s12 + $0x30] sm:$0xff]
  %v5777 = vld [vmem:[%s12 + $0x38] sm:$0xff]
  %v5778 = vld [vmem:[%s12 + $0x40] sm:$0xff]
  %v5779 = vld [vmem:[%s12 + $0x48] sm:$0xff]
  %v5780 = vld [vmem:[%s12 + $0x50] sm:$0xff]
  %v5781 = vld [vmem:[%s12 + $0x58] sm:$0xff]
  %v5782 = vld [vmem:[%s12 + $0x60] sm:$0xff]
  %v5783 = vld [vmem:[%s12 + $0x68] sm:$0xff]
  %v5784 = vld [vmem:[%s12 + $0x70] sm:$0xff]
  %v5785 = vld [vmem:[%s12 + $0x78] sm:$0xff]
  %5786 = vmatprep.subr.mxu0 0.0
  %5787 = vmatpush1.msra.mxu0 %v5770
  %5788 = vmatprep.subr.mxu0 0.0
  %5789 = vmatpush1.msra.mxu0 %v5771
  %5790 = vmatprep.subr.mxu0 0.0
  %5791 = vmatpush1.msra.mxu0 %v5772
  %5792 = vmatprep.subr.mxu0 0.0
  %5793 = vmatpush1.msra.mxu0 %v5773
  %5794 = vmatprep.subr.mxu0 0.0
  %5795 = vmatpush1.msra.mxu0 %v5774
  %5796 = vmatprep.subr.mxu0 0.0
  %5797 = vmatpush1.msra.mxu0 %v5775
  %5798 = vmatprep.subr.mxu0 0.0
  %5799 = vmatpush1.msra.mxu0 %v5776
  %5800 = vmatprep.subr.mxu0 0.0
  %5801 = vmatpush1.msra.mxu0 %v5777
  %5802 = vmatprep.subr.mxu0 0.0
  %5803 = vmatpush1.msra.mxu0 %v5778
  %5804 = vmatprep.subr.mxu0 0.0
  %5805 = vmatpush1.msra.mxu0 %v5779
  %5806 = vmatprep.subr.mxu0 0.0
  %5807 = vmatpush1.msra.mxu0 %v5780
  %5808 = vmatprep.subr.mxu0 0.0
  %5809 = vmatpush1.msra.mxu0 %v5781
  %5810 = vmatprep.subr.mxu0 0.0
  %5811 = vmatpush1.msra.mxu0 %v5782
  %5812 = vmatprep.subr.mxu0 0.0
  %5813 = vmatpush1.msra.mxu0 %v5783
  %5814 = vmatprep.subr.mxu0 0.0
  %5815 = vmatpush1.msra.mxu0 %v5784
  %5816 = vmatprep.subr.mxu0 0.0
  %5817 = vmatpush1.msra.mxu0 %v5785
  %5818 = vmatprep.subr.mxu0 0.0
  %5819 = vmatpush1.msra.mxu0 0.0
  %5820 = vmatprep.subr.mxu0 0.0
  %5821 = vmatpush1.msra.mxu0 0.0
  %5822 = vmatprep.subr.mxu0 0.0
  %5823 = vmatpush1.msra.mxu0 0.0
  %5824 = vmatprep.subr.mxu0 0.0
  %5825 = vmatpush1.msra.mxu0 0.0
  %5826 = vmatprep.subr.mxu0 0.0
  %5827 = vmatpush1.msra.mxu0 0.0
  %5828 = vmatprep.subr.mxu0 0.0
  %5829 = vmatpush1.msra.mxu0 0.0
  %5830 = vmatprep.subr.mxu0 0.0
  %5831 = vmatpush1.msra.mxu0 0.0
  %5832 = vmatprep.subr.mxu0 0.0
  %5833 = vmatpush1.msra.mxu0 0.0
  %5834 = vmatprep.subr.mxu0 0.0
  %5835 = vmatpush1.msra.mxu0 0.0
  %5836 = vmatprep.subr.mxu0 0.0
  %5837 = vmatpush1.msra.mxu0 0.0
  %5838 = vmatprep.subr.mxu0 0.0
  %5839 = vmatpush1.msra.mxu0 0.0
  %5840 = vmatprep.subr.mxu0 0.0
  %5841 = vmatpush1.msra.mxu0 0.0
  %5842 = vmatprep.subr.mxu0 0.0
  %5843 = vmatpush1.msra.mxu0 0.0
  %5844 = vmatprep.subr.mxu0 0.0
  %5845 = vmatpush1.msra.mxu0 0.0
  %5846 = vmatprep.subr.mxu0 0.0
  %5847 = vmatpush1.msra.mxu0 0.0
  %5848 = vmatprep.subr.mxu0 0.0
  %5849 = vmatpush1.msra.mxu0 0.0
  %5850 = vmatprep.mubr.f32.mxu0 0.0
  %5851 = vmatmul.mubr.f32.gmra.mrb[0].mxu0 %v5769
  %v5852 = vpop.f32.mrb[0].mxu0
  %v5853 = vadd.f32 0.0, %v5852
  %v5854 = vpop.f32.mrb[0].mxu0
  %5855 = vdwg.mxu0
  %v5856 = vmul.f32 %v5853, 0.00024414063
  %v5857 = vmul.f32 %v5856, %v5856
  %v5859 = vrot.slane %v5857, 7
  %v5861 = vsub.f32 %v5856, %v5859
  %v5862 = vld [vmem:[%s10] sm:$0x1]
  %v5863 = vadd.f32 %v5861, 1e-05
  %v5864 = vrsqrt.pop %v5863
  %v5867 = vunpack.c.l.s4 1966171168
  %v5868 = vunpack.c.0.s8 %v5867
  %v5869 = vlaneseq
  %v5870 = vshrl.u32 %v5869, 7
  %v5871 = vsub.s32 %v5868, %v5870
  %v5872 = vrot.slane %v5864, %v5871
  %v5873 = vcombine.high %v5872, %v5872
  %v5875 = vunpack.c.l.s4 1966171168
  %v5876 = vunpack.c.0.s8 %v5875
  %v5877 = vlaneseq
  %v5878 = vshrl.u32 %v5877, 7
  %v5879 = vsub.s32 %v5876, %v5878
  %v5880 = vrot.slane %v5873, %v5879
  %v5882 = vmul.f32 %v5862, %v5880
  %v5883 = vld [vmem:[%s11] sm:$0x1]
  %v5884 = vmul.f32 %v5856, %v5882
  %v5885 = vsub.f32 %v5883, %v5884
  %v5887 = vlaneseq
  %v5888 = vshrl.u32 %v5887, 7
  %v5889 = vsub.s32 0, %v5888
  %v5890 = vrot.slane %v5885, %v5889
  %v5892 = vsel %vm2449, %v5882, %v5890
  %v5893 = vld [vmem:[%s13] sm:$0xf]
  %v5895 = vsel %vm2575, %v5892, 0
  %v5898 = vsel %vm2579, %v5893, 0
  %5900 = vmatprep.subr.mxu0 0.0
  %5901 = vmatpush1.msra.mxu0 %v5898
  %5902 = vmatprep.subr.mxu0 0.0
  %5903 = vmatpush1.msra.mxu0 0.0
  %5904 = vmatprep.subr.mxu0 0.0
  %5905 = vmatpush1.msra.mxu0 0.0
  %5906 = vmatprep.subr.mxu0 0.0
  %5907 = vmatpush1.msra.mxu0 0.0
  %5908 = vmatprep.subr.mxu0 0.0
  %5909 = vmatpush1.msra.mxu0 0.0
  %5910 = vmatprep.subr.mxu0 0.0
  %5911 = vmatpush1.msra.mxu0 0.0
  %5912 = vmatprep.subr.mxu0 0.0
  %5913 = vmatpush1.msra.mxu0 0.0
  %5914 = vmatprep.subr.mxu0 0.0
  %5915 = vmatpush1.msra.mxu0 0.0
  %5916 = vmatprep.subr.mxu0 0.0
  %5917 = vmatpush1.msra.mxu0 0.0
  %5918 = vmatprep.subr.mxu0 0.0
  %5919 = vmatpush1.msra.mxu0 0.0
  %5920 = vmatprep.subr.mxu0 0.0
  %5921 = vmatpush1.msra.mxu0 0.0
  %5922 = vmatprep.subr.mxu0 0.0
  %5923 = vmatpush1.msra.mxu0 0.0
  %5924 = vmatprep.subr.mxu0 0.0
  %5925 = vmatpush1.msra.mxu0 0.0
  %5926 = vmatprep.subr.mxu0 0.0
  %5927 = vmatpush1.msra.mxu0 0.0
  %5928 = vmatprep.subr.mxu0 0.0
  %5929 = vmatpush1.msra.mxu0 0.0
  %5930 = vmatprep.subr.mxu0 0.0
  %5931 = vmatpush1.msra.mxu0 0.0
  %5932 = vmatprep.subr.mxu0 0.0
  %5933 = vmatpush1.msra.mxu0 0.0
  %5934 = vmatprep.subr.mxu0 0.0
  %5935 = vmatpush1.msra.mxu0 0.0
  %5936 = vmatprep.subr.mxu0 0.0
  %5937 = vmatpush1.msra.mxu0 0.0
  %5938 = vmatprep.subr.mxu0 0.0
  %5939 = vmatpush1.msra.mxu0 0.0
  %5940 = vmatprep.subr.mxu0 0.0
  %5941 = vmatpush1.msra.mxu0 0.0
  %5942 = vmatprep.subr.mxu0 0.0
  %5943 = vmatpush1.msra.mxu0 0.0
  %5944 = vmatprep.subr.mxu0 0.0
  %5945 = vmatpush1.msra.mxu0 0.0
  %5946 = vmatprep.subr.mxu0 0.0
  %5947 = vmatpush1.msra.mxu0 0.0
  %5948 = vmatprep.subr.mxu0 0.0
  %5949 = vmatpush1.msra.mxu0 0.0
  %5950 = vmatprep.subr.mxu0 0.0
  %5951 = vmatpush1.msra.mxu0 0.0
  %5952 = vmatprep.subr.mxu0 0.0
  %5953 = vmatpush1.msra.mxu0 0.0
  %5954 = vmatprep.subr.mxu0 0.0
  %5955 = vmatpush1.msra.mxu0 0.0
  %5956 = vmatprep.subr.mxu0 0.0
  %5957 = vmatpush1.msra.mxu0 0.0
  %5958 = vmatprep.subr.mxu0 0.0
  %5959 = vmatpush1.msra.mxu0 0.0
  %5960 = vmatprep.subr.mxu0 0.0
  %5961 = vmatpush1.msra.mxu0 0.0
  %5962 = vmatprep.subr.mxu0 0.0
  %5963 = vmatpush1.msra.mxu0 0.0
  %5964 = vmatprep.mubr.f32.mxu0 0.0
  %5965 = vmatmul.mubr.f32.gmra.mrb[0].mxu0 %v5895
  %v5966 = vpop.f32.mrb[0].mxu0
  %v5967 = vadd.f32 0.0, %v5966
  %v5968 = vpop.f32.mrb[0].mxu0
  %5969 = vdwg.mxu0
  %v5970 = vlaneseq
  %v5971 = vshrl.u32 %v5970, 7
  %v5972 = vsub.s32 0, %v5971
  %v5973 = vrot.slane %v5967, %v5972
  %v5974 = vmul.f32 %v5695, %v5973
  %v5975 = vmul.f32 %v5696, %v5973
  %v5976 = vmul.f32 %v5697, %v5973
  %v5977 = vmul.f32 %v5698, %v5973
  %v5978 = vmul.f32 %v5699, %v5973
  %v5979 = vmul.f32 %v5700, %v5973
  %v5980 = vmul.f32 %v5701, %v5973
  %v5981 = vmul.f32 %v5702, %v5973
  %v5982 = vmul.f32 %v5703, %v5973
  %v5983 = vmul.f32 %v5704, %v5973
  %v5984 = vmul.f32 %v5705, %v5973
  %v5985 = vmul.f32 %v5706, %v5973
  %v5986 = vmul.f32 %v5707, %v5973
  %v5987 = vmul.f32 %v5708, %v5973
  %v5988 = vmul.f32 %v5709, %v5973
  %v5989 = vmul.f32 %v5710, %v5973
  %v5990 = vlaneseq
  %v5991 = vshrl.u32 %v5990, 7
  %v5992 = vsub.s32 1, %v5991
  %v5993 = vrot.slane %v5967, %v5992
  %v5994 = vadd.f32 %v5974, %v5993
  %v5995 = vadd.f32 %v5975, %v5993
  %v5996 = vadd.f32 %v5976, %v5993
  %v5997 = vadd.f32 %v5977, %v5993
  %v5998 = vadd.f32 %v5978, %v5993
  %v5999 = vadd.f32 %v5979, %v5993
  %v6000 = vadd.f32 %v5980, %v5993
  %v6001 = vadd.f32 %v5981, %v5993
  %v6002 = vadd.f32 %v5982, %v5993
  %v6003 = vadd.f32 %v5983, %v5993
  %v6004 = vadd.f32 %v5984, %v5993
  %v6005 = vadd.f32 %v5985, %v5993
  %v6006 = vadd.f32 %v5986, %v5993
  %v6007 = vadd.f32 %v5987, %v5993
  %v6008 = vadd.f32 %v5988, %v5993
  %v6009 = vadd.f32 %v5989, %v5993
  %v6010 = vmax.f32 %v5994, 0.0
  %v6011 = vmax.f32 %v5995, 0.0
  %v6012 = vmax.f32 %v5996, 0.0
  %v6013 = vmax.f32 %v5997, 0.0
  %v6014 = vmax.f32 %v5998, 0.0
  %v6015 = vmax.f32 %v5999, 0.0
  %v6016 = vmax.f32 %v6000, 0.0
  %v6017 = vmax.f32 %v6001, 0.0
  %v6018 = vmax.f32 %v6002, 0.0
  %v6019 = vmax.f32 %v6003, 0.0
  %v6020 = vmax.f32 %v6004, 0.0
  %v6021 = vmax.f32 %v6005, 0.0
  %v6022 = vmax.f32 %v6006, 0.0
  %v6023 = vmax.f32 %v6007, 0.0
  %v6024 = vmax.f32 %v6008, 0.0
  %v6025 = vmax.f32 %v6009, 0.0
  %6026 = vst [vmem:[%s14] sm:$0xff] %v6010
  %6027 = vst [vmem:[%s14 + $0x8] sm:$0xff] %v6011
  %6028 = vst [vmem:[%s14 + $0x10] sm:$0xff] %v6012
  %6029 = vst [vmem:[%s14 + $0x18] sm:$0xff] %v6013
  %6030 = vst [vmem:[%s14 + $0x20] sm:$0xff] %v6014
  %6031 = vst [vmem:[%s14 + $0x28] sm:$0xff] %v6015
  %6032 = vst [vmem:[%s14 + $0x30] sm:$0xff] %v6016
  %6033 = vst [vmem:[%s14 + $0x38] sm:$0xff] %v6017
  %6034 = vst [vmem:[%s14 + $0x40] sm:$0xff] %v6018
  %6035 = vst [vmem:[%s14 + $0x48] sm:$0xff] %v6019
  %6036 = vst [vmem:[%s14 + $0x50] sm:$0xff] %v6020
  %6037 = vst [vmem:[%s14 + $0x58] sm:$0xff] %v6021
  %6038 = vst [vmem:[%s14 + $0x60] sm:$0xff] %v6022
  %6039 = vst [vmem:[%s14 + $0x68] sm:$0xff] %v6023
  %6040 = vst [vmem:[%s14 + $0x70] sm:$0xff] %v6024
  %6041 = vst [vmem:[%s14 + $0x78] sm:$0xff] %v6025
  // Predicated region
  $region58: #{up_forward.1} parent=0 // pred_check
    _
  $region59: #{up_forward.1} parent=0 // pred_check_branch
    %6043 = sbr.rel (0) target = $region61
  $region60: #{up_forward.1} parent=0 // pred_region
    _
  $region61: #{up_forward.1} parent=0 // pred_fallthru
    _
  // Predicated region
  $region62: #{up_forward.1} parent=0 // pred_check
    _
  $region63: #{up_forward.1} parent=0 // pred_check_branch
    %6045 = sbr.rel (0) target = $region65
  $region64: #{up_forward.1} parent=0 // pred_region
    _
  $region65: #{up_forward.1} parent=0 // pred_fallthru
    _

</llo_original>
